<compile_context>
chip_gen: v7x
topology: tpu7x:2x2x1
jax: 0.10.0
libtpu: 0.0.40
codegen_flags: <defaults>
</compile_context>

<pallas_src>
import functools

import jax
import jax.numpy as jnp
from jax.experimental import pallas as pl
from jax.experimental.pallas import tpu as pltpu


# ----------------------------------------------------------------------------- kernel
def _mlp2_kernel(x_ref, w1_ref, b1_ref, w4_ref, b4_ref, w5_ref, b5_ref,
                 wo_ref, bo_ref, o_ref):
    """Fused 4-layer MLP on a (features, batch_tile) activation layout.

    All matmuls run on the MXU with f32 accumulation; bias-add / ReLU on the
    VPU.  Batch sits on the lane axis, so every store is lane-dense.
    """
    h = jnp.dot(w1_ref[...], x_ref[...],
                preferred_element_type=jnp.float32) + b1_ref[...]
    h = jnp.maximum(h, 0.0)                                     # hidden_layer1
    h = jnp.dot(w4_ref[...], h,
                preferred_element_type=jnp.float32) + b4_ref[...]
    h = jnp.maximum(h, 0.0)                                     # hidden_layer4
    h = jnp.dot(w5_ref[...], h,
                preferred_element_type=jnp.float32) + b5_ref[...]
    h = jnp.maximum(h, 0.0)                                     # hidden_layer5
    o_ref[...] = (jnp.dot(wo_ref[...], h,
                          preferred_element_type=jnp.float32)
                  + bo_ref[...])                                # self.out


# ----------------------------------------------------------------------------- helpers
def _round_up(n, m):
    return ((n + m - 1) // m) * m


def _device_is_v7x():
    """Trace-time check whether we are targeting a 2-TensorCore (v7x) chip."""
    try:
        kind = jax.devices()[0].device_kind.lower()
    except Exception:  # pragma: no cover - defensive
        return False
    return "v7" in kind


def _pick_batch_tile(B, requested, split_for_megacore):
    """Pick the batch tile (lane-axis tile of the transposed activations).

    * If the whole batch fits in one tile, use one full-size step on
      single-TC chips (v5e/v6e): no pointless grid-step overhead.
    * On v7x, split into two 128-aligned halves so both TensorCores run.
    * Otherwise cap at `requested`, kept a multiple of 128 so every
      non-final block is lane-aligned (last ragged block is handled by
      Pallas' OOB-discard semantics).
    """
    cap = max(128, (requested // 128) * 128)
    if B <= cap:
        if split_for_megacore and B >= 256:
            half = _round_up((B + 1) // 2, 128)
            if half < B:
                return half
        return B
    return cap


def _prep_params(params):
    """Zero-pad hidden widths to multiples of 128 and reshape biases to
    columns.  Padding is exact: padded rows/cols are 0 and ReLU(0)=0."""
    h1, in_f = params["w1"].shape
    h2 = params["w4"].shape[0]
    h3 = params["w5"].shape[0]
    out = params["wo"].shape[0]
    h1p, h2p, h3p = _round_up(h1, 128), _round_up(h2, 128), _round_up(h3, 128)
    outp = _round_up(out, 8)

    w1 = jnp.pad(params["w1"], ((0, h1p - h1), (0, 0)))           # (h1p, in)
    b1 = jnp.pad(params["b1"], (0, h1p - h1))[:, None]            # (h1p, 1)
    w4 = jnp.pad(params["w4"], ((0, h2p - h2), (0, h1p - h1)))    # (h2p, h1p)
    b4 = jnp.pad(params["b4"], (0, h2p - h2))[:, None]            # (h2p, 1)
    w5 = jnp.pad(params["w5"], ((0, h3p - h3), (0, h2p - h2)))    # (h3p, h2p)
    b5 = jnp.pad(params["b5"], (0, h3p - h3))[:, None]            # (h3p, 1)
    wo = jnp.pad(params["wo"], ((0, outp - out), (0, h3p - h3)))  # (outp, h3p)
    bo = jnp.pad(params["bo"], (0, outp - out))[:, None]          # (outp, 1)
    return (w1, b1, w4, b4, w5, b5, wo, bo), in_f, out, outp


# ----------------------------------------------------------------------------- wrapper
@functools.partial(jax.jit, static_argnames=("batch_tile",))
def mlp2_forward(x, params, *, batch_tile=1024):
    """Run the MLP2 forward pass.

    x: (B, input_features) f32
    params: dict with w1,b1,w4,b4,w5,b5,wo,bo in PyTorch layout
            (W: (out, in), b: (out,)).
    Returns (B, output_size) f32.
    """
    x = x.astype(jnp.float32)
    B = x.shape[0]
    (w1, b1, w4, b4, w5, b5, wo, bo), in_f, out_size, out_p = _prep_params(params)

    is_v7x = _device_is_v7x()
    tile = _pick_batch_tile(B, batch_tile, split_for_megacore=is_v7x)
    grid_n = pl.cdiv(B, tile)

    if grid_n == 1:
        semantics = ("arbitrary",)
    elif is_v7x and grid_n % 2 == 0:
        # Explicit megacore sharding on v7x (2 TensorCores).
        semantics = (getattr(pltpu, "CORE_PARALLEL", "parallel"),)
    else:
        semantics = ("parallel",)

    def const_spec(shape):
        # Weights/biases: same block every grid step -> fetched once, and
        # single-buffered so no VMEM is wasted on a second buffer.
        return pl.BlockSpec(shape, lambda i: (0, 0),
                            pipeline_mode=pl.Buffered(1))

    # Batch on the lane axis everywhere: x^T in, (out_p, B) out (lane-dense).
    xt = x.T                                                    # (in_f, B)

    out_t = pl.pallas_call(
        _mlp2_kernel,
        out_shape=jax.ShapeDtypeStruct((out_p, B), jnp.float32),
        grid_spec=pltpu.PrefetchScalarGridSpec(
            num_scalar_prefetch=0,
            grid=(grid_n,),
            in_specs=[
                pl.BlockSpec((in_f, tile), lambda i: (0, i)),   # x^T batch tile
                const_spec(w1.shape), const_spec(b1.shape),
                const_spec(w4.shape), const_spec(b4.shape),
                const_spec(w5.shape), const_spec(b5.shape),
                const_spec(wo.shape), const_spec(bo.shape),
            ],
            out_specs=pl.BlockSpec((out_p, tile), lambda i: (0, i)),
        ),
        compiler_params=pltpu.CompilerParams(
            dimension_semantics=semantics),
    )(xt, w1, b1, w4, b4, w5, b5, wo, bo)

    # Drop padded output rows, put batch back on the leading axis.
    return out_t[:out_size].T


# ----------------------------------------------------------------------------- init / reference
def init_mlp2_params(key, input_features=10, output_size=1):
    """Deterministic init mimicking PyTorch nn.Linear default:
    W, b ~ U(-1/sqrt(fan_in), 1/sqrt(fan_in)); W stored as (out, in)."""
    dims = [(input_features, 500),  # hidden_layer1
            (500, 100),             # hidden_layer4
            (100, 50),              # hidden_layer5
            (50, output_size)]      # out
    names = [("w1", "b1"), ("w4", "b4"), ("w5", "b5"), ("wo", "bo")]
    params = {}
    for (fan_in, fan_out), (wn, bn) in zip(dims, names):
        key, kw, kb = jax.random.split(key, 3)
        bound = 1.0 / (fan_in ** 0.5)
        params[wn] = jax.random.uniform(
            kw, (fan_out, fan_in), jnp.float32, minval=-bound, maxval=bound)
        params[bn] = jax.random.uniform(
            kb, (fan_out,), jnp.float32, minval=-bound, maxval=bound)
    return params


def mlp2_reference(x, params):
    """Pure-JAX reference for correctness checking (PyTorch layout)."""
    h = jnp.maximum(x @ params["w1"].T + params["b1"], 0.0)
    h = jnp.maximum(h @ params["w4"].T + params["b4"], 0.0)
    h = jnp.maximum(h @ params["w5"].T + params["b5"], 0.0)
    return h @ params["wo"].T + params["bo"]


# ----------------------------------------------------------------------------- main
if __name__ == "__main__":
    key = jax.random.PRNGKey(0)
    k_params, k_x, k_x2 = jax.random.split(key, 3)

    input_features, output_size = 10, 1
    params = init_mlp2_params(k_params, input_features, output_size)

    # Representative batch: one full-size lane-dense step on v5e/v6e, a
    # 2-way CORE_PARALLEL split on v7x.
    batch = 512
    x = jax.random.normal(k_x, (batch, input_features), jnp.float32)
    out = jax.block_until_ready(mlp2_forward(x, params))
    ref = mlp2_reference(x, params)
    assert out.shape == (batch, output_size)
    assert jnp.allclose(out, ref, atol=1e-3, rtol=1e-3)

    # Small ragged batch: tile == B, block == full array dims.
    x_small = jax.random.normal(k_x2, (13, input_features), jnp.float32)
    out_small = jax.block_until_ready(mlp2_forward(x_small, params))
    assert jnp.allclose(out_small, mlp2_reference(x_small, params),
                        atol=1e-3, rtol=1e-3)

    # Multi-output head exercises the padded (out_p, B) output path.
    params3 = init_mlp2_params(k_params, input_features, 3)
    x3 = jax.random.normal(k_x, (32, input_features), jnp.float32)
    out3 = jax.block_until_ready(mlp2_forward(x3, params3))
    assert out3.shape == (32, 3)
    assert jnp.allclose(out3, mlp2_reference(x3, params3), atol=1e-3, rtol=1e-3)

    print("KERNEL_OK")
</pallas_src>

<mosaic_0001>
module attributes {stable_mosaic.version = 11 : i64} {
  func.func @_mlp2_kernel(%arg0: i32, %arg1: memref<10x512xf32, #tpu.memory_space<vmem>>, %arg2: memref<512x10xf32, #tpu.memory_space<vmem>>, %arg3: memref<512x1xf32, #tpu.memory_space<vmem>>, %arg4: memref<128x512xf32, #tpu.memory_space<vmem>>, %arg5: memref<128x1xf32, #tpu.memory_space<vmem>>, %arg6: memref<128x128xf32, #tpu.memory_space<vmem>>, %arg7: memref<128x1xf32, #tpu.memory_space<vmem>>, %arg8: memref<8x128xf32, #tpu.memory_space<vmem>>, %arg9: memref<8x1xf32, #tpu.memory_space<vmem>>, %arg10: memref<8x512xf32, #tpu.memory_space<vmem>>) attributes {dimension_semantics = [#tpu.dimension_semantics<arbitrary>], iteration_bounds = array<i64: 1>, scalar_prefetch = 0 : i64, scratch_operands = 0 : i64, tpu.core_type = #tpu.core_type<tc>, window_params = [{transform_indices = @transform_0, window_bounds = array<i64: 10, 512>}, {pipeline_mode = #tpu.pipeline_mode<synchronous>, transform_indices = @transform_1, window_bounds = array<i64: 512, 10>}, {pipeline_mode = #tpu.pipeline_mode<synchronous>, transform_indices = @transform_2, window_bounds = array<i64: 512, 1>}, {pipeline_mode = #tpu.pipeline_mode<synchronous>, transform_indices = @transform_3, window_bounds = array<i64: 128, 512>}, {pipeline_mode = #tpu.pipeline_mode<synchronous>, transform_indices = @transform_4, window_bounds = array<i64: 128, 1>}, {pipeline_mode = #tpu.pipeline_mode<synchronous>, transform_indices = @transform_5, window_bounds = array<i64: 128, 128>}, {pipeline_mode = #tpu.pipeline_mode<synchronous>, transform_indices = @transform_6, window_bounds = array<i64: 128, 1>}, {pipeline_mode = #tpu.pipeline_mode<synchronous>, transform_indices = @transform_7, window_bounds = array<i64: 8, 128>}, {pipeline_mode = #tpu.pipeline_mode<synchronous>, transform_indices = @transform_8, window_bounds = array<i64: 8, 1>}, {transform_indices = @transform_9, window_bounds = array<i64: 8, 512>}]} {
    %c0 = arith.constant 0 : index
    %c0_0 = arith.constant 0 : index
    %0 = vector.load %arg2[%c0, %c0_0] : memref<512x10xf32, #tpu.memory_space<vmem>>, vector<512x10xf32>
    %c0_1 = arith.constant 0 : index
    %c0_2 = arith.constant 0 : index
    %1 = vector.load %arg1[%c0_1, %c0_2] : memref<10x512xf32, #tpu.memory_space<vmem>>, vector<10x512xf32>
    %cst = arith.constant dense<0.000000e+00> : vector<512x512xf32>
    %2 = tpu.matmul %0, %1, %cst {dimension_numbers = #tpu.dot_dimension_numbers<[1], [0], [0], [1], [0, 0, 1, 1], [], []>} : vector<512x10xf32>, vector<10x512xf32>, vector<512x512xf32> -> vector<512x512xf32>
    %c0_3 = arith.constant 0 : index
    %c0_4 = arith.constant 0 : index
    %3 = vector.load %arg3[%c0_3, %c0_4] : memref<512x1xf32, #tpu.memory_space<vmem>>, vector<512x1xf32>
    %4 = vector.broadcast %3 : vector<512x1xf32> to vector<512x512xf32>
    %5 = arith.addf %2, %4 : vector<512x512xf32>
    %cst_5 = arith.constant 0.000000e+00 : f32
    %6 = vector.broadcast %cst_5 : f32 to vector<512x512xf32>
    %7 = arith.maximumf %5, %6 : vector<512x512xf32>
    %c0_6 = arith.constant 0 : index
    %c0_7 = arith.constant 0 : index
    %8 = vector.load %arg4[%c0_6, %c0_7] : memref<128x512xf32, #tpu.memory_space<vmem>>, vector<128x512xf32>
    %cst_8 = arith.constant dense<0.000000e+00> : vector<128x512xf32>
    %9 = tpu.matmul %8, %7, %cst_8 {dimension_numbers = #tpu.dot_dimension_numbers<[1], [0], [0], [1], [0, 0, 1, 1], [], []>} : vector<128x512xf32>, vector<512x512xf32>, vector<128x512xf32> -> vector<128x512xf32>
    %c0_9 = arith.constant 0 : index
    %c0_10 = arith.constant 0 : index
    %10 = vector.load %arg5[%c0_9, %c0_10] : memref<128x1xf32, #tpu.memory_space<vmem>>, vector<128x1xf32>
    %11 = vector.broadcast %10 : vector<128x1xf32> to vector<128x512xf32>
    %12 = arith.addf %9, %11 : vector<128x512xf32>
    %cst_11 = arith.constant 0.000000e+00 : f32
    %13 = vector.broadcast %cst_11 : f32 to vector<128x512xf32>
    %14 = arith.maximumf %12, %13 : vector<128x512xf32>
    %c0_12 = arith.constant 0 : index
    %c0_13 = arith.constant 0 : index
    %15 = vector.load %arg6[%c0_12, %c0_13] : memref<128x128xf32, #tpu.memory_space<vmem>>, vector<128x128xf32>
    %cst_14 = arith.constant dense<0.000000e+00> : vector<128x512xf32>
    %16 = tpu.matmul %15, %14, %cst_14 {dimension_numbers = #tpu.dot_dimension_numbers<[1], [0], [0], [1], [0, 0, 1, 1], [], []>} : vector<128x128xf32>, vector<128x512xf32>, vector<128x512xf32> -> vector<128x512xf32>
    %c0_15 = arith.constant 0 : index
    %c0_16 = arith.constant 0 : index
    %17 = vector.load %arg7[%c0_15, %c0_16] : memref<128x1xf32, #tpu.memory_space<vmem>>, vector<128x1xf32>
    %18 = vector.broadcast %17 : vector<128x1xf32> to vector<128x512xf32>
    %19 = arith.addf %16, %18 : vector<128x512xf32>
    %cst_17 = arith.constant 0.000000e+00 : f32
    %20 = vector.broadcast %cst_17 : f32 to vector<128x512xf32>
    %21 = arith.maximumf %19, %20 : vector<128x512xf32>
    %c0_18 = arith.constant 0 : index
    %c0_19 = arith.constant 0 : index
    %22 = vector.load %arg8[%c0_18, %c0_19] : memref<8x128xf32, #tpu.memory_space<vmem>>, vector<8x128xf32>
    %cst_20 = arith.constant dense<0.000000e+00> : vector<8x512xf32>
    %23 = tpu.matmul %22, %21, %cst_20 {dimension_numbers = #tpu.dot_dimension_numbers<[1], [0], [0], [1], [0, 0, 1, 1], [], []>} : vector<8x128xf32>, vector<128x512xf32>, vector<8x512xf32> -> vector<8x512xf32>
    %c0_21 = arith.constant 0 : index
    %c0_22 = arith.constant 0 : index
    %24 = vector.load %arg9[%c0_21, %c0_22] : memref<8x1xf32, #tpu.memory_space<vmem>>, vector<8x1xf32>
    %25 = vector.broadcast %24 : vector<8x1xf32> to vector<8x512xf32>
    %26 = arith.addf %23, %25 : vector<8x512xf32>
    %c0_23 = arith.constant 0 : index
    %c0_24 = arith.constant 0 : index
    %27 = vector.load %arg10[%c0_23, %c0_24] : memref<8x512xf32, #tpu.memory_space<vmem>>, vector<8x512xf32>
    tpu.vector_store %arg10[%c0_23, %c0_24], %26 {strides = array<i32>} : memref<8x512xf32, #tpu.memory_space<vmem>>, vector<8x512xf32>,
    return
  }
  func.func @transform_0(%arg0: i32) -> (i32, i32) {
    %c0_i32 = arith.constant 0 : i32
    %c0_i32_0 = arith.constant 0 : i32
    return %c0_i32, %arg0 : i32, i32
  }
  func.func @transform_1(%arg0: i32) -> (i32, i32) {
    %c0_i32 = arith.constant 0 : i32
    %c0_i32_0 = arith.constant 0 : i32
    %c0_i32_1 = arith.constant 0 : i32
    return %c0_i32, %c0_i32_0 : i32, i32
  }
  func.func @transform_2(%arg0: i32) -> (i32, i32) {
    %c0_i32 = arith.constant 0 : i32
    %c0_i32_0 = arith.constant 0 : i32
    %c0_i32_1 = arith.constant 0 : i32
    return %c0_i32, %c0_i32_0 : i32, i32
  }
  func.func @transform_3(%arg0: i32) -> (i32, i32) {
    %c0_i32 = arith.constant 0 : i32
    %c0_i32_0 = arith.constant 0 : i32
    %c0_i32_1 = arith.constant 0 : i32
    return %c0_i32, %c0_i32_0 : i32, i32
  }
  func.func @transform_4(%arg0: i32) -> (i32, i32) {
    %c0_i32 = arith.constant 0 : i32
    %c0_i32_0 = arith.constant 0 : i32
    %c0_i32_1 = arith.constant 0 : i32
    return %c0_i32, %c0_i32_0 : i32, i32
  }
  func.func @transform_5(%arg0: i32) -> (i32, i32) {
    %c0_i32 = arith.constant 0 : i32
    %c0_i32_0 = arith.constant 0 : i32
    %c0_i32_1 = arith.constant 0 : i32
    return %c0_i32, %c0_i32_0 : i32, i32
  }
  func.func @transform_6(%arg0: i32) -> (i32, i32) {
    %c0_i32 = arith.constant 0 : i32
    %c0_i32_0 = arith.constant 0 : i32
    %c0_i32_1 = arith.constant 0 : i32
    return %c0_i32, %c0_i32_0 : i32, i32
  }
  func.func @transform_7(%arg0: i32) -> (i32, i32) {
    %c0_i32 = arith.constant 0 : i32
    %c0_i32_0 = arith.constant 0 : i32
    %c0_i32_1 = arith.constant 0 : i32
    return %c0_i32, %c0_i32_0 : i32, i32
  }
  func.func @transform_8(%arg0: i32) -> (i32, i32) {
    %c0_i32 = arith.constant 0 : i32
    %c0_i32_0 = arith.constant 0 : i32
    %c0_i32_1 = arith.constant 0 : i32
    return %c0_i32, %c0_i32_0 : i32, i32
  }
  func.func @transform_9(%arg0: i32) -> (i32, i32) {
    %c0_i32 = arith.constant 0 : i32
    %c0_i32_0 = arith.constant 0 : i32
    return %c0_i32, %arg0 : i32, i32
  }
}

</mosaic_0001>

<llo_original>
// kernel: mlp2_forward.1
$region0: #{mlp2_forward.1}
  #allocation0 [shape = 'u32[]', space=smem, size = 0x4, offset = 0x4, fixed_abs, tag = 'smem constant byte address 0x4 - core index']
  #allocation1 [shape = 'u32[144,128]{1,0:T(1,128)}', space=vmem, size = 0x12000, scoped, tag = 'internal scratch']
  %s0 = inlined_call_operand.vmem [shape: f32[10,512], index: 0, kind: input, shape index: {}]
  %s1 = inlined_call_operand.vmem [shape: f32[512,10], index: 1, kind: input, shape index: {}]
  %s2 = inlined_call_operand.vmem [shape: f32[512,1], index: 2, kind: input, shape index: {}]
  %s3 = inlined_call_operand.vmem [shape: f32[128,512], index: 3, kind: input, shape index: {}]
  %s4 = inlined_call_operand.vmem [shape: f32[128,1], index: 4, kind: input, shape index: {}]
  %s5 = inlined_call_operand.vmem [shape: f32[128,128], index: 5, kind: input, shape index: {}]
  %s6 = inlined_call_operand.vmem [shape: f32[128,1], index: 6, kind: input, shape index: {}]
  %s7 = inlined_call_operand.vmem [shape: f32[8,128], index: 7, kind: input, shape index: {}]
  %s8 = inlined_call_operand.vmem [shape: f32[8,1], index: 8, kind: input, shape index: {}]
  %s9 = inlined_call_operand.vmem [shape: f32[8,512], index: 9, kind: output, shape index: {}]
  %s10 = sld [smem:[#allocation0]]
  $region46: #{mlp2_forward.1} parent=0
    _
  %s12 = ssub.s32 1, %s10
  %s13 = scalar_select 0, %s12, %s10
  // Predicated region
  $region2: #{mlp2_forward.1} parent=0 // pred_check
    _
  $region3: #{mlp2_forward.1} parent=0 // pred_check_branch
    %15 = sbr.rel (0) target = $region5
  $region4: #{mlp2_forward.1} parent=0 // pred_region
    _
  $region5: #{mlp2_forward.1} parent=0 // pred_fallthru
    _
  // Predicated region
  $region6: #{mlp2_forward.1} parent=0 // pred_check
    _
  $region7: #{mlp2_forward.1} parent=0 // pred_check_branch
    %17 = sbr.rel (0) target = $region9
  $region8: #{mlp2_forward.1} parent=0 // pred_region
    _
  $region9: #{mlp2_forward.1} parent=0 // pred_fallthru
    _
  // Predicated region
  $region10: #{mlp2_forward.1} parent=0 // pred_check
    _
  $region11: #{mlp2_forward.1} parent=0 // pred_check_branch
    %19 = sbr.rel (0) target = $region13
  $region12: #{mlp2_forward.1} parent=0 // pred_region
    _
  $region13: #{mlp2_forward.1} parent=0 // pred_fallthru
    _
  // Predicated region
  $region14: #{mlp2_forward.1} parent=0 // pred_check
    _
  $region15: #{mlp2_forward.1} parent=0 // pred_check_branch
    %21 = sbr.rel (0) target = $region17
  $region16: #{mlp2_forward.1} parent=0 // pred_region
    _
  $region17: #{mlp2_forward.1} parent=0 // pred_fallthru
    _
  // Predicated region
  $region18: #{mlp2_forward.1} parent=0 // pred_check
    _
  $region19: #{mlp2_forward.1} parent=0 // pred_check_branch
    %23 = sbr.rel (0) target = $region21
  $region20: #{mlp2_forward.1} parent=0 // pred_region
    _
  $region21: #{mlp2_forward.1} parent=0 // pred_fallthru
    _
  // Predicated region
  $region22: #{mlp2_forward.1} parent=0 // pred_check
    _
  $region23: #{mlp2_forward.1} parent=0 // pred_check_branch
    %25 = sbr.rel (0) target = $region25
  $region24: #{mlp2_forward.1} parent=0 // pred_region
    _
  $region25: #{mlp2_forward.1} parent=0 // pred_fallthru
    _
  // Predicated region
  $region26: #{mlp2_forward.1} parent=0 // pred_check
    _
  $region27: #{mlp2_forward.1} parent=0 // pred_check_branch
    %27 = sbr.rel (0) target = $region29
  $region28: #{mlp2_forward.1} parent=0 // pred_region
    _
  $region29: #{mlp2_forward.1} parent=0 // pred_fallthru
    _
  // Predicated region
  $region30: #{mlp2_forward.1} parent=0 // pred_check
    _
  $region31: #{mlp2_forward.1} parent=0 // pred_check_branch
    %29 = sbr.rel (0) target = $region33
  $region32: #{mlp2_forward.1} parent=0 // pred_region
    _
  $region33: #{mlp2_forward.1} parent=0 // pred_fallthru
    _
  // Predicated region
  $region34: #{mlp2_forward.1} parent=0 // pred_check
    _
  $region35: #{mlp2_forward.1} parent=0 // pred_check_branch
    %31 = sbr.rel (0) target = $region37
  $region36: #{mlp2_forward.1} parent=0 // pred_region
    _
  $region37: #{mlp2_forward.1} parent=0 // pred_fallthru
    _
  %v32 = vld [vmem:[%s1] sm:$0xff]
  %v33 = vld [vmem:[%s1 + $0x8] sm:$0xff]
  %v34 = vld [vmem:[%s1 + $0x10] sm:$0xff]
  %v35 = vld [vmem:[%s1 + $0x18] sm:$0xff]
  %v36 = vld [vmem:[%s1 + $0x20] sm:$0xff]
  %v37 = vld [vmem:[%s1 + $0x28] sm:$0xff]
  %v38 = vld [vmem:[%s1 + $0x30] sm:$0xff]
  %v39 = vld [vmem:[%s1 + $0x38] sm:$0xff]
  %v40 = vld [vmem:[%s1 + $0x40] sm:$0xff]
  %v41 = vld [vmem:[%s1 + $0x48] sm:$0xff]
  %v42 = vld [vmem:[%s1 + $0x50] sm:$0xff]
  %v43 = vld [vmem:[%s1 + $0x58] sm:$0xff]
  %v44 = vld [vmem:[%s1 + $0x60] sm:$0xff]
  %v45 = vld [vmem:[%s1 + $0x68] sm:$0xff]
  %v46 = vld [vmem:[%s1 + $0x70] sm:$0xff]
  %v47 = vld [vmem:[%s1 + $0x78] sm:$0xff]
  %v48 = vld [vmem:[%s1 + $0x80] sm:$0xff]
  %v49 = vld [vmem:[%s1 + $0x88] sm:$0xff]
  %v50 = vld [vmem:[%s1 + $0x90] sm:$0xff]
  %v51 = vld [vmem:[%s1 + $0x98] sm:$0xff]
  %v52 = vld [vmem:[%s1 + $0xa0] sm:$0xff]
  %v53 = vld [vmem:[%s1 + $0xa8] sm:$0xff]
  %v54 = vld [vmem:[%s1 + $0xb0] sm:$0xff]
  %v55 = vld [vmem:[%s1 + $0xb8] sm:$0xff]
  %v56 = vld [vmem:[%s1 + $0xc0] sm:$0xff]
  %v57 = vld [vmem:[%s1 + $0xc8] sm:$0xff]
  %v58 = vld [vmem:[%s1 + $0xd0] sm:$0xff]
  %v59 = vld [vmem:[%s1 + $0xd8] sm:$0xff]
  %v60 = vld [vmem:[%s1 + $0xe0] sm:$0xff]
  %v61 = vld [vmem:[%s1 + $0xe8] sm:$0xff]
  %v62 = vld [vmem:[%s1 + $0xf0] sm:$0xff]
  %v63 = vld [vmem:[%s1 + $0xf8] sm:$0xff]
  %v64 = vld [vmem:[%s1 + $0x100] sm:$0xff]
  %v65 = vld [vmem:[%s1 + $0x108] sm:$0xff]
  %v66 = vld [vmem:[%s1 + $0x110] sm:$0xff]
  %v67 = vld [vmem:[%s1 + $0x118] sm:$0xff]
  %v68 = vld [vmem:[%s1 + $0x120] sm:$0xff]
  %v69 = vld [vmem:[%s1 + $0x128] sm:$0xff]
  %v70 = vld [vmem:[%s1 + $0x130] sm:$0xff]
  %v71 = vld [vmem:[%s1 + $0x138] sm:$0xff]
  %v72 = vld [vmem:[%s1 + $0x140] sm:$0xff]
  %v73 = vld [vmem:[%s1 + $0x148] sm:$0xff]
  %v74 = vld [vmem:[%s1 + $0x150] sm:$0xff]
  %v75 = vld [vmem:[%s1 + $0x158] sm:$0xff]
  %v76 = vld [vmem:[%s1 + $0x160] sm:$0xff]
  %v77 = vld [vmem:[%s1 + $0x168] sm:$0xff]
  %v78 = vld [vmem:[%s1 + $0x170] sm:$0xff]
  %v79 = vld [vmem:[%s1 + $0x178] sm:$0xff]
  %v80 = vld [vmem:[%s1 + $0x180] sm:$0xff]
  %v81 = vld [vmem:[%s1 + $0x188] sm:$0xff]
  %v82 = vld [vmem:[%s1 + $0x190] sm:$0xff]
  %v83 = vld [vmem:[%s1 + $0x198] sm:$0xff]
  %v84 = vld [vmem:[%s1 + $0x1a0] sm:$0xff]
  %v85 = vld [vmem:[%s1 + $0x1a8] sm:$0xff]
  %v86 = vld [vmem:[%s1 + $0x1b0] sm:$0xff]
  %v87 = vld [vmem:[%s1 + $0x1b8] sm:$0xff]
  %v88 = vld [vmem:[%s1 + $0x1c0] sm:$0xff]
  %v89 = vld [vmem:[%s1 + $0x1c8] sm:$0xff]
  %v90 = vld [vmem:[%s1 + $0x1d0] sm:$0xff]
  %v91 = vld [vmem:[%s1 + $0x1d8] sm:$0xff]
  %v92 = vld [vmem:[%s1 + $0x1e0] sm:$0xff]
  %v93 = vld [vmem:[%s1 + $0x1e8] sm:$0xff]
  %v94 = vld [vmem:[%s1 + $0x1f0] sm:$0xff]
  %v95 = vld [vmem:[%s1 + $0x1f8] sm:$0xff]
  %v96 = vld [vmem:[%s0] sm:$0xff]
  %v97 = vld [vmem:[%s0 + $0x8] sm:$0xff]
  %v98 = vld [vmem:[%s0 + $0x10] sm:$0xff]
  %v99 = vld [vmem:[%s0 + $0x18] sm:$0xff]
  %v100 = vld [vmem:[%s0 + $0x20] sm:$0x3]
  %v101 = vld [vmem:[%s0 + $0x28] sm:$0x3]
  %v102 = vld [vmem:[%s0 + $0x30] sm:$0x3]
  %v103 = vld [vmem:[%s0 + $0x38] sm:$0x3]
  %v104 = vld [vmem:[%s2] sm:$0xff]
  %v105 = vld [vmem:[%s2 + $0x8] sm:$0xff]
  %v106 = vld [vmem:[%s2 + $0x10] sm:$0xff]
  %v107 = vld [vmem:[%s2 + $0x18] sm:$0xff]
  %v108 = vld [vmem:[%s2 + $0x20] sm:$0xff]
  %v109 = vld [vmem:[%s2 + $0x28] sm:$0xff]
  %v110 = vld [vmem:[%s2 + $0x30] sm:$0xff]
  %v111 = vld [vmem:[%s2 + $0x38] sm:$0xff]
  %v112 = vld [vmem:[%s2 + $0x40] sm:$0xff]
  %v113 = vld [vmem:[%s2 + $0x48] sm:$0xff]
  %v114 = vld [vmem:[%s2 + $0x50] sm:$0xff]
  %v115 = vld [vmem:[%s2 + $0x58] sm:$0xff]
  %v116 = vld [vmem:[%s2 + $0x60] sm:$0xff]
  %v117 = vld [vmem:[%s2 + $0x68] sm:$0xff]
  %v118 = vld [vmem:[%s2 + $0x70] sm:$0xff]
  %v119 = vld [vmem:[%s2 + $0x78] sm:$0xff]
  %v120 = vld [vmem:[%s2 + $0x80] sm:$0xff]
  %v121 = vld [vmem:[%s2 + $0x88] sm:$0xff]
  %v122 = vld [vmem:[%s2 + $0x90] sm:$0xff]
  %v123 = vld [vmem:[%s2 + $0x98] sm:$0xff]
  %v124 = vld [vmem:[%s2 + $0xa0] sm:$0xff]
  %v125 = vld [vmem:[%s2 + $0xa8] sm:$0xff]
  %v126 = vld [vmem:[%s2 + $0xb0] sm:$0xff]
  %v127 = vld [vmem:[%s2 + $0xb8] sm:$0xff]
  %v128 = vld [vmem:[%s2 + $0xc0] sm:$0xff]
  %v129 = vld [vmem:[%s2 + $0xc8] sm:$0xff]
  %v130 = vld [vmem:[%s2 + $0xd0] sm:$0xff]
  %v131 = vld [vmem:[%s2 + $0xd8] sm:$0xff]
  %v132 = vld [vmem:[%s2 + $0xe0] sm:$0xff]
  %v133 = vld [vmem:[%s2 + $0xe8] sm:$0xff]
  %v134 = vld [vmem:[%s2 + $0xf0] sm:$0xff]
  %v135 = vld [vmem:[%s2 + $0xf8] sm:$0xff]
  %v136 = vld [vmem:[%s2 + $0x100] sm:$0xff]
  %v137 = vld [vmem:[%s2 + $0x108] sm:$0xff]
  %v138 = vld [vmem:[%s2 + $0x110] sm:$0xff]
  %v139 = vld [vmem:[%s2 + $0x118] sm:$0xff]
  %v140 = vld [vmem:[%s2 + $0x120] sm:$0xff]
  %v141 = vld [vmem:[%s2 + $0x128] sm:$0xff]
  %v142 = vld [vmem:[%s2 + $0x130] sm:$0xff]
  %v143 = vld [vmem:[%s2 + $0x138] sm:$0xff]
  %v144 = vld [vmem:[%s2 + $0x140] sm:$0xff]
  %v145 = vld [vmem:[%s2 + $0x148] sm:$0xff]
  %v146 = vld [vmem:[%s2 + $0x150] sm:$0xff]
  %v147 = vld [vmem:[%s2 + $0x158] sm:$0xff]
  %v148 = vld [vmem:[%s2 + $0x160] sm:$0xff]
  %v149 = vld [vmem:[%s2 + $0x168] sm:$0xff]
  %v150 = vld [vmem:[%s2 + $0x170] sm:$0xff]
  %v151 = vld [vmem:[%s2 + $0x178] sm:$0xff]
  %v152 = vld [vmem:[%s2 + $0x180] sm:$0xff]
  %v153 = vld [vmem:[%s2 + $0x188] sm:$0xff]
  %v154 = vld [vmem:[%s2 + $0x190] sm:$0xff]
  %v155 = vld [vmem:[%s2 + $0x198] sm:$0xff]
  %v156 = vld [vmem:[%s2 + $0x1a0] sm:$0xff]
  %v157 = vld [vmem:[%s2 + $0x1a8] sm:$0xff]
  %v158 = vld [vmem:[%s2 + $0x1b0] sm:$0xff]
  %v159 = vld [vmem:[%s2 + $0x1b8] sm:$0xff]
  %v160 = vld [vmem:[%s2 + $0x1c0] sm:$0xff]
  %v161 = vld [vmem:[%s2 + $0x1c8] sm:$0xff]
  %v162 = vld [vmem:[%s2 + $0x1d0] sm:$0xff]
  %v163 = vld [vmem:[%s2 + $0x1d8] sm:$0xff]
  %v164 = vld [vmem:[%s2 + $0x1e0] sm:$0xff]
  %v165 = vld [vmem:[%s2 + $0x1e8] sm:$0xff]
  %v166 = vld [vmem:[%s2 + $0x1f0] sm:$0xff]
  %v167 = vld [vmem:[%s2 + $0x1f8] sm:$0xff]
  %169 = vset.pattern.permute.xlu0 0
  %170 = vperm.xlu0 %169, %v104
  %v171 = vpop.permute.xlu0 %170
  %174 = vset.pattern.permute.xlu0 0
  %175 = vperm.xlu0 %174, %v105
  %v176 = vpop.permute.xlu0 %175
  %179 = vset.pattern.permute.xlu0 0
  %180 = vperm.xlu0 %179, %v106
  %v181 = vpop.permute.xlu0 %180
  %184 = vset.pattern.permute.xlu0 0
  %185 = vperm.xlu0 %184, %v107
  %v186 = vpop.permute.xlu0 %185
  %189 = vset.pattern.permute.xlu0 0
  %190 = vperm.xlu0 %189, %v108
  %v191 = vpop.permute.xlu0 %190
  %194 = vset.pattern.permute.xlu0 0
  %195 = vperm.xlu0 %194, %v109
  %v196 = vpop.permute.xlu0 %195
  %199 = vset.pattern.permute.xlu0 0
  %200 = vperm.xlu0 %199, %v110
  %v201 = vpop.permute.xlu0 %200
  %204 = vset.pattern.permute.xlu0 0
  %205 = vperm.xlu0 %204, %v111
  %v206 = vpop.permute.xlu0 %205
  %209 = vset.pattern.permute.xlu0 0
  %210 = vperm.xlu0 %209, %v112
  %v211 = vpop.permute.xlu0 %210
  %214 = vset.pattern.permute.xlu0 0
  %215 = vperm.xlu0 %214, %v113
  %v216 = vpop.permute.xlu0 %215
  %219 = vset.pattern.permute.xlu0 0
  %220 = vperm.xlu0 %219, %v114
  %v221 = vpop.permute.xlu0 %220
  %224 = vset.pattern.permute.xlu0 0
  %225 = vperm.xlu0 %224, %v115
  %v226 = vpop.permute.xlu0 %225
  %229 = vset.pattern.permute.xlu0 0
  %230 = vperm.xlu0 %229, %v116
  %v231 = vpop.permute.xlu0 %230
  %234 = vset.pattern.permute.xlu0 0
  %235 = vperm.xlu0 %234, %v117
  %v236 = vpop.permute.xlu0 %235
  %239 = vset.pattern.permute.xlu0 0
  %240 = vperm.xlu0 %239, %v118
  %v241 = vpop.permute.xlu0 %240
  %244 = vset.pattern.permute.xlu0 0
  %245 = vperm.xlu0 %244, %v119
  %v246 = vpop.permute.xlu0 %245
  %249 = vset.pattern.permute.xlu0 0
  %250 = vperm.xlu0 %249, %v120
  %v251 = vpop.permute.xlu0 %250
  %254 = vset.pattern.permute.xlu0 0
  %255 = vperm.xlu0 %254, %v121
  %v256 = vpop.permute.xlu0 %255
  %259 = vset.pattern.permute.xlu0 0
  %260 = vperm.xlu0 %259, %v122
  %v261 = vpop.permute.xlu0 %260
  %264 = vset.pattern.permute.xlu0 0
  %265 = vperm.xlu0 %264, %v123
  %v266 = vpop.permute.xlu0 %265
  %269 = vset.pattern.permute.xlu0 0
  %270 = vperm.xlu0 %269, %v124
  %v271 = vpop.permute.xlu0 %270
  %274 = vset.pattern.permute.xlu0 0
  %275 = vperm.xlu0 %274, %v125
  %v276 = vpop.permute.xlu0 %275
  %279 = vset.pattern.permute.xlu0 0
  %280 = vperm.xlu0 %279, %v126
  %v281 = vpop.permute.xlu0 %280
  %284 = vset.pattern.permute.xlu0 0
  %285 = vperm.xlu0 %284, %v127
  %v286 = vpop.permute.xlu0 %285
  %289 = vset.pattern.permute.xlu0 0
  %290 = vperm.xlu0 %289, %v128
  %v291 = vpop.permute.xlu0 %290
  %294 = vset.pattern.permute.xlu0 0
  %295 = vperm.xlu0 %294, %v129
  %v296 = vpop.permute.xlu0 %295
  %299 = vset.pattern.permute.xlu0 0
  %300 = vperm.xlu0 %299, %v130
  %v301 = vpop.permute.xlu0 %300
  %304 = vset.pattern.permute.xlu0 0
  %305 = vperm.xlu0 %304, %v131
  %v306 = vpop.permute.xlu0 %305
  %309 = vset.pattern.permute.xlu0 0
  %310 = vperm.xlu0 %309, %v132
  %v311 = vpop.permute.xlu0 %310
  %314 = vset.pattern.permute.xlu0 0
  %315 = vperm.xlu0 %314, %v133
  %v316 = vpop.permute.xlu0 %315
  %319 = vset.pattern.permute.xlu0 0
  %320 = vperm.xlu0 %319, %v134
  %v321 = vpop.permute.xlu0 %320
  %324 = vset.pattern.permute.xlu0 0
  %325 = vperm.xlu0 %324, %v135
  %v326 = vpop.permute.xlu0 %325
  %329 = vset.pattern.permute.xlu0 0
  %330 = vperm.xlu0 %329, %v136
  %v331 = vpop.permute.xlu0 %330
  %334 = vset.pattern.permute.xlu0 0
  %335 = vperm.xlu0 %334, %v137
  %v336 = vpop.permute.xlu0 %335
  %339 = vset.pattern.permute.xlu0 0
  %340 = vperm.xlu0 %339, %v138
  %v341 = vpop.permute.xlu0 %340
  %344 = vset.pattern.permute.xlu0 0
  %345 = vperm.xlu0 %344, %v139
  %v346 = vpop.permute.xlu0 %345
  %349 = vset.pattern.permute.xlu0 0
  %350 = vperm.xlu0 %349, %v140
  %v351 = vpop.permute.xlu0 %350
  %354 = vset.pattern.permute.xlu0 0
  %355 = vperm.xlu0 %354, %v141
  %v356 = vpop.permute.xlu0 %355
  %359 = vset.pattern.permute.xlu0 0
  %360 = vperm.xlu0 %359, %v142
  %v361 = vpop.permute.xlu0 %360
  %364 = vset.pattern.permute.xlu0 0
  %365 = vperm.xlu0 %364, %v143
  %v366 = vpop.permute.xlu0 %365
  %369 = vset.pattern.permute.xlu0 0
  %370 = vperm.xlu0 %369, %v144
  %v371 = vpop.permute.xlu0 %370
  %374 = vset.pattern.permute.xlu0 0
  %375 = vperm.xlu0 %374, %v145
  %v376 = vpop.permute.xlu0 %375
  %379 = vset.pattern.permute.xlu0 0
  %380 = vperm.xlu0 %379, %v146
  %v381 = vpop.permute.xlu0 %380
  %384 = vset.pattern.permute.xlu0 0
  %385 = vperm.xlu0 %384, %v147
  %v386 = vpop.permute.xlu0 %385
  %389 = vset.pattern.permute.xlu0 0
  %390 = vperm.xlu0 %389, %v148
  %v391 = vpop.permute.xlu0 %390
  %394 = vset.pattern.permute.xlu0 0
  %395 = vperm.xlu0 %394, %v149
  %v396 = vpop.permute.xlu0 %395
  %399 = vset.pattern.permute.xlu0 0
  %400 = vperm.xlu0 %399, %v150
  %v401 = vpop.permute.xlu0 %400
  %404 = vset.pattern.permute.xlu0 0
  %405 = vperm.xlu0 %404, %v151
  %v406 = vpop.permute.xlu0 %405
  %409 = vset.pattern.permute.xlu0 0
  %410 = vperm.xlu0 %409, %v152
  %v411 = vpop.permute.xlu0 %410
  %414 = vset.pattern.permute.xlu0 0
  %415 = vperm.xlu0 %414, %v153
  %v416 = vpop.permute.xlu0 %415
  %419 = vset.pattern.permute.xlu0 0
  %420 = vperm.xlu0 %419, %v154
  %v421 = vpop.permute.xlu0 %420
  %424 = vset.pattern.permute.xlu0 0
  %425 = vperm.xlu0 %424, %v155
  %v426 = vpop.permute.xlu0 %425
  %429 = vset.pattern.permute.xlu0 0
  %430 = vperm.xlu0 %429, %v156
  %v431 = vpop.permute.xlu0 %430
  %434 = vset.pattern.permute.xlu0 0
  %435 = vperm.xlu0 %434, %v157
  %v436 = vpop.permute.xlu0 %435
  %439 = vset.pattern.permute.xlu0 0
  %440 = vperm.xlu0 %439, %v158
  %v441 = vpop.permute.xlu0 %440
  %444 = vset.pattern.permute.xlu0 0
  %445 = vperm.xlu0 %444, %v159
  %v446 = vpop.permute.xlu0 %445
  %449 = vset.pattern.permute.xlu0 0
  %450 = vperm.xlu0 %449, %v160
  %v451 = vpop.permute.xlu0 %450
  %454 = vset.pattern.permute.xlu0 0
  %455 = vperm.xlu0 %454, %v161
  %v456 = vpop.permute.xlu0 %455
  %459 = vset.pattern.permute.xlu0 0
  %460 = vperm.xlu0 %459, %v162
  %v461 = vpop.permute.xlu0 %460
  %464 = vset.pattern.permute.xlu0 0
  %465 = vperm.xlu0 %464, %v163
  %v466 = vpop.permute.xlu0 %465
  %469 = vset.pattern.permute.xlu0 0
  %470 = vperm.xlu0 %469, %v164
  %v471 = vpop.permute.xlu0 %470
  %474 = vset.pattern.permute.xlu0 0
  %475 = vperm.xlu0 %474, %v165
  %v476 = vpop.permute.xlu0 %475
  %479 = vset.pattern.permute.xlu0 0
  %480 = vperm.xlu0 %479, %v166
  %v481 = vpop.permute.xlu0 %480
  %484 = vset.pattern.permute.xlu0 0
  %485 = vperm.xlu0 %484, %v167
  %v486 = vpop.permute.xlu0 %485
  %vm488 = vcmask 80896
  %v490 = vsel %vm488, %v32, 0
  %v493 = vsel %vm488, %v33, 0
  %v496 = vsel %vm488, %v34, 0
  %v499 = vsel %vm488, %v35, 0
  %v502 = vsel %vm488, %v36, 0
  %v505 = vsel %vm488, %v37, 0
  %v508 = vsel %vm488, %v38, 0
  %v511 = vsel %vm488, %v39, 0
  %v514 = vsel %vm488, %v40, 0
  %v517 = vsel %vm488, %v41, 0
  %v520 = vsel %vm488, %v42, 0
  %v523 = vsel %vm488, %v43, 0
  %v526 = vsel %vm488, %v44, 0
  %v529 = vsel %vm488, %v45, 0
  %v532 = vsel %vm488, %v46, 0
  %v535 = vsel %vm488, %v47, 0
  %v538 = vsel %vm488, %v48, 0
  %v541 = vsel %vm488, %v49, 0
  %v544 = vsel %vm488, %v50, 0
  %v547 = vsel %vm488, %v51, 0
  %v550 = vsel %vm488, %v52, 0
  %v553 = vsel %vm488, %v53, 0
  %v556 = vsel %vm488, %v54, 0
  %v559 = vsel %vm488, %v55, 0
  %v562 = vsel %vm488, %v56, 0
  %v565 = vsel %vm488, %v57, 0
  %v568 = vsel %vm488, %v58, 0
  %v571 = vsel %vm488, %v59, 0
  %v574 = vsel %vm488, %v60, 0
  %v577 = vsel %vm488, %v61, 0
  %v580 = vsel %vm488, %v62, 0
  %v583 = vsel %vm488, %v63, 0
  %v586 = vsel %vm488, %v64, 0
  %v589 = vsel %vm488, %v65, 0
  %v592 = vsel %vm488, %v66, 0
  %v595 = vsel %vm488, %v67, 0
  %v598 = vsel %vm488, %v68, 0
  %v601 = vsel %vm488, %v69, 0
  %v604 = vsel %vm488, %v70, 0
  %v607 = vsel %vm488, %v71, 0
  %v610 = vsel %vm488, %v72, 0
  %v613 = vsel %vm488, %v73, 0
  %v616 = vsel %vm488, %v74, 0
  %v619 = vsel %vm488, %v75, 0
  %v622 = vsel %vm488, %v76, 0
  %v625 = vsel %vm488, %v77, 0
  %v628 = vsel %vm488, %v78, 0
  %v631 = vsel %vm488, %v79, 0
  %v634 = vsel %vm488, %v80, 0
  %v637 = vsel %vm488, %v81, 0
  %v640 = vsel %vm488, %v82, 0
  %v643 = vsel %vm488, %v83, 0
  %v646 = vsel %vm488, %v84, 0
  %v649 = vsel %vm488, %v85, 0
  %v652 = vsel %vm488, %v86, 0
  %v655 = vsel %vm488, %v87, 0
  %v658 = vsel %vm488, %v88, 0
  %v661 = vsel %vm488, %v89, 0
  %v664 = vsel %vm488, %v90, 0
  %v667 = vsel %vm488, %v91, 0
  %v670 = vsel %vm488, %v92, 0
  %v673 = vsel %vm488, %v93, 0
  %v676 = vsel %vm488, %v94, 0
  %v679 = vsel %vm488, %v95, 0
  %vm681 = vcmask 1041408
  %v683 = vsel %vm681, %v100, 0
  %v686 = vsel %vm681, %v101, 0
  %v689 = vsel %vm681, %v102, 0
  %v692 = vsel %vm681, %v103, 0
  %694 = vmatprep.subr.mxu0 %v97
  %695 = vmatpush1.msra.mxu0 %v96
  %696 = vmatprep.subr.mxu0 %v686
  %697 = vmatpush1.msra.mxu0 %v683
  %698 = vmatprep.subr.mxu0 0.0
  %699 = vmatpush1.msra.mxu0 0.0
  %700 = vmatprep.subr.mxu0 0.0
  %701 = vmatpush1.msra.mxu0 0.0
  %702 = vmatprep.subr.mxu0 0.0
  %703 = vmatpush1.msra.mxu0 0.0
  %704 = vmatprep.subr.mxu0 0.0
  %705 = vmatpush1.msra.mxu0 0.0
  %706 = vmatprep.subr.mxu0 0.0
  %707 = vmatpush1.msra.mxu0 0.0
  %708 = vmatprep.subr.mxu0 0.0
  %709 = vmatpush1.msra.mxu0 0.0
  %710 = vmatprep.subr.mxu0 0.0
  %711 = vmatpush1.msra.mxu0 0.0
  %712 = vmatprep.subr.mxu0 0.0
  %713 = vmatpush1.msra.mxu0 0.0
  %714 = vmatprep.subr.mxu0 0.0
  %715 = vmatpush1.msra.mxu0 0.0
  %716 = vmatprep.subr.mxu0 0.0
  %717 = vmatpush1.msra.mxu0 0.0
  %718 = vmatprep.subr.mxu0 0.0
  %719 = vmatpush1.msra.mxu0 0.0
  %720 = vmatprep.subr.mxu0 0.0
  %721 = vmatpush1.msra.mxu0 0.0
  %722 = vmatprep.subr.mxu0 0.0
  %723 = vmatpush1.msra.mxu0 0.0
  %724 = vmatprep.subr.mxu0 0.0
  %725 = vmatpush1.msra.mxu0 0.0
  %726 = vmatprep.subr.mxu0 0.0
  %727 = vmatpush1.msra.mxu0 0.0
  %728 = vmatprep.subr.mxu0 0.0
  %729 = vmatpush1.msra.mxu0 0.0
  %730 = vmatprep.subr.mxu0 0.0
  %731 = vmatpush1.msra.mxu0 0.0
  %732 = vmatprep.subr.mxu0 0.0
  %733 = vmatpush1.msra.mxu0 0.0
  %734 = vmatprep.subr.mxu0 0.0
  %735 = vmatpush1.msra.mxu0 0.0
  %736 = vmatprep.subr.mxu0 0.0
  %737 = vmatpush1.msra.mxu0 0.0
  %738 = vmatprep.subr.mxu0 0.0
  %739 = vmatpush1.msra.mxu0 0.0
  %740 = vmatprep.subr.mxu0 0.0
  %741 = vmatpush1.msra.mxu0 0.0
  %742 = vmatprep.subr.mxu0 0.0
  %743 = vmatpush1.msra.mxu0 0.0
  %744 = vmatprep.subr.mxu0 0.0
  %745 = vmatpush1.msra.mxu0 0.0
  %746 = vmatprep.subr.mxu0 0.0
  %747 = vmatpush1.msra.mxu0 0.0
  %748 = vmatprep.subr.mxu0 0.0
  %749 = vmatpush1.msra.mxu0 0.0
  %750 = vmatprep.subr.mxu0 0.0
  %751 = vmatpush1.msra.mxu0 0.0
  %752 = vmatprep.subr.mxu0 0.0
  %753 = vmatpush1.msra.mxu0 0.0
  %754 = vmatprep.subr.mxu0 0.0
  %755 = vmatpush1.msra.mxu0 0.0
  %756 = vmatprep.subr.mxu0 0.0
  %757 = vmatpush1.msra.mxu0 0.0
  %758 = vmatprep.mubr.f32.mxu0 0.0
  %759 = vmatmul.mubr.f32.gmra.mrb[0].mxu0 %v490
  %v760 = vpop.f32.mrb[0].mxu0
  %v761 = vadd.f32 %v171, %v760
  %v762 = vpop.f32.mrb[0].mxu0
  %v763 = vadd.f32 %v171, %v762
  %764 = vmatprep.mubr.f32.mxu0 0.0
  %765 = vmatmul.mubr.f32.gmra.mrb[0].mxu0 %v493
  %v766 = vpop.f32.mrb[0].mxu0
  %v767 = vadd.f32 %v176, %v766
  %v768 = vpop.f32.mrb[0].mxu0
  %v769 = vadd.f32 %v176, %v768
  %770 = vmatprep.mubr.f32.mxu0 0.0
  %771 = vmatmul.mubr.f32.gmra.mrb[0].mxu0 %v496
  %v772 = vpop.f32.mrb[0].mxu0
  %v773 = vadd.f32 %v181, %v772
  %v774 = vpop.f32.mrb[0].mxu0
  %v775 = vadd.f32 %v181, %v774
  %776 = vmatprep.mubr.f32.mxu0 0.0
  %777 = vmatmul.mubr.f32.gmra.mrb[0].mxu0 %v499
  %v778 = vpop.f32.mrb[0].mxu0
  %v779 = vadd.f32 %v186, %v778
  %v780 = vpop.f32.mrb[0].mxu0
  %v781 = vadd.f32 %v186, %v780
  %782 = vmatprep.mubr.f32.mxu0 0.0
  %783 = vmatmul.mubr.f32.gmra.mrb[0].mxu0 %v502
  %v784 = vpop.f32.mrb[0].mxu0
  %v785 = vadd.f32 %v191, %v784
  %v786 = vpop.f32.mrb[0].mxu0
  %v787 = vadd.f32 %v191, %v786
  %788 = vmatprep.mubr.f32.mxu0 0.0
  %789 = vmatmul.mubr.f32.gmra.mrb[0].mxu0 %v505
  %v790 = vpop.f32.mrb[0].mxu0
  %v791 = vadd.f32 %v196, %v790
  %v792 = vpop.f32.mrb[0].mxu0
  %v793 = vadd.f32 %v196, %v792
  %794 = vmatprep.mubr.f32.mxu0 0.0
  %795 = vmatmul.mubr.f32.gmra.mrb[0].mxu0 %v508
  %v796 = vpop.f32.mrb[0].mxu0
  %v797 = vadd.f32 %v201, %v796
  %v798 = vpop.f32.mrb[0].mxu0
  %v799 = vadd.f32 %v201, %v798
  %800 = vmatprep.mubr.f32.mxu0 0.0
  %801 = vmatmul.mubr.f32.gmra.mrb[0].mxu0 %v511
  %v802 = vpop.f32.mrb[0].mxu0
  %v803 = vadd.f32 %v206, %v802
  %v804 = vpop.f32.mrb[0].mxu0
  %v805 = vadd.f32 %v206, %v804
  %806 = vmatprep.mubr.f32.mxu0 0.0
  %807 = vmatmul.mubr.f32.gmra.mrb[0].mxu0 %v514
  %v808 = vpop.f32.mrb[0].mxu0
  %v809 = vadd.f32 %v211, %v808
  %v810 = vpop.f32.mrb[0].mxu0
  %v811 = vadd.f32 %v211, %v810
  %812 = vmatprep.mubr.f32.mxu0 0.0
  %813 = vmatmul.mubr.f32.gmra.mrb[0].mxu0 %v517
  %v814 = vpop.f32.mrb[0].mxu0
  %v815 = vadd.f32 %v216, %v814
  %v816 = vpop.f32.mrb[0].mxu0
  %v817 = vadd.f32 %v216, %v816
  %818 = vmatprep.mubr.f32.mxu0 0.0
  %819 = vmatmul.mubr.f32.gmra.mrb[0].mxu0 %v520
  %v820 = vpop.f32.mrb[0].mxu0
  %v821 = vadd.f32 %v221, %v820
  %v822 = vpop.f32.mrb[0].mxu0
  %v823 = vadd.f32 %v221, %v822
  %824 = vmatprep.mubr.f32.mxu0 0.0
  %825 = vmatmul.mubr.f32.gmra.mrb[0].mxu0 %v523
  %v826 = vpop.f32.mrb[0].mxu0
  %v827 = vadd.f32 %v226, %v826
  %v828 = vpop.f32.mrb[0].mxu0
  %v829 = vadd.f32 %v226, %v828
  %830 = vmatprep.mubr.f32.mxu0 0.0
  %831 = vmatmul.mubr.f32.gmra.mrb[0].mxu0 %v526
  %v832 = vpop.f32.mrb[0].mxu0
  %v833 = vadd.f32 %v231, %v832
  %v834 = vpop.f32.mrb[0].mxu0
  %v835 = vadd.f32 %v231, %v834
  %836 = vmatprep.mubr.f32.mxu0 0.0
  %837 = vmatmul.mubr.f32.gmra.mrb[0].mxu0 %v529
  %v838 = vpop.f32.mrb[0].mxu0
  %v839 = vadd.f32 %v236, %v838
  %v840 = vpop.f32.mrb[0].mxu0
  %v841 = vadd.f32 %v236, %v840
  %842 = vmatprep.mubr.f32.mxu0 0.0
  %843 = vmatmul.mubr.f32.gmra.mrb[0].mxu0 %v532
  %v844 = vpop.f32.mrb[0].mxu0
  %v845 = vadd.f32 %v241, %v844
  %v846 = vpop.f32.mrb[0].mxu0
  %v847 = vadd.f32 %v241, %v846
  %848 = vmatprep.mubr.f32.mxu0 0.0
  %849 = vmatmul.mubr.f32.gmra.mrb[0].mxu0 %v535
  %v850 = vpop.f32.mrb[0].mxu0
  %v851 = vadd.f32 %v246, %v850
  %v852 = vpop.f32.mrb[0].mxu0
  %v853 = vadd.f32 %v246, %v852
  %854 = vmatprep.mubr.f32.mxu0 0.0
  %855 = vmatmul.mubr.f32.gmra.mrb[0].mxu0 %v538
  %v856 = vpop.f32.mrb[0].mxu0
  %v857 = vadd.f32 %v251, %v856
  %v858 = vpop.f32.mrb[0].mxu0
  %v859 = vadd.f32 %v251, %v858
  %860 = vmatprep.mubr.f32.mxu0 0.0
  %861 = vmatmul.mubr.f32.gmra.mrb[0].mxu0 %v541
  %v862 = vpop.f32.mrb[0].mxu0
  %v863 = vadd.f32 %v256, %v862
  %v864 = vpop.f32.mrb[0].mxu0
  %v865 = vadd.f32 %v256, %v864
  %866 = vmatprep.mubr.f32.mxu0 0.0
  %867 = vmatmul.mubr.f32.gmra.mrb[0].mxu0 %v544
  %v868 = vpop.f32.mrb[0].mxu0
  %v869 = vadd.f32 %v261, %v868
  %v870 = vpop.f32.mrb[0].mxu0
  %v871 = vadd.f32 %v261, %v870
  %872 = vmatprep.mubr.f32.mxu0 0.0
  %873 = vmatmul.mubr.f32.gmra.mrb[0].mxu0 %v547
  %v874 = vpop.f32.mrb[0].mxu0
  %v875 = vadd.f32 %v266, %v874
  %v876 = vpop.f32.mrb[0].mxu0
  %v877 = vadd.f32 %v266, %v876
  %878 = vmatprep.mubr.f32.mxu0 0.0
  %879 = vmatmul.mubr.f32.gmra.mrb[0].mxu0 %v550
  %v880 = vpop.f32.mrb[0].mxu0
  %v881 = vadd.f32 %v271, %v880
  %v882 = vpop.f32.mrb[0].mxu0
  %v883 = vadd.f32 %v271, %v882
  %884 = vmatprep.mubr.f32.mxu0 0.0
  %885 = vmatmul.mubr.f32.gmra.mrb[0].mxu0 %v553
  %v886 = vpop.f32.mrb[0].mxu0
  %v887 = vadd.f32 %v276, %v886
  %v888 = vpop.f32.mrb[0].mxu0
  %v889 = vadd.f32 %v276, %v888
  %890 = vmatprep.mubr.f32.mxu0 0.0
  %891 = vmatmul.mubr.f32.gmra.mrb[0].mxu0 %v556
  %v892 = vpop.f32.mrb[0].mxu0
  %v893 = vadd.f32 %v281, %v892
  %v894 = vpop.f32.mrb[0].mxu0
  %v895 = vadd.f32 %v281, %v894
  %896 = vmatprep.mubr.f32.mxu0 0.0
  %897 = vmatmul.mubr.f32.gmra.mrb[0].mxu0 %v559
  %v898 = vpop.f32.mrb[0].mxu0
  %v899 = vadd.f32 %v286, %v898
  %v900 = vpop.f32.mrb[0].mxu0
  %v901 = vadd.f32 %v286, %v900
  %902 = vmatprep.mubr.f32.mxu0 0.0
  %903 = vmatmul.mubr.f32.gmra.mrb[0].mxu0 %v562
  %v904 = vpop.f32.mrb[0].mxu0
  %v905 = vadd.f32 %v291, %v904
  %v906 = vpop.f32.mrb[0].mxu0
  %v907 = vadd.f32 %v291, %v906
  %908 = vmatprep.mubr.f32.mxu0 0.0
  %909 = vmatmul.mubr.f32.gmra.mrb[0].mxu0 %v565
  %v910 = vpop.f32.mrb[0].mxu0
  %v911 = vadd.f32 %v296, %v910
  %v912 = vpop.f32.mrb[0].mxu0
  %v913 = vadd.f32 %v296, %v912
  %914 = vmatprep.mubr.f32.mxu0 0.0
  %915 = vmatmul.mubr.f32.gmra.mrb[0].mxu0 %v568
  %v916 = vpop.f32.mrb[0].mxu0
  %v917 = vadd.f32 %v301, %v916
  %v918 = vpop.f32.mrb[0].mxu0
  %v919 = vadd.f32 %v301, %v918
  %920 = vmatprep.mubr.f32.mxu0 0.0
  %921 = vmatmul.mubr.f32.gmra.mrb[0].mxu0 %v571
  %v922 = vpop.f32.mrb[0].mxu0
  %v923 = vadd.f32 %v306, %v922
  %v924 = vpop.f32.mrb[0].mxu0
  %v925 = vadd.f32 %v306, %v924
  %926 = vmatprep.mubr.f32.mxu0 0.0
  %927 = vmatmul.mubr.f32.gmra.mrb[0].mxu0 %v574
  %v928 = vpop.f32.mrb[0].mxu0
  %v929 = vadd.f32 %v311, %v928
  %v930 = vpop.f32.mrb[0].mxu0
  %v931 = vadd.f32 %v311, %v930
  %932 = vmatprep.mubr.f32.mxu0 0.0
  %933 = vmatmul.mubr.f32.gmra.mrb[0].mxu0 %v577
  %v934 = vpop.f32.mrb[0].mxu0
  %v935 = vadd.f32 %v316, %v934
  %v936 = vpop.f32.mrb[0].mxu0
  %v937 = vadd.f32 %v316, %v936
  %938 = vmatprep.mubr.f32.mxu0 0.0
  %939 = vmatmul.mubr.f32.gmra.mrb[0].mxu0 %v580
  %v940 = vpop.f32.mrb[0].mxu0
  %v941 = vadd.f32 %v321, %v940
  %v942 = vpop.f32.mrb[0].mxu0
  %v943 = vadd.f32 %v321, %v942
  %944 = vmatprep.mubr.f32.mxu0 0.0
  %945 = vmatmul.mubr.f32.gmra.mrb[0].mxu0 %v583
  %v946 = vpop.f32.mrb[0].mxu0
  %v947 = vadd.f32 %v326, %v946
  %v948 = vpop.f32.mrb[0].mxu0
  %v949 = vadd.f32 %v326, %v948
  %950 = vmatprep.mubr.f32.mxu0 0.0
  %951 = vmatmul.mubr.f32.gmra.mrb[0].mxu0 %v586
  %v952 = vpop.f32.mrb[0].mxu0
  %v953 = vadd.f32 %v331, %v952
  %v954 = vpop.f32.mrb[0].mxu0
  %v955 = vadd.f32 %v331, %v954
  %956 = vmatprep.mubr.f32.mxu0 0.0
  %957 = vmatmul.mubr.f32.gmra.mrb[0].mxu0 %v589
  %v958 = vpop.f32.mrb[0].mxu0
  %v959 = vadd.f32 %v336, %v958
  %v960 = vpop.f32.mrb[0].mxu0
  %v961 = vadd.f32 %v336, %v960
  %962 = vmatprep.mubr.f32.mxu0 0.0
  %963 = vmatmul.mubr.f32.gmra.mrb[0].mxu0 %v592
  %v964 = vpop.f32.mrb[0].mxu0
  %v965 = vadd.f32 %v341, %v964
  %v966 = vpop.f32.mrb[0].mxu0
  %v967 = vadd.f32 %v341, %v966
  %968 = vmatprep.mubr.f32.mxu0 0.0
  %969 = vmatmul.mubr.f32.gmra.mrb[0].mxu0 %v595
  %v970 = vpop.f32.mrb[0].mxu0
  %v971 = vadd.f32 %v346, %v970
  %v972 = vpop.f32.mrb[0].mxu0
  %v973 = vadd.f32 %v346, %v972
  %974 = vmatprep.mubr.f32.mxu0 0.0
  %975 = vmatmul.mubr.f32.gmra.mrb[0].mxu0 %v598
  %v976 = vpop.f32.mrb[0].mxu0
  %v977 = vadd.f32 %v351, %v976
  %v978 = vpop.f32.mrb[0].mxu0
  %v979 = vadd.f32 %v351, %v978
  %980 = vmatprep.mubr.f32.mxu0 0.0
  %981 = vmatmul.mubr.f32.gmra.mrb[0].mxu0 %v601
  %v982 = vpop.f32.mrb[0].mxu0
  %v983 = vadd.f32 %v356, %v982
  %v984 = vpop.f32.mrb[0].mxu0
  %v985 = vadd.f32 %v356, %v984
  %986 = vmatprep.mubr.f32.mxu0 0.0
  %987 = vmatmul.mubr.f32.gmra.mrb[0].mxu0 %v604
  %v988 = vpop.f32.mrb[0].mxu0
  %v989 = vadd.f32 %v361, %v988
  %v990 = vpop.f32.mrb[0].mxu0
  %v991 = vadd.f32 %v361, %v990
  %992 = vmatprep.mubr.f32.mxu0 0.0
  %993 = vmatmul.mubr.f32.gmra.mrb[0].mxu0 %v607
  %v994 = vpop.f32.mrb[0].mxu0
  %v995 = vadd.f32 %v366, %v994
  %v996 = vpop.f32.mrb[0].mxu0
  %v997 = vadd.f32 %v366, %v996
  %998 = vmatprep.mubr.f32.mxu0 0.0
  %999 = vmatmul.mubr.f32.gmra.mrb[0].mxu0 %v610
  %v1000 = vpop.f32.mrb[0].mxu0
  %v1001 = vadd.f32 %v371, %v1000
  %v1002 = vpop.f32.mrb[0].mxu0
  %v1003 = vadd.f32 %v371, %v1002
  %1004 = vmatprep.mubr.f32.mxu0 0.0
  %1005 = vmatmul.mubr.f32.gmra.mrb[0].mxu0 %v613
  %v1006 = vpop.f32.mrb[0].mxu0
  %v1007 = vadd.f32 %v376, %v1006
  %v1008 = vpop.f32.mrb[0].mxu0
  %v1009 = vadd.f32 %v376, %v1008
  %1010 = vmatprep.mubr.f32.mxu0 0.0
  %1011 = vmatmul.mubr.f32.gmra.mrb[0].mxu0 %v616
  %v1012 = vpop.f32.mrb[0].mxu0
  %v1013 = vadd.f32 %v381, %v1012
  %v1014 = vpop.f32.mrb[0].mxu0
  %v1015 = vadd.f32 %v381, %v1014
  %1016 = vmatprep.mubr.f32.mxu0 0.0
  %1017 = vmatmul.mubr.f32.gmra.mrb[0].mxu0 %v619
  %v1018 = vpop.f32.mrb[0].mxu0
  %v1019 = vadd.f32 %v386, %v1018
  %v1020 = vpop.f32.mrb[0].mxu0
  %v1021 = vadd.f32 %v386, %v1020
  %1022 = vmatprep.mubr.f32.mxu0 0.0
  %1023 = vmatmul.mubr.f32.gmra.mrb[0].mxu0 %v622
  %v1024 = vpop.f32.mrb[0].mxu0
  %v1025 = vadd.f32 %v391, %v1024
  %v1026 = vpop.f32.mrb[0].mxu0
  %v1027 = vadd.f32 %v391, %v1026
  %1028 = vmatprep.mubr.f32.mxu0 0.0
  %1029 = vmatmul.mubr.f32.gmra.mrb[0].mxu0 %v625
  %v1030 = vpop.f32.mrb[0].mxu0
  %v1031 = vadd.f32 %v396, %v1030
  %v1032 = vpop.f32.mrb[0].mxu0
  %v1033 = vadd.f32 %v396, %v1032
  %1034 = vmatprep.mubr.f32.mxu0 0.0
  %1035 = vmatmul.mubr.f32.gmra.mrb[0].mxu0 %v628
  %v1036 = vpop.f32.mrb[0].mxu0
  %v1037 = vadd.f32 %v401, %v1036
  %v1038 = vpop.f32.mrb[0].mxu0
  %v1039 = vadd.f32 %v401, %v1038
  %1040 = vmatprep.mubr.f32.mxu0 0.0
  %1041 = vmatmul.mubr.f32.gmra.mrb[0].mxu0 %v631
  %v1042 = vpop.f32.mrb[0].mxu0
  %v1043 = vadd.f32 %v406, %v1042
  %v1044 = vpop.f32.mrb[0].mxu0
  %v1045 = vadd.f32 %v406, %v1044
  %1046 = vmatprep.mubr.f32.mxu0 0.0
  %1047 = vmatmul.mubr.f32.gmra.mrb[0].mxu0 %v634
  %v1048 = vpop.f32.mrb[0].mxu0
  %v1049 = vadd.f32 %v411, %v1048
  %v1050 = vpop.f32.mrb[0].mxu0
  %v1051 = vadd.f32 %v411, %v1050
  %1052 = vmatprep.mubr.f32.mxu0 0.0
  %1053 = vmatmul.mubr.f32.gmra.mrb[0].mxu0 %v637
  %v1054 = vpop.f32.mrb[0].mxu0
  %v1055 = vadd.f32 %v416, %v1054
  %v1056 = vpop.f32.mrb[0].mxu0
  %v1057 = vadd.f32 %v416, %v1056
  %1058 = vmatprep.mubr.f32.mxu0 0.0
  %1059 = vmatmul.mubr.f32.gmra.mrb[0].mxu0 %v640
  %v1060 = vpop.f32.mrb[0].mxu0
  %v1061 = vadd.f32 %v421, %v1060
  %v1062 = vpop.f32.mrb[0].mxu0
  %v1063 = vadd.f32 %v421, %v1062
  %1064 = vmatprep.mubr.f32.mxu0 0.0
  %1065 = vmatmul.mubr.f32.gmra.mrb[0].mxu0 %v643
  %v1066 = vpop.f32.mrb[0].mxu0
  %v1067 = vadd.f32 %v426, %v1066
  %v1068 = vpop.f32.mrb[0].mxu0
  %v1069 = vadd.f32 %v426, %v1068
  %1070 = vmatprep.mubr.f32.mxu0 0.0
  %1071 = vmatmul.mubr.f32.gmra.mrb[0].mxu0 %v646
  %v1072 = vpop.f32.mrb[0].mxu0
  %v1073 = vadd.f32 %v431, %v1072
  %v1074 = vpop.f32.mrb[0].mxu0
  %v1075 = vadd.f32 %v431, %v1074
  %1076 = vmatprep.mubr.f32.mxu0 0.0
  %1077 = vmatmul.mubr.f32.gmra.mrb[0].mxu0 %v649
  %v1078 = vpop.f32.mrb[0].mxu0
  %v1079 = vadd.f32 %v436, %v1078
  %v1080 = vpop.f32.mrb[0].mxu0
  %v1081 = vadd.f32 %v436, %v1080
  %1082 = vmatprep.mubr.f32.mxu0 0.0
  %1083 = vmatmul.mubr.f32.gmra.mrb[0].mxu0 %v652
  %v1084 = vpop.f32.mrb[0].mxu0
  %v1085 = vadd.f32 %v441, %v1084
  %v1086 = vpop.f32.mrb[0].mxu0
  %v1087 = vadd.f32 %v441, %v1086
  %1088 = vmatprep.mubr.f32.mxu0 0.0
  %1089 = vmatmul.mubr.f32.gmra.mrb[0].mxu0 %v655
  %v1090 = vpop.f32.mrb[0].mxu0
  %v1091 = vadd.f32 %v446, %v1090
  %v1092 = vpop.f32.mrb[0].mxu0
  %v1093 = vadd.f32 %v446, %v1092
  %1094 = vmatprep.mubr.f32.mxu0 0.0
  %1095 = vmatmul.mubr.f32.gmra.mrb[0].mxu0 %v658
  %v1096 = vpop.f32.mrb[0].mxu0
  %v1097 = vadd.f32 %v451, %v1096
  %v1098 = vpop.f32.mrb[0].mxu0
  %v1099 = vadd.f32 %v451, %v1098
  %1100 = vmatprep.mubr.f32.mxu0 0.0
  %1101 = vmatmul.mubr.f32.gmra.mrb[0].mxu0 %v661
  %v1102 = vpop.f32.mrb[0].mxu0
  %v1103 = vadd.f32 %v456, %v1102
  %v1104 = vpop.f32.mrb[0].mxu0
  %v1105 = vadd.f32 %v456, %v1104
  %1106 = vmatprep.mubr.f32.mxu0 0.0
  %1107 = vmatmul.mubr.f32.gmra.mrb[0].mxu0 %v664
  %v1108 = vpop.f32.mrb[0].mxu0
  %v1109 = vadd.f32 %v461, %v1108
  %v1110 = vpop.f32.mrb[0].mxu0
  %v1111 = vadd.f32 %v461, %v1110
  %1112 = vmatprep.mubr.f32.mxu0 0.0
  %1113 = vmatmul.mubr.f32.gmra.mrb[0].mxu0 %v667
  %v1114 = vpop.f32.mrb[0].mxu0
  %v1115 = vadd.f32 %v466, %v1114
  %v1116 = vpop.f32.mrb[0].mxu0
  %v1117 = vadd.f32 %v466, %v1116
  %1118 = vmatprep.mubr.f32.mxu0 0.0
  %1119 = vmatmul.mubr.f32.gmra.mrb[0].mxu0 %v670
  %v1120 = vpop.f32.mrb[0].mxu0
  %v1121 = vadd.f32 %v471, %v1120
  %v1122 = vpop.f32.mrb[0].mxu0
  %v1123 = vadd.f32 %v471, %v1122
  %1124 = vmatprep.mubr.f32.mxu0 0.0
  %1125 = vmatmul.mubr.f32.gmra.mrb[0].mxu0 %v673
  %v1126 = vpop.f32.mrb[0].mxu0
  %v1127 = vadd.f32 %v476, %v1126
  %v1128 = vpop.f32.mrb[0].mxu0
  %v1129 = vadd.f32 %v476, %v1128
  %1130 = vmatprep.mubr.f32.mxu0 0.0
  %1131 = vmatmul.mubr.f32.gmra.mrb[0].mxu0 %v676
  %v1132 = vpop.f32.mrb[0].mxu0
  %v1133 = vadd.f32 %v481, %v1132
  %v1134 = vpop.f32.mrb[0].mxu0
  %v1135 = vadd.f32 %v481, %v1134
  %1136 = vmatprep.mubr.f32.mxu0 0.0
  %1137 = vmatmul.mubr.f32.gmra.mrb[0].mxu0 %v679
  %v1138 = vpop.f32.mrb[0].mxu0
  %v1139 = vadd.f32 %v486, %v1138
  %v1140 = vpop.f32.mrb[0].mxu0
  %v1141 = vadd.f32 %v486, %v1140
  %1142 = vdwg.mxu0
  %1143 = vmatprep.subr.mxu0 %v99
  %1144 = vmatpush1.msra.mxu0 %v98
  %1145 = vmatprep.subr.mxu0 %v692
  %1146 = vmatpush1.msra.mxu0 %v689
  %1147 = vmatprep.subr.mxu0 0.0
  %1148 = vmatpush1.msra.mxu0 0.0
  %1149 = vmatprep.subr.mxu0 0.0
  %1150 = vmatpush1.msra.mxu0 0.0
  %1151 = vmatprep.subr.mxu0 0.0
  %1152 = vmatpush1.msra.mxu0 0.0
  %1153 = vmatprep.subr.mxu0 0.0
  %1154 = vmatpush1.msra.mxu0 0.0
  %1155 = vmatprep.subr.mxu0 0.0
  %1156 = vmatpush1.msra.mxu0 0.0
  %1157 = vmatprep.subr.mxu0 0.0
  %1158 = vmatpush1.msra.mxu0 0.0
  %1159 = vmatprep.subr.mxu0 0.0
  %1160 = vmatpush1.msra.mxu0 0.0
  %1161 = vmatprep.subr.mxu0 0.0
  %1162 = vmatpush1.msra.mxu0 0.0
  %1163 = vmatprep.subr.mxu0 0.0
  %1164 = vmatpush1.msra.mxu0 0.0
  %1165 = vmatprep.subr.mxu0 0.0
  %1166 = vmatpush1.msra.mxu0 0.0
  %1167 = vmatprep.subr.mxu0 0.0
  %1168 = vmatpush1.msra.mxu0 0.0
  %1169 = vmatprep.subr.mxu0 0.0
  %1170 = vmatpush1.msra.mxu0 0.0
  %1171 = vmatprep.subr.mxu0 0.0
  %1172 = vmatpush1.msra.mxu0 0.0
  %1173 = vmatprep.subr.mxu0 0.0
  %1174 = vmatpush1.msra.mxu0 0.0
  %1175 = vmatprep.subr.mxu0 0.0
  %1176 = vmatpush1.msra.mxu0 0.0
  %1177 = vmatprep.subr.mxu0 0.0
  %1178 = vmatpush1.msra.mxu0 0.0
  %1179 = vmatprep.subr.mxu0 0.0
  %1180 = vmatpush1.msra.mxu0 0.0
  %1181 = vmatprep.subr.mxu0 0.0
  %1182 = vmatpush1.msra.mxu0 0.0
  %1183 = vmatprep.subr.mxu0 0.0
  %1184 = vmatpush1.msra.mxu0 0.0
  %1185 = vmatprep.subr.mxu0 0.0
  %1186 = vmatpush1.msra.mxu0 0.0
  %1187 = vmatprep.subr.mxu0 0.0
  %1188 = vmatpush1.msra.mxu0 0.0
  %1189 = vmatprep.subr.mxu0 0.0
  %1190 = vmatpush1.msra.mxu0 0.0
  %1191 = vmatprep.subr.mxu0 0.0
  %1192 = vmatpush1.msra.mxu0 0.0
  %1193 = vmatprep.subr.mxu0 0.0
  %1194 = vmatpush1.msra.mxu0 0.0
  %1195 = vmatprep.subr.mxu0 0.0
  %1196 = vmatpush1.msra.mxu0 0.0
  %1197 = vmatprep.subr.mxu0 0.0
  %1198 = vmatpush1.msra.mxu0 0.0
  %1199 = vmatprep.subr.mxu0 0.0
  %1200 = vmatpush1.msra.mxu0 0.0
  %1201 = vmatprep.subr.mxu0 0.0
  %1202 = vmatpush1.msra.mxu0 0.0
  %1203 = vmatprep.subr.mxu0 0.0
  %1204 = vmatpush1.msra.mxu0 0.0
  %1205 = vmatprep.subr.mxu0 0.0
  %1206 = vmatpush1.msra.mxu0 0.0
  %1207 = vmatprep.mubr.f32.mxu0 0.0
  %1208 = vmatmul.mubr.f32.gmra.mrb[0].mxu0 %v490
  %v1209 = vpop.f32.mrb[0].mxu0
  %v1210 = vadd.f32 %v171, %v1209
  %v1211 = vpop.f32.mrb[0].mxu0
  %v1212 = vadd.f32 %v171, %v1211
  %1213 = vmatprep.mubr.f32.mxu0 0.0
  %1214 = vmatmul.mubr.f32.gmra.mrb[0].mxu0 %v493
  %v1215 = vpop.f32.mrb[0].mxu0
  %v1216 = vadd.f32 %v176, %v1215
  %v1217 = vpop.f32.mrb[0].mxu0
  %v1218 = vadd.f32 %v176, %v1217
  %1219 = vmatprep.mubr.f32.mxu0 0.0
  %1220 = vmatmul.mubr.f32.gmra.mrb[0].mxu0 %v496
  %v1221 = vpop.f32.mrb[0].mxu0
  %v1222 = vadd.f32 %v181, %v1221
  %v1223 = vpop.f32.mrb[0].mxu0
  %v1224 = vadd.f32 %v181, %v1223
  %1225 = vmatprep.mubr.f32.mxu0 0.0
  %1226 = vmatmul.mubr.f32.gmra.mrb[0].mxu0 %v499
  %v1227 = vpop.f32.mrb[0].mxu0
  %v1228 = vadd.f32 %v186, %v1227
  %v1229 = vpop.f32.mrb[0].mxu0
  %v1230 = vadd.f32 %v186, %v1229
  %1231 = vmatprep.mubr.f32.mxu0 0.0
  %1232 = vmatmul.mubr.f32.gmra.mrb[0].mxu0 %v502
  %v1233 = vpop.f32.mrb[0].mxu0
  %v1234 = vadd.f32 %v191, %v1233
  %v1235 = vpop.f32.mrb[0].mxu0
  %v1236 = vadd.f32 %v191, %v1235
  %1237 = vmatprep.mubr.f32.mxu0 0.0
  %1238 = vmatmul.mubr.f32.gmra.mrb[0].mxu0 %v505
  %v1239 = vpop.f32.mrb[0].mxu0
  %v1240 = vadd.f32 %v196, %v1239
  %v1241 = vpop.f32.mrb[0].mxu0
  %v1242 = vadd.f32 %v196, %v1241
  %1243 = vmatprep.mubr.f32.mxu0 0.0
  %1244 = vmatmul.mubr.f32.gmra.mrb[0].mxu0 %v508
  %v1245 = vpop.f32.mrb[0].mxu0
  %v1246 = vadd.f32 %v201, %v1245
  %v1247 = vpop.f32.mrb[0].mxu0
  %v1248 = vadd.f32 %v201, %v1247
  %1249 = vmatprep.mubr.f32.mxu0 0.0
  %1250 = vmatmul.mubr.f32.gmra.mrb[0].mxu0 %v511
  %v1251 = vpop.f32.mrb[0].mxu0
  %v1252 = vadd.f32 %v206, %v1251
  %v1253 = vpop.f32.mrb[0].mxu0
  %v1254 = vadd.f32 %v206, %v1253
  %1255 = vmatprep.mubr.f32.mxu0 0.0
  %1256 = vmatmul.mubr.f32.gmra.mrb[0].mxu0 %v514
  %v1257 = vpop.f32.mrb[0].mxu0
  %v1258 = vadd.f32 %v211, %v1257
  %v1259 = vpop.f32.mrb[0].mxu0
  %v1260 = vadd.f32 %v211, %v1259
  %1261 = vmatprep.mubr.f32.mxu0 0.0
  %1262 = vmatmul.mubr.f32.gmra.mrb[0].mxu0 %v517
  %v1263 = vpop.f32.mrb[0].mxu0
  %v1264 = vadd.f32 %v216, %v1263
  %v1265 = vpop.f32.mrb[0].mxu0
  %v1266 = vadd.f32 %v216, %v1265
  %1267 = vmatprep.mubr.f32.mxu0 0.0
  %1268 = vmatmul.mubr.f32.gmra.mrb[0].mxu0 %v520
  %v1269 = vpop.f32.mrb[0].mxu0
  %v1270 = vadd.f32 %v221, %v1269
  %v1271 = vpop.f32.mrb[0].mxu0
  %v1272 = vadd.f32 %v221, %v1271
  %1273 = vmatprep.mubr.f32.mxu0 0.0
  %1274 = vmatmul.mubr.f32.gmra.mrb[0].mxu0 %v523
  %v1275 = vpop.f32.mrb[0].mxu0
  %v1276 = vadd.f32 %v226, %v1275
  %v1277 = vpop.f32.mrb[0].mxu0
  %v1278 = vadd.f32 %v226, %v1277
  %1279 = vmatprep.mubr.f32.mxu0 0.0
  %1280 = vmatmul.mubr.f32.gmra.mrb[0].mxu0 %v526
  %v1281 = vpop.f32.mrb[0].mxu0
  %v1282 = vadd.f32 %v231, %v1281
  %v1283 = vpop.f32.mrb[0].mxu0
  %v1284 = vadd.f32 %v231, %v1283
  %1285 = vmatprep.mubr.f32.mxu0 0.0
  %1286 = vmatmul.mubr.f32.gmra.mrb[0].mxu0 %v529
  %v1287 = vpop.f32.mrb[0].mxu0
  %v1288 = vadd.f32 %v236, %v1287
  %v1289 = vpop.f32.mrb[0].mxu0
  %v1290 = vadd.f32 %v236, %v1289
  %1291 = vmatprep.mubr.f32.mxu0 0.0
  %1292 = vmatmul.mubr.f32.gmra.mrb[0].mxu0 %v532
  %v1293 = vpop.f32.mrb[0].mxu0
  %v1294 = vadd.f32 %v241, %v1293
  %v1295 = vpop.f32.mrb[0].mxu0
  %v1296 = vadd.f32 %v241, %v1295
  %1297 = vmatprep.mubr.f32.mxu0 0.0
  %1298 = vmatmul.mubr.f32.gmra.mrb[0].mxu0 %v535
  %v1299 = vpop.f32.mrb[0].mxu0
  %v1300 = vadd.f32 %v246, %v1299
  %v1301 = vpop.f32.mrb[0].mxu0
  %v1302 = vadd.f32 %v246, %v1301
  %1303 = vmatprep.mubr.f32.mxu0 0.0
  %1304 = vmatmul.mubr.f32.gmra.mrb[0].mxu0 %v538
  %v1305 = vpop.f32.mrb[0].mxu0
  %v1306 = vadd.f32 %v251, %v1305
  %v1307 = vpop.f32.mrb[0].mxu0
  %v1308 = vadd.f32 %v251, %v1307
  %1309 = vmatprep.mubr.f32.mxu0 0.0
  %1310 = vmatmul.mubr.f32.gmra.mrb[0].mxu0 %v541
  %v1311 = vpop.f32.mrb[0].mxu0
  %v1312 = vadd.f32 %v256, %v1311
  %v1313 = vpop.f32.mrb[0].mxu0
  %v1314 = vadd.f32 %v256, %v1313
  %1315 = vmatprep.mubr.f32.mxu0 0.0
  %1316 = vmatmul.mubr.f32.gmra.mrb[0].mxu0 %v544
  %v1317 = vpop.f32.mrb[0].mxu0
  %v1318 = vadd.f32 %v261, %v1317
  %v1319 = vpop.f32.mrb[0].mxu0
  %v1320 = vadd.f32 %v261, %v1319
  %1321 = vmatprep.mubr.f32.mxu0 0.0
  %1322 = vmatmul.mubr.f32.gmra.mrb[0].mxu0 %v547
  %v1323 = vpop.f32.mrb[0].mxu0
  %v1324 = vadd.f32 %v266, %v1323
  %v1325 = vpop.f32.mrb[0].mxu0
  %v1326 = vadd.f32 %v266, %v1325
  %1327 = vmatprep.mubr.f32.mxu0 0.0
  %1328 = vmatmul.mubr.f32.gmra.mrb[0].mxu0 %v550
  %v1329 = vpop.f32.mrb[0].mxu0
  %v1330 = vadd.f32 %v271, %v1329
  %v1331 = vpop.f32.mrb[0].mxu0
  %v1332 = vadd.f32 %v271, %v1331
  %1333 = vmatprep.mubr.f32.mxu0 0.0
  %1334 = vmatmul.mubr.f32.gmra.mrb[0].mxu0 %v553
  %v1335 = vpop.f32.mrb[0].mxu0
  %v1336 = vadd.f32 %v276, %v1335
  %v1337 = vpop.f32.mrb[0].mxu0
  %v1338 = vadd.f32 %v276, %v1337
  %1339 = vmatprep.mubr.f32.mxu0 0.0
  %1340 = vmatmul.mubr.f32.gmra.mrb[0].mxu0 %v556
  %v1341 = vpop.f32.mrb[0].mxu0
  %v1342 = vadd.f32 %v281, %v1341
  %v1343 = vpop.f32.mrb[0].mxu0
  %v1344 = vadd.f32 %v281, %v1343
  %1345 = vmatprep.mubr.f32.mxu0 0.0
  %1346 = vmatmul.mubr.f32.gmra.mrb[0].mxu0 %v559
  %v1347 = vpop.f32.mrb[0].mxu0
  %v1348 = vadd.f32 %v286, %v1347
  %v1349 = vpop.f32.mrb[0].mxu0
  %v1350 = vadd.f32 %v286, %v1349
  %1351 = vmatprep.mubr.f32.mxu0 0.0
  %1352 = vmatmul.mubr.f32.gmra.mrb[0].mxu0 %v562
  %v1353 = vpop.f32.mrb[0].mxu0
  %v1354 = vadd.f32 %v291, %v1353
  %v1355 = vpop.f32.mrb[0].mxu0
  %v1356 = vadd.f32 %v291, %v1355
  %1357 = vmatprep.mubr.f32.mxu0 0.0
  %1358 = vmatmul.mubr.f32.gmra.mrb[0].mxu0 %v565
  %v1359 = vpop.f32.mrb[0].mxu0
  %v1360 = vadd.f32 %v296, %v1359
  %v1361 = vpop.f32.mrb[0].mxu0
  %v1362 = vadd.f32 %v296, %v1361
  %1363 = vmatprep.mubr.f32.mxu0 0.0
  %1364 = vmatmul.mubr.f32.gmra.mrb[0].mxu0 %v568
  %v1365 = vpop.f32.mrb[0].mxu0
  %v1366 = vadd.f32 %v301, %v1365
  %v1367 = vpop.f32.mrb[0].mxu0
  %v1368 = vadd.f32 %v301, %v1367
  %1369 = vmatprep.mubr.f32.mxu0 0.0
  %1370 = vmatmul.mubr.f32.gmra.mrb[0].mxu0 %v571
  %v1371 = vpop.f32.mrb[0].mxu0
  %v1372 = vadd.f32 %v306, %v1371
  %v1373 = vpop.f32.mrb[0].mxu0
  %v1374 = vadd.f32 %v306, %v1373
  %1375 = vmatprep.mubr.f32.mxu0 0.0
  %1376 = vmatmul.mubr.f32.gmra.mrb[0].mxu0 %v574
  %v1377 = vpop.f32.mrb[0].mxu0
  %v1378 = vadd.f32 %v311, %v1377
  %v1379 = vpop.f32.mrb[0].mxu0
  %v1380 = vadd.f32 %v311, %v1379
  %1381 = vmatprep.mubr.f32.mxu0 0.0
  %1382 = vmatmul.mubr.f32.gmra.mrb[0].mxu0 %v577
  %v1383 = vpop.f32.mrb[0].mxu0
  %v1384 = vadd.f32 %v316, %v1383
  %v1385 = vpop.f32.mrb[0].mxu0
  %v1386 = vadd.f32 %v316, %v1385
  %1387 = vmatprep.mubr.f32.mxu0 0.0
  %1388 = vmatmul.mubr.f32.gmra.mrb[0].mxu0 %v580
  %v1389 = vpop.f32.mrb[0].mxu0
  %v1390 = vadd.f32 %v321, %v1389
  %v1391 = vpop.f32.mrb[0].mxu0
  %v1392 = vadd.f32 %v321, %v1391
  %1393 = vmatprep.mubr.f32.mxu0 0.0
  %1394 = vmatmul.mubr.f32.gmra.mrb[0].mxu0 %v583
  %v1395 = vpop.f32.mrb[0].mxu0
  %v1396 = vadd.f32 %v326, %v1395
  %v1397 = vpop.f32.mrb[0].mxu0
  %v1398 = vadd.f32 %v326, %v1397
  %1399 = vmatprep.mubr.f32.mxu0 0.0
  %1400 = vmatmul.mubr.f32.gmra.mrb[0].mxu0 %v586
  %v1401 = vpop.f32.mrb[0].mxu0
  %v1402 = vadd.f32 %v331, %v1401
  %v1403 = vpop.f32.mrb[0].mxu0
  %v1404 = vadd.f32 %v331, %v1403
  %1405 = vmatprep.mubr.f32.mxu0 0.0
  %1406 = vmatmul.mubr.f32.gmra.mrb[0].mxu0 %v589
  %v1407 = vpop.f32.mrb[0].mxu0
  %v1408 = vadd.f32 %v336, %v1407
  %v1409 = vpop.f32.mrb[0].mxu0
  %v1410 = vadd.f32 %v336, %v1409
  %1411 = vmatprep.mubr.f32.mxu0 0.0
  %1412 = vmatmul.mubr.f32.gmra.mrb[0].mxu0 %v592
  %v1413 = vpop.f32.mrb[0].mxu0
  %v1414 = vadd.f32 %v341, %v1413
  %v1415 = vpop.f32.mrb[0].mxu0
  %v1416 = vadd.f32 %v341, %v1415
  %1417 = vmatprep.mubr.f32.mxu0 0.0
  %1418 = vmatmul.mubr.f32.gmra.mrb[0].mxu0 %v595
  %v1419 = vpop.f32.mrb[0].mxu0
  %v1420 = vadd.f32 %v346, %v1419
  %v1421 = vpop.f32.mrb[0].mxu0
  %v1422 = vadd.f32 %v346, %v1421
  %1423 = vmatprep.mubr.f32.mxu0 0.0
  %1424 = vmatmul.mubr.f32.gmra.mrb[0].mxu0 %v598
  %v1425 = vpop.f32.mrb[0].mxu0
  %v1426 = vadd.f32 %v351, %v1425
  %v1427 = vpop.f32.mrb[0].mxu0
  %v1428 = vadd.f32 %v351, %v1427
  %1429 = vmatprep.mubr.f32.mxu0 0.0
  %1430 = vmatmul.mubr.f32.gmra.mrb[0].mxu0 %v601
  %v1431 = vpop.f32.mrb[0].mxu0
  %v1432 = vadd.f32 %v356, %v1431
  %v1433 = vpop.f32.mrb[0].mxu0
  %v1434 = vadd.f32 %v356, %v1433
  %1435 = vmatprep.mubr.f32.mxu0 0.0
  %1436 = vmatmul.mubr.f32.gmra.mrb[0].mxu0 %v604
  %v1437 = vpop.f32.mrb[0].mxu0
  %v1438 = vadd.f32 %v361, %v1437
  %v1439 = vpop.f32.mrb[0].mxu0
  %v1440 = vadd.f32 %v361, %v1439
  %1441 = vmatprep.mubr.f32.mxu0 0.0
  %1442 = vmatmul.mubr.f32.gmra.mrb[0].mxu0 %v607
  %v1443 = vpop.f32.mrb[0].mxu0
  %v1444 = vadd.f32 %v366, %v1443
  %v1445 = vpop.f32.mrb[0].mxu0
  %v1446 = vadd.f32 %v366, %v1445
  %1447 = vmatprep.mubr.f32.mxu0 0.0
  %1448 = vmatmul.mubr.f32.gmra.mrb[0].mxu0 %v610
  %v1449 = vpop.f32.mrb[0].mxu0
  %v1450 = vadd.f32 %v371, %v1449
  %v1451 = vpop.f32.mrb[0].mxu0
  %v1452 = vadd.f32 %v371, %v1451
  %1453 = vmatprep.mubr.f32.mxu0 0.0
  %1454 = vmatmul.mubr.f32.gmra.mrb[0].mxu0 %v613
  %v1455 = vpop.f32.mrb[0].mxu0
  %v1456 = vadd.f32 %v376, %v1455
  %v1457 = vpop.f32.mrb[0].mxu0
  %v1458 = vadd.f32 %v376, %v1457
  %1459 = vmatprep.mubr.f32.mxu0 0.0
  %1460 = vmatmul.mubr.f32.gmra.mrb[0].mxu0 %v616
  %v1461 = vpop.f32.mrb[0].mxu0
  %v1462 = vadd.f32 %v381, %v1461
  %v1463 = vpop.f32.mrb[0].mxu0
  %v1464 = vadd.f32 %v381, %v1463
  %1465 = vmatprep.mubr.f32.mxu0 0.0
  %1466 = vmatmul.mubr.f32.gmra.mrb[0].mxu0 %v619
  %v1467 = vpop.f32.mrb[0].mxu0
  %v1468 = vadd.f32 %v386, %v1467
  %v1469 = vpop.f32.mrb[0].mxu0
  %v1470 = vadd.f32 %v386, %v1469
  %1471 = vmatprep.mubr.f32.mxu0 0.0
  %1472 = vmatmul.mubr.f32.gmra.mrb[0].mxu0 %v622
  %v1473 = vpop.f32.mrb[0].mxu0
  %v1474 = vadd.f32 %v391, %v1473
  %v1475 = vpop.f32.mrb[0].mxu0
  %v1476 = vadd.f32 %v391, %v1475
  %1477 = vmatprep.mubr.f32.mxu0 0.0
  %1478 = vmatmul.mubr.f32.gmra.mrb[0].mxu0 %v625
  %v1479 = vpop.f32.mrb[0].mxu0
  %v1480 = vadd.f32 %v396, %v1479
  %v1481 = vpop.f32.mrb[0].mxu0
  %v1482 = vadd.f32 %v396, %v1481
  %1483 = vmatprep.mubr.f32.mxu0 0.0
  %1484 = vmatmul.mubr.f32.gmra.mrb[0].mxu0 %v628
  %v1485 = vpop.f32.mrb[0].mxu0
  %v1486 = vadd.f32 %v401, %v1485
  %v1487 = vpop.f32.mrb[0].mxu0
  %v1488 = vadd.f32 %v401, %v1487
  %1489 = vmatprep.mubr.f32.mxu0 0.0
  %1490 = vmatmul.mubr.f32.gmra.mrb[0].mxu0 %v631
  %v1491 = vpop.f32.mrb[0].mxu0
  %v1492 = vadd.f32 %v406, %v1491
  %v1493 = vpop.f32.mrb[0].mxu0
  %v1494 = vadd.f32 %v406, %v1493
  %1495 = vmatprep.mubr.f32.mxu0 0.0
  %1496 = vmatmul.mubr.f32.gmra.mrb[0].mxu0 %v634
  %v1497 = vpop.f32.mrb[0].mxu0
  %v1498 = vadd.f32 %v411, %v1497
  %v1499 = vpop.f32.mrb[0].mxu0
  %v1500 = vadd.f32 %v411, %v1499
  %1501 = vmatprep.mubr.f32.mxu0 0.0
  %1502 = vmatmul.mubr.f32.gmra.mrb[0].mxu0 %v637
  %v1503 = vpop.f32.mrb[0].mxu0
  %v1504 = vadd.f32 %v416, %v1503
  %v1505 = vpop.f32.mrb[0].mxu0
  %v1506 = vadd.f32 %v416, %v1505
  %1507 = vmatprep.mubr.f32.mxu0 0.0
  %1508 = vmatmul.mubr.f32.gmra.mrb[0].mxu0 %v640
  %v1509 = vpop.f32.mrb[0].mxu0
  %v1510 = vadd.f32 %v421, %v1509
  %v1511 = vpop.f32.mrb[0].mxu0
  %v1512 = vadd.f32 %v421, %v1511
  %1513 = vmatprep.mubr.f32.mxu0 0.0
  %1514 = vmatmul.mubr.f32.gmra.mrb[0].mxu0 %v643
  %v1515 = vpop.f32.mrb[0].mxu0
  %v1516 = vadd.f32 %v426, %v1515
  %v1517 = vpop.f32.mrb[0].mxu0
  %v1518 = vadd.f32 %v426, %v1517
  %1519 = vmatprep.mubr.f32.mxu0 0.0
  %1520 = vmatmul.mubr.f32.gmra.mrb[0].mxu0 %v646
  %v1521 = vpop.f32.mrb[0].mxu0
  %v1522 = vadd.f32 %v431, %v1521
  %v1523 = vpop.f32.mrb[0].mxu0
  %v1524 = vadd.f32 %v431, %v1523
  %1525 = vmatprep.mubr.f32.mxu0 0.0
  %1526 = vmatmul.mubr.f32.gmra.mrb[0].mxu0 %v649
  %v1527 = vpop.f32.mrb[0].mxu0
  %v1528 = vadd.f32 %v436, %v1527
  %v1529 = vpop.f32.mrb[0].mxu0
  %v1530 = vadd.f32 %v436, %v1529
  %1531 = vmatprep.mubr.f32.mxu0 0.0
  %1532 = vmatmul.mubr.f32.gmra.mrb[0].mxu0 %v652
  %v1533 = vpop.f32.mrb[0].mxu0
  %v1534 = vadd.f32 %v441, %v1533
  %v1535 = vpop.f32.mrb[0].mxu0
  %v1536 = vadd.f32 %v441, %v1535
  %1537 = vmatprep.mubr.f32.mxu0 0.0
  %1538 = vmatmul.mubr.f32.gmra.mrb[0].mxu0 %v655
  %v1539 = vpop.f32.mrb[0].mxu0
  %v1540 = vadd.f32 %v446, %v1539
  %v1541 = vpop.f32.mrb[0].mxu0
  %v1542 = vadd.f32 %v446, %v1541
  %1543 = vmatprep.mubr.f32.mxu0 0.0
  %1544 = vmatmul.mubr.f32.gmra.mrb[0].mxu0 %v658
  %v1545 = vpop.f32.mrb[0].mxu0
  %v1546 = vadd.f32 %v451, %v1545
  %v1547 = vpop.f32.mrb[0].mxu0
  %v1548 = vadd.f32 %v451, %v1547
  %1549 = vmatprep.mubr.f32.mxu0 0.0
  %1550 = vmatmul.mubr.f32.gmra.mrb[0].mxu0 %v661
  %v1551 = vpop.f32.mrb[0].mxu0
  %v1552 = vadd.f32 %v456, %v1551
  %v1553 = vpop.f32.mrb[0].mxu0
  %v1554 = vadd.f32 %v456, %v1553
  %1555 = vmatprep.mubr.f32.mxu0 0.0
  %1556 = vmatmul.mubr.f32.gmra.mrb[0].mxu0 %v664
  %v1557 = vpop.f32.mrb[0].mxu0
  %v1558 = vadd.f32 %v461, %v1557
  %v1559 = vpop.f32.mrb[0].mxu0
  %v1560 = vadd.f32 %v461, %v1559
  %1561 = vmatprep.mubr.f32.mxu0 0.0
  %1562 = vmatmul.mubr.f32.gmra.mrb[0].mxu0 %v667
  %v1563 = vpop.f32.mrb[0].mxu0
  %v1564 = vadd.f32 %v466, %v1563
  %v1565 = vpop.f32.mrb[0].mxu0
  %v1566 = vadd.f32 %v466, %v1565
  %1567 = vmatprep.mubr.f32.mxu0 0.0
  %1568 = vmatmul.mubr.f32.gmra.mrb[0].mxu0 %v670
  %v1569 = vpop.f32.mrb[0].mxu0
  %v1570 = vadd.f32 %v471, %v1569
  %v1571 = vpop.f32.mrb[0].mxu0
  %v1572 = vadd.f32 %v471, %v1571
  %1573 = vmatprep.mubr.f32.mxu0 0.0
  %1574 = vmatmul.mubr.f32.gmra.mrb[0].mxu0 %v673
  %v1575 = vpop.f32.mrb[0].mxu0
  %v1576 = vadd.f32 %v476, %v1575
  %v1577 = vpop.f32.mrb[0].mxu0
  %v1578 = vadd.f32 %v476, %v1577
  %1579 = vmatprep.mubr.f32.mxu0 0.0
  %1580 = vmatmul.mubr.f32.gmra.mrb[0].mxu0 %v676
  %v1581 = vpop.f32.mrb[0].mxu0
  %v1582 = vadd.f32 %v481, %v1581
  %v1583 = vpop.f32.mrb[0].mxu0
  %v1584 = vadd.f32 %v481, %v1583
  %1585 = vmatprep.mubr.f32.mxu0 0.0
  %1586 = vmatmul.mubr.f32.gmra.mrb[0].mxu0 %v679
  %v1587 = vpop.f32.mrb[0].mxu0
  %v1588 = vadd.f32 %v486, %v1587
  %v1589 = vpop.f32.mrb[0].mxu0
  %v1590 = vadd.f32 %v486, %v1589
  %1591 = vdwg.mxu0
  %v1592 = vmax.f32 %v761, 0.0
  %v1593 = vmax.f32 %v763, 0.0
  %v1594 = vmax.f32 %v1210, 0.0
  %v1595 = vmax.f32 %v1212, 0.0
  %v1596 = vmax.f32 %v767, 0.0
  %v1597 = vmax.f32 %v769, 0.0
  %v1598 = vmax.f32 %v1216, 0.0
  %v1599 = vmax.f32 %v1218, 0.0
  %v1600 = vmax.f32 %v773, 0.0
  %v1601 = vmax.f32 %v775, 0.0
  %v1602 = vmax.f32 %v1222, 0.0
  %v1603 = vmax.f32 %v1224, 0.0
  %v1604 = vmax.f32 %v779, 0.0
  %v1605 = vmax.f32 %v781, 0.0
  %v1606 = vmax.f32 %v1228, 0.0
  %v1607 = vmax.f32 %v1230, 0.0
  %v1608 = vmax.f32 %v785, 0.0
  %v1609 = vmax.f32 %v787, 0.0
  %v1610 = vmax.f32 %v1234, 0.0
  %v1611 = vmax.f32 %v1236, 0.0
  %v1612 = vmax.f32 %v791, 0.0
  %v1613 = vmax.f32 %v793, 0.0
  %v1614 = vmax.f32 %v1240, 0.0
  %v1615 = vmax.f32 %v1242, 0.0
  %v1616 = vmax.f32 %v797, 0.0
  %v1617 = vmax.f32 %v799, 0.0
  %v1618 = vmax.f32 %v1246, 0.0
  %v1619 = vmax.f32 %v1248, 0.0
  %v1620 = vmax.f32 %v803, 0.0
  %v1621 = vmax.f32 %v805, 0.0
  %v1622 = vmax.f32 %v1252, 0.0
  %v1623 = vmax.f32 %v1254, 0.0
  %v1624 = vmax.f32 %v809, 0.0
  %v1625 = vmax.f32 %v811, 0.0
  %v1626 = vmax.f32 %v1258, 0.0
  %v1627 = vmax.f32 %v1260, 0.0
  %v1628 = vmax.f32 %v815, 0.0
  %v1629 = vmax.f32 %v817, 0.0
  %v1630 = vmax.f32 %v1264, 0.0
  %v1631 = vmax.f32 %v1266, 0.0
  %v1632 = vmax.f32 %v821, 0.0
  %v1633 = vmax.f32 %v823, 0.0
  %v1634 = vmax.f32 %v1270, 0.0
  %v1635 = vmax.f32 %v1272, 0.0
  %v1636 = vmax.f32 %v827, 0.0
  %v1637 = vmax.f32 %v829, 0.0
  %v1638 = vmax.f32 %v1276, 0.0
  %v1639 = vmax.f32 %v1278, 0.0
  %v1640 = vmax.f32 %v833, 0.0
  %v1641 = vmax.f32 %v835, 0.0
  %v1642 = vmax.f32 %v1282, 0.0
  %v1643 = vmax.f32 %v1284, 0.0
  %v1644 = vmax.f32 %v839, 0.0
  %v1645 = vmax.f32 %v841, 0.0
  %v1646 = vmax.f32 %v1288, 0.0
  %v1647 = vmax.f32 %v1290, 0.0
  %v1648 = vmax.f32 %v845, 0.0
  %v1649 = vmax.f32 %v847, 0.0
  %v1650 = vmax.f32 %v1294, 0.0
  %v1651 = vmax.f32 %v1296, 0.0
  %v1652 = vmax.f32 %v851, 0.0
  %v1653 = vmax.f32 %v853, 0.0
  %v1654 = vmax.f32 %v1300, 0.0
  %v1655 = vmax.f32 %v1302, 0.0
  %v1656 = vmax.f32 %v857, 0.0
  %v1657 = vmax.f32 %v859, 0.0
  %v1658 = vmax.f32 %v1306, 0.0
  %v1659 = vmax.f32 %v1308, 0.0
  %v1660 = vmax.f32 %v863, 0.0
  %v1661 = vmax.f32 %v865, 0.0
  %v1662 = vmax.f32 %v1312, 0.0
  %v1663 = vmax.f32 %v1314, 0.0
  %v1664 = vmax.f32 %v869, 0.0
  %v1665 = vmax.f32 %v871, 0.0
  %v1666 = vmax.f32 %v1318, 0.0
  %v1667 = vmax.f32 %v1320, 0.0
  %v1668 = vmax.f32 %v875, 0.0
  %v1669 = vmax.f32 %v877, 0.0
  %v1670 = vmax.f32 %v1324, 0.0
  %v1671 = vmax.f32 %v1326, 0.0
  %v1672 = vmax.f32 %v881, 0.0
  %v1673 = vmax.f32 %v883, 0.0
  %v1674 = vmax.f32 %v1330, 0.0
  %v1675 = vmax.f32 %v1332, 0.0
  %v1676 = vmax.f32 %v887, 0.0
  %v1677 = vmax.f32 %v889, 0.0
  %v1678 = vmax.f32 %v1336, 0.0
  %v1679 = vmax.f32 %v1338, 0.0
  %v1680 = vmax.f32 %v893, 0.0
  %v1681 = vmax.f32 %v895, 0.0
  %v1682 = vmax.f32 %v1342, 0.0
  %v1683 = vmax.f32 %v1344, 0.0
  %v1684 = vmax.f32 %v899, 0.0
  %v1685 = vmax.f32 %v901, 0.0
  %v1686 = vmax.f32 %v1348, 0.0
  %v1687 = vmax.f32 %v1350, 0.0
  %v1688 = vmax.f32 %v905, 0.0
  %v1689 = vmax.f32 %v907, 0.0
  %v1690 = vmax.f32 %v1354, 0.0
  %v1691 = vmax.f32 %v1356, 0.0
  %v1692 = vmax.f32 %v911, 0.0
  %v1693 = vmax.f32 %v913, 0.0
  %v1694 = vmax.f32 %v1360, 0.0
  %v1695 = vmax.f32 %v1362, 0.0
  %v1696 = vmax.f32 %v917, 0.0
  %v1697 = vmax.f32 %v919, 0.0
  %v1698 = vmax.f32 %v1366, 0.0
  %v1699 = vmax.f32 %v1368, 0.0
  %v1700 = vmax.f32 %v923, 0.0
  %v1701 = vmax.f32 %v925, 0.0
  %v1702 = vmax.f32 %v1372, 0.0
  %v1703 = vmax.f32 %v1374, 0.0
  %v1704 = vmax.f32 %v929, 0.0
  %v1705 = vmax.f32 %v931, 0.0
  %v1706 = vmax.f32 %v1378, 0.0
  %v1707 = vmax.f32 %v1380, 0.0
  %v1708 = vmax.f32 %v935, 0.0
  %v1709 = vmax.f32 %v937, 0.0
  %v1710 = vmax.f32 %v1384, 0.0
  %v1711 = vmax.f32 %v1386, 0.0
  %v1712 = vmax.f32 %v941, 0.0
  %v1713 = vmax.f32 %v943, 0.0
  %v1714 = vmax.f32 %v1390, 0.0
  %v1715 = vmax.f32 %v1392, 0.0
  %v1716 = vmax.f32 %v947, 0.0
  %v1717 = vmax.f32 %v949, 0.0
  %v1718 = vmax.f32 %v1396, 0.0
  %v1719 = vmax.f32 %v1398, 0.0
  %v1720 = vmax.f32 %v953, 0.0
  %v1721 = vmax.f32 %v955, 0.0
  %v1722 = vmax.f32 %v1402, 0.0
  %v1723 = vmax.f32 %v1404, 0.0
  %v1724 = vmax.f32 %v959, 0.0
  %v1725 = vmax.f32 %v961, 0.0
  %v1726 = vmax.f32 %v1408, 0.0
  %v1727 = vmax.f32 %v1410, 0.0
  %v1728 = vmax.f32 %v965, 0.0
  %v1729 = vmax.f32 %v967, 0.0
  %v1730 = vmax.f32 %v1414, 0.0
  %v1731 = vmax.f32 %v1416, 0.0
  %v1732 = vmax.f32 %v971, 0.0
  %v1733 = vmax.f32 %v973, 0.0
  %v1734 = vmax.f32 %v1420, 0.0
  %v1735 = vmax.f32 %v1422, 0.0
  %v1736 = vmax.f32 %v977, 0.0
  %v1737 = vmax.f32 %v979, 0.0
  %v1738 = vmax.f32 %v1426, 0.0
  %v1739 = vmax.f32 %v1428, 0.0
  %v1740 = vmax.f32 %v983, 0.0
  %v1741 = vmax.f32 %v985, 0.0
  %v1742 = vmax.f32 %v1432, 0.0
  %v1743 = vmax.f32 %v1434, 0.0
  %v1744 = vmax.f32 %v989, 0.0
  %v1745 = vmax.f32 %v991, 0.0
  %v1746 = vmax.f32 %v1438, 0.0
  %v1747 = vmax.f32 %v1440, 0.0
  %v1748 = vmax.f32 %v995, 0.0
  %v1749 = vmax.f32 %v997, 0.0
  %v1750 = vmax.f32 %v1444, 0.0
  %v1751 = vmax.f32 %v1446, 0.0
  %v1752 = vmax.f32 %v1001, 0.0
  %v1753 = vmax.f32 %v1003, 0.0
  %v1754 = vmax.f32 %v1450, 0.0
  %v1755 = vmax.f32 %v1452, 0.0
  %v1756 = vmax.f32 %v1007, 0.0
  %v1757 = vmax.f32 %v1009, 0.0
  %v1758 = vmax.f32 %v1456, 0.0
  %v1759 = vmax.f32 %v1458, 0.0
  %v1760 = vmax.f32 %v1013, 0.0
  %v1761 = vmax.f32 %v1015, 0.0
  %v1762 = vmax.f32 %v1462, 0.0
  %v1763 = vmax.f32 %v1464, 0.0
  %v1764 = vmax.f32 %v1019, 0.0
  %v1765 = vmax.f32 %v1021, 0.0
  %v1766 = vmax.f32 %v1468, 0.0
  %v1767 = vmax.f32 %v1470, 0.0
  %v1768 = vmax.f32 %v1025, 0.0
  %v1769 = vmax.f32 %v1027, 0.0
  %v1770 = vmax.f32 %v1474, 0.0
  %v1771 = vmax.f32 %v1476, 0.0
  %v1772 = vmax.f32 %v1031, 0.0
  %v1773 = vmax.f32 %v1033, 0.0
  %v1774 = vmax.f32 %v1480, 0.0
  %v1775 = vmax.f32 %v1482, 0.0
  %v1776 = vmax.f32 %v1037, 0.0
  %v1777 = vmax.f32 %v1039, 0.0
  %v1778 = vmax.f32 %v1486, 0.0
  %v1779 = vmax.f32 %v1488, 0.0
  %v1780 = vmax.f32 %v1043, 0.0
  %v1781 = vmax.f32 %v1045, 0.0
  %v1782 = vmax.f32 %v1492, 0.0
  %v1783 = vmax.f32 %v1494, 0.0
  %v1784 = vmax.f32 %v1049, 0.0
  %v1785 = vmax.f32 %v1051, 0.0
  %v1786 = vmax.f32 %v1498, 0.0
  %v1787 = vmax.f32 %v1500, 0.0
  %v1788 = vmax.f32 %v1055, 0.0
  %v1789 = vmax.f32 %v1057, 0.0
  %v1790 = vmax.f32 %v1504, 0.0
  %v1791 = vmax.f32 %v1506, 0.0
  %v1792 = vmax.f32 %v1061, 0.0
  %v1793 = vmax.f32 %v1063, 0.0
  %v1794 = vmax.f32 %v1510, 0.0
  %v1795 = vmax.f32 %v1512, 0.0
  %v1796 = vmax.f32 %v1067, 0.0
  %v1797 = vmax.f32 %v1069, 0.0
  %v1798 = vmax.f32 %v1516, 0.0
  %v1799 = vmax.f32 %v1518, 0.0
  %v1800 = vmax.f32 %v1073, 0.0
  %v1801 = vmax.f32 %v1075, 0.0
  %v1802 = vmax.f32 %v1522, 0.0
  %v1803 = vmax.f32 %v1524, 0.0
  %v1804 = vmax.f32 %v1079, 0.0
  %v1805 = vmax.f32 %v1081, 0.0
  %v1806 = vmax.f32 %v1528, 0.0
  %v1807 = vmax.f32 %v1530, 0.0
  %v1808 = vmax.f32 %v1085, 0.0
  %v1809 = vmax.f32 %v1087, 0.0
  %v1810 = vmax.f32 %v1534, 0.0
  %v1811 = vmax.f32 %v1536, 0.0
  %v1812 = vmax.f32 %v1091, 0.0
  %v1813 = vmax.f32 %v1093, 0.0
  %v1814 = vmax.f32 %v1540, 0.0
  %v1815 = vmax.f32 %v1542, 0.0
  %v1816 = vmax.f32 %v1097, 0.0
  %v1817 = vmax.f32 %v1099, 0.0
  %v1818 = vmax.f32 %v1546, 0.0
  %v1819 = vmax.f32 %v1548, 0.0
  %v1820 = vmax.f32 %v1103, 0.0
  %v1821 = vmax.f32 %v1105, 0.0
  %v1822 = vmax.f32 %v1552, 0.0
  %v1823 = vmax.f32 %v1554, 0.0
  %v1824 = vmax.f32 %v1109, 0.0
  %v1825 = vmax.f32 %v1111, 0.0
  %v1826 = vmax.f32 %v1558, 0.0
  %v1827 = vmax.f32 %v1560, 0.0
  %v1828 = vmax.f32 %v1115, 0.0
  %v1829 = vmax.f32 %v1117, 0.0
  %v1830 = vmax.f32 %v1564, 0.0
  %v1831 = vmax.f32 %v1566, 0.0
  %v1832 = vmax.f32 %v1121, 0.0
  %v1833 = vmax.f32 %v1123, 0.0
  %v1834 = vmax.f32 %v1570, 0.0
  %v1835 = vmax.f32 %v1572, 0.0
  %v1836 = vmax.f32 %v1127, 0.0
  %v1837 = vmax.f32 %v1129, 0.0
  %v1838 = vmax.f32 %v1576, 0.0
  %v1839 = vmax.f32 %v1578, 0.0
  %v1840 = vmax.f32 %v1133, 0.0
  %v1841 = vmax.f32 %v1135, 0.0
  %v1842 = vmax.f32 %v1582, 0.0
  %v1843 = vmax.f32 %v1584, 0.0
  %v1844 = vmax.f32 %v1139, 0.0
  %v1845 = vmax.f32 %v1141, 0.0
  %v1846 = vmax.f32 %v1588, 0.0
  %v1847 = vmax.f32 %v1590, 0.0
  %v1848 = vld [vmem:[%s3] sm:$0xff]
  %v1849 = vld [vmem:[%s3 + $0x8] sm:$0xff]
  %v1850 = vld [vmem:[%s3 + $0x10] sm:$0xff]
  %v1851 = vld [vmem:[%s3 + $0x18] sm:$0xff]
  %v1852 = vld [vmem:[%s3 + $0x20] sm:$0xff]
  %v1853 = vld [vmem:[%s3 + $0x28] sm:$0xff]
  %v1854 = vld [vmem:[%s3 + $0x30] sm:$0xff]
  %v1855 = vld [vmem:[%s3 + $0x38] sm:$0xff]
  %v1856 = vld [vmem:[%s3 + $0x40] sm:$0xff]
  %v1857 = vld [vmem:[%s3 + $0x48] sm:$0xff]
  %v1858 = vld [vmem:[%s3 + $0x50] sm:$0xff]
  %v1859 = vld [vmem:[%s3 + $0x58] sm:$0xff]
  %v1860 = vld [vmem:[%s3 + $0x60] sm:$0xff]
  %v1861 = vld [vmem:[%s3 + $0x68] sm:$0xff]
  %v1862 = vld [vmem:[%s3 + $0x70] sm:$0xff]
  %v1863 = vld [vmem:[%s3 + $0x78] sm:$0xff]
  %v1864 = vld [vmem:[%s3 + $0x80] sm:$0xff]
  %v1865 = vld [vmem:[%s3 + $0x88] sm:$0xff]
  %v1866 = vld [vmem:[%s3 + $0x90] sm:$0xff]
  %v1867 = vld [vmem:[%s3 + $0x98] sm:$0xff]
  %v1868 = vld [vmem:[%s3 + $0xa0] sm:$0xff]
  %v1869 = vld [vmem:[%s3 + $0xa8] sm:$0xff]
  %v1870 = vld [vmem:[%s3 + $0xb0] sm:$0xff]
  %v1871 = vld [vmem:[%s3 + $0xb8] sm:$0xff]
  %v1872 = vld [vmem:[%s3 + $0xc0] sm:$0xff]
  %v1873 = vld [vmem:[%s3 + $0xc8] sm:$0xff]
  %v1874 = vld [vmem:[%s3 + $0xd0] sm:$0xff]
  %v1875 = vld [vmem:[%s3 + $0xd8] sm:$0xff]
  %v1876 = vld [vmem:[%s3 + $0xe0] sm:$0xff]
  %v1877 = vld [vmem:[%s3 + $0xe8] sm:$0xff]
  %v1878 = vld [vmem:[%s3 + $0xf0] sm:$0xff]
  %v1879 = vld [vmem:[%s3 + $0xf8] sm:$0xff]
  %v1880 = vld [vmem:[%s3 + $0x100] sm:$0xff]
  %v1881 = vld [vmem:[%s3 + $0x108] sm:$0xff]
  %v1882 = vld [vmem:[%s3 + $0x110] sm:$0xff]
  %v1883 = vld [vmem:[%s3 + $0x118] sm:$0xff]
  %v1884 = vld [vmem:[%s3 + $0x120] sm:$0xff]
  %v1885 = vld [vmem:[%s3 + $0x128] sm:$0xff]
  %v1886 = vld [vmem:[%s3 + $0x130] sm:$0xff]
  %v1887 = vld [vmem:[%s3 + $0x138] sm:$0xff]
  %v1888 = vld [vmem:[%s3 + $0x140] sm:$0xff]
  %v1889 = vld [vmem:[%s3 + $0x148] sm:$0xff]
  %v1890 = vld [vmem:[%s3 + $0x150] sm:$0xff]
  %v1891 = vld [vmem:[%s3 + $0x158] sm:$0xff]
  %v1892 = vld [vmem:[%s3 + $0x160] sm:$0xff]
  %v1893 = vld [vmem:[%s3 + $0x168] sm:$0xff]
  %v1894 = vld [vmem:[%s3 + $0x170] sm:$0xff]
  %v1895 = vld [vmem:[%s3 + $0x178] sm:$0xff]
  %v1896 = vld [vmem:[%s3 + $0x180] sm:$0xff]
  %v1897 = vld [vmem:[%s3 + $0x188] sm:$0xff]
  %v1898 = vld [vmem:[%s3 + $0x190] sm:$0xff]
  %v1899 = vld [vmem:[%s3 + $0x198] sm:$0xff]
  %v1900 = vld [vmem:[%s3 + $0x1a0] sm:$0xff]
  %v1901 = vld [vmem:[%s3 + $0x1a8] sm:$0xff]
  %v1902 = vld [vmem:[%s3 + $0x1b0] sm:$0xff]
  %v1903 = vld [vmem:[%s3 + $0x1b8] sm:$0xff]
  %v1904 = vld [vmem:[%s3 + $0x1c0] sm:$0xff]
  %v1905 = vld [vmem:[%s3 + $0x1c8] sm:$0xff]
  %v1906 = vld [vmem:[%s3 + $0x1d0] sm:$0xff]
  %v1907 = vld [vmem:[%s3 + $0x1d8] sm:$0xff]
  %v1908 = vld [vmem:[%s3 + $0x1e0] sm:$0xff]
  %v1909 = vld [vmem:[%s3 + $0x1e8] sm:$0xff]
  %v1910 = vld [vmem:[%s3 + $0x1f0] sm:$0xff]
  %v1911 = vld [vmem:[%s3 + $0x1f8] sm:$0xff]
  %v1912 = vld [vmem:[%s4] sm:$0xff]
  %v1913 = vld [vmem:[%s4 + $0x8] sm:$0xff]
  %v1914 = vld [vmem:[%s4 + $0x10] sm:$0xff]
  %v1915 = vld [vmem:[%s4 + $0x18] sm:$0xff]
  %v1916 = vld [vmem:[%s4 + $0x20] sm:$0xff]
  %v1917 = vld [vmem:[%s4 + $0x28] sm:$0xff]
  %v1918 = vld [vmem:[%s4 + $0x30] sm:$0xff]
  %v1919 = vld [vmem:[%s4 + $0x38] sm:$0xff]
  %v1920 = vld [vmem:[%s4 + $0x40] sm:$0xff]
  %v1921 = vld [vmem:[%s4 + $0x48] sm:$0xff]
  %v1922 = vld [vmem:[%s4 + $0x50] sm:$0xff]
  %v1923 = vld [vmem:[%s4 + $0x58] sm:$0xff]
  %v1924 = vld [vmem:[%s4 + $0x60] sm:$0xff]
  %v1925 = vld [vmem:[%s4 + $0x68] sm:$0xff]
  %v1926 = vld [vmem:[%s4 + $0x70] sm:$0xff]
  %v1927 = vld [vmem:[%s4 + $0x78] sm:$0xff]
  %1929 = vset.pattern.permute.xlu0 0
  %1930 = vperm.xlu0 %1929, %v1912
  %v1931 = vpop.permute.xlu0 %1930
  %1934 = vset.pattern.permute.xlu0 0
  %1935 = vperm.xlu0 %1934, %v1913
  %v1936 = vpop.permute.xlu0 %1935
  %1939 = vset.pattern.permute.xlu0 0
  %1940 = vperm.xlu0 %1939, %v1914
  %v1941 = vpop.permute.xlu0 %1940
  %1944 = vset.pattern.permute.xlu0 0
  %1945 = vperm.xlu0 %1944, %v1915
  %v1946 = vpop.permute.xlu0 %1945
  %1949 = vset.pattern.permute.xlu0 0
  %1950 = vperm.xlu0 %1949, %v1916
  %v1951 = vpop.permute.xlu0 %1950
  %1954 = vset.pattern.permute.xlu0 0
  %1955 = vperm.xlu0 %1954, %v1917
  %v1956 = vpop.permute.xlu0 %1955
  %1959 = vset.pattern.permute.xlu0 0
  %1960 = vperm.xlu0 %1959, %v1918
  %v1961 = vpop.permute.xlu0 %1960
  %1964 = vset.pattern.permute.xlu0 0
  %1965 = vperm.xlu0 %1964, %v1919
  %v1966 = vpop.permute.xlu0 %1965
  %1969 = vset.pattern.permute.xlu0 0
  %1970 = vperm.xlu0 %1969, %v1920
  %v1971 = vpop.permute.xlu0 %1970
  %1974 = vset.pattern.permute.xlu0 0
  %1975 = vperm.xlu0 %1974, %v1921
  %v1976 = vpop.permute.xlu0 %1975
  %1979 = vset.pattern.permute.xlu0 0
  %1980 = vperm.xlu0 %1979, %v1922
  %v1981 = vpop.permute.xlu0 %1980
  %1984 = vset.pattern.permute.xlu0 0
  %1985 = vperm.xlu0 %1984, %v1923
  %v1986 = vpop.permute.xlu0 %1985
  %1989 = vset.pattern.permute.xlu0 0
  %1990 = vperm.xlu0 %1989, %v1924
  %v1991 = vpop.permute.xlu0 %1990
  %1994 = vset.pattern.permute.xlu0 0
  %1995 = vperm.xlu0 %1994, %v1925
  %v1996 = vpop.permute.xlu0 %1995
  %1999 = vset.pattern.permute.xlu0 0
  %2000 = vperm.xlu0 %1999, %v1926
  %v2001 = vpop.permute.xlu0 %2000
  %2004 = vset.pattern.permute.xlu0 0
  %2005 = vperm.xlu0 %2004, %v1927
  %v2006 = vpop.permute.xlu0 %2005
  %2008 = vmatprep.subr.mxu0 %v1593
  %2009 = vmatpush1.msra.mxu0 %v1592
  %2010 = vmatprep.subr.mxu0 %v1597
  %2011 = vmatpush1.msra.mxu0 %v1596
  %2012 = vmatprep.subr.mxu0 %v1601
  %2013 = vmatpush1.msra.mxu0 %v1600
  %2014 = vmatprep.subr.mxu0 %v1605
  %2015 = vmatpush1.msra.mxu0 %v1604
  %2016 = vmatprep.subr.mxu0 %v1609
  %2017 = vmatpush1.msra.mxu0 %v1608
  %2018 = vmatprep.subr.mxu0 %v1613
  %2019 = vmatpush1.msra.mxu0 %v1612
  %2020 = vmatprep.subr.mxu0 %v1617
  %2021 = vmatpush1.msra.mxu0 %v1616
  %2022 = vmatprep.subr.mxu0 %v1621
  %2023 = vmatpush1.msra.mxu0 %v1620
  %2024 = vmatprep.subr.mxu0 %v1625
  %2025 = vmatpush1.msra.mxu0 %v1624
  %2026 = vmatprep.subr.mxu0 %v1629
  %2027 = vmatpush1.msra.mxu0 %v1628
  %2028 = vmatprep.subr.mxu0 %v1633
  %2029 = vmatpush1.msra.mxu0 %v1632
  %2030 = vmatprep.subr.mxu0 %v1637
  %2031 = vmatpush1.msra.mxu0 %v1636
  %2032 = vmatprep.subr.mxu0 %v1641
  %2033 = vmatpush1.msra.mxu0 %v1640
  %2034 = vmatprep.subr.mxu0 %v1645
  %2035 = vmatpush1.msra.mxu0 %v1644
  %2036 = vmatprep.subr.mxu0 %v1649
  %2037 = vmatpush1.msra.mxu0 %v1648
  %2038 = vmatprep.subr.mxu0 %v1653
  %2039 = vmatpush1.msra.mxu0 %v1652
  %2040 = vmatprep.subr.mxu0 %v1657
  %2041 = vmatpush1.msra.mxu0 %v1656
  %2042 = vmatprep.subr.mxu0 %v1661
  %2043 = vmatpush1.msra.mxu0 %v1660
  %2044 = vmatprep.subr.mxu0 %v1665
  %2045 = vmatpush1.msra.mxu0 %v1664
  %2046 = vmatprep.subr.mxu0 %v1669
  %2047 = vmatpush1.msra.mxu0 %v1668
  %2048 = vmatprep.subr.mxu0 %v1673
  %2049 = vmatpush1.msra.mxu0 %v1672
  %2050 = vmatprep.subr.mxu0 %v1677
  %2051 = vmatpush1.msra.mxu0 %v1676
  %2052 = vmatprep.subr.mxu0 %v1681
  %2053 = vmatpush1.msra.mxu0 %v1680
  %2054 = vmatprep.subr.mxu0 %v1685
  %2055 = vmatpush1.msra.mxu0 %v1684
  %2056 = vmatprep.subr.mxu0 %v1689
  %2057 = vmatpush1.msra.mxu0 %v1688
  %2058 = vmatprep.subr.mxu0 %v1693
  %2059 = vmatpush1.msra.mxu0 %v1692
  %2060 = vmatprep.subr.mxu0 %v1697
  %2061 = vmatpush1.msra.mxu0 %v1696
  %2062 = vmatprep.subr.mxu0 %v1701
  %2063 = vmatpush1.msra.mxu0 %v1700
  %2064 = vmatprep.subr.mxu0 %v1705
  %2065 = vmatpush1.msra.mxu0 %v1704
  %2066 = vmatprep.subr.mxu0 %v1709
  %2067 = vmatpush1.msra.mxu0 %v1708
  %2068 = vmatprep.subr.mxu0 %v1713
  %2069 = vmatpush1.msra.mxu0 %v1712
  %2070 = vmatprep.subr.mxu0 %v1717
  %2071 = vmatpush1.msra.mxu0 %v1716
  %2072 = vmatprep.mubr.f32.mxu0 %v1849
  %2073 = vmatmul.mubr.f32.gmra.mrb[0].mxu0 %v1848
  %v2074 = vpop.f32.mrb[0].mxu0
  %v2075 = vadd.f32 %v1931, %v2074
  %v2076 = vpop.f32.mrb[0].mxu0
  %v2077 = vadd.f32 %v1931, %v2076
  %2078 = vmatprep.mubr.f32.mxu0 %v1853
  %2079 = vmatmul.mubr.f32.gmra.mrb[0].mxu0 %v1852
  %v2080 = vpop.f32.mrb[0].mxu0
  %v2081 = vadd.f32 %v1936, %v2080
  %v2082 = vpop.f32.mrb[0].mxu0
  %v2083 = vadd.f32 %v1936, %v2082
  %2084 = vmatprep.mubr.f32.mxu0 %v1857
  %2085 = vmatmul.mubr.f32.gmra.mrb[0].mxu0 %v1856
  %v2086 = vpop.f32.mrb[0].mxu0
  %v2087 = vadd.f32 %v1941, %v2086
  %v2088 = vpop.f32.mrb[0].mxu0
  %v2089 = vadd.f32 %v1941, %v2088
  %2090 = vmatprep.mubr.f32.mxu0 %v1861
  %2091 = vmatmul.mubr.f32.gmra.mrb[0].mxu0 %v1860
  %v2092 = vpop.f32.mrb[0].mxu0
  %v2093 = vadd.f32 %v1946, %v2092
  %v2094 = vpop.f32.mrb[0].mxu0
  %v2095 = vadd.f32 %v1946, %v2094
  %2096 = vmatprep.mubr.f32.mxu0 %v1865
  %2097 = vmatmul.mubr.f32.gmra.mrb[0].mxu0 %v1864
  %v2098 = vpop.f32.mrb[0].mxu0
  %v2099 = vadd.f32 %v1951, %v2098
  %v2100 = vpop.f32.mrb[0].mxu0
  %v2101 = vadd.f32 %v1951, %v2100
  %2102 = vmatprep.mubr.f32.mxu0 %v1869
  %2103 = vmatmul.mubr.f32.gmra.mrb[0].mxu0 %v1868
  %v2104 = vpop.f32.mrb[0].mxu0
  %v2105 = vadd.f32 %v1956, %v2104
  %v2106 = vpop.f32.mrb[0].mxu0
  %v2107 = vadd.f32 %v1956, %v2106
  %2108 = vmatprep.mubr.f32.mxu0 %v1873
  %2109 = vmatmul.mubr.f32.gmra.mrb[0].mxu0 %v1872
  %v2110 = vpop.f32.mrb[0].mxu0
  %v2111 = vadd.f32 %v1961, %v2110
  %v2112 = vpop.f32.mrb[0].mxu0
  %v2113 = vadd.f32 %v1961, %v2112
  %2114 = vmatprep.mubr.f32.mxu0 %v1877
  %2115 = vmatmul.mubr.f32.gmra.mrb[0].mxu0 %v1876
  %v2116 = vpop.f32.mrb[0].mxu0
  %v2117 = vadd.f32 %v1966, %v2116
  %v2118 = vpop.f32.mrb[0].mxu0
  %v2119 = vadd.f32 %v1966, %v2118
  %2120 = vmatprep.mubr.f32.mxu0 %v1881
  %2121 = vmatmul.mubr.f32.gmra.mrb[0].mxu0 %v1880
  %v2122 = vpop.f32.mrb[0].mxu0
  %v2123 = vadd.f32 %v1971, %v2122
  %v2124 = vpop.f32.mrb[0].mxu0
  %v2125 = vadd.f32 %v1971, %v2124
  %2126 = vmatprep.mubr.f32.mxu0 %v1885
  %2127 = vmatmul.mubr.f32.gmra.mrb[0].mxu0 %v1884
  %v2128 = vpop.f32.mrb[0].mxu0
  %v2129 = vadd.f32 %v1976, %v2128
  %v2130 = vpop.f32.mrb[0].mxu0
  %v2131 = vadd.f32 %v1976, %v2130
  %2132 = vmatprep.mubr.f32.mxu0 %v1889
  %2133 = vmatmul.mubr.f32.gmra.mrb[0].mxu0 %v1888
  %v2134 = vpop.f32.mrb[0].mxu0
  %v2135 = vadd.f32 %v1981, %v2134
  %v2136 = vpop.f32.mrb[0].mxu0
  %v2137 = vadd.f32 %v1981, %v2136
  %2138 = vmatprep.mubr.f32.mxu0 %v1893
  %2139 = vmatmul.mubr.f32.gmra.mrb[0].mxu0 %v1892
  %v2140 = vpop.f32.mrb[0].mxu0
  %v2141 = vadd.f32 %v1986, %v2140
  %v2142 = vpop.f32.mrb[0].mxu0
  %v2143 = vadd.f32 %v1986, %v2142
  %2144 = vmatprep.mubr.f32.mxu0 %v1897
  %2145 = vmatmul.mubr.f32.gmra.mrb[0].mxu0 %v1896
  %v2146 = vpop.f32.mrb[0].mxu0
  %v2147 = vadd.f32 %v1991, %v2146
  %v2148 = vpop.f32.mrb[0].mxu0
  %v2149 = vadd.f32 %v1991, %v2148
  %2150 = vmatprep.mubr.f32.mxu0 %v1901
  %2151 = vmatmul.mubr.f32.gmra.mrb[0].mxu0 %v1900
  %v2152 = vpop.f32.mrb[0].mxu0
  %v2153 = vadd.f32 %v1996, %v2152
  %v2154 = vpop.f32.mrb[0].mxu0
  %v2155 = vadd.f32 %v1996, %v2154
  %2156 = vmatprep.mubr.f32.mxu0 %v1905
  %2157 = vmatmul.mubr.f32.gmra.mrb[0].mxu0 %v1904
  %v2158 = vpop.f32.mrb[0].mxu0
  %v2159 = vadd.f32 %v2001, %v2158
  %v2160 = vpop.f32.mrb[0].mxu0
  %v2161 = vadd.f32 %v2001, %v2160
  %2162 = vmatprep.mubr.f32.mxu0 %v1909
  %2163 = vmatmul.mubr.f32.gmra.mrb[0].mxu0 %v1908
  %v2164 = vpop.f32.mrb[0].mxu0
  %v2165 = vadd.f32 %v2006, %v2164
  %v2166 = vpop.f32.mrb[0].mxu0
  %v2167 = vadd.f32 %v2006, %v2166
  %2168 = vdwg.mxu0
  %2169 = vmatprep.subr.mxu0 %v1721
  %2170 = vmatpush1.msra.mxu0 %v1720
  %2171 = vmatprep.subr.mxu0 %v1725
  %2172 = vmatpush1.msra.mxu0 %v1724
  %2173 = vmatprep.subr.mxu0 %v1729
  %2174 = vmatpush1.msra.mxu0 %v1728
  %2175 = vmatprep.subr.mxu0 %v1733
  %2176 = vmatpush1.msra.mxu0 %v1732
  %2177 = vmatprep.subr.mxu0 %v1737
  %2178 = vmatpush1.msra.mxu0 %v1736
  %2179 = vmatprep.subr.mxu0 %v1741
  %2180 = vmatpush1.msra.mxu0 %v1740
  %2181 = vmatprep.subr.mxu0 %v1745
  %2182 = vmatpush1.msra.mxu0 %v1744
  %2183 = vmatprep.subr.mxu0 %v1749
  %2184 = vmatpush1.msra.mxu0 %v1748
  %2185 = vmatprep.subr.mxu0 %v1753
  %2186 = vmatpush1.msra.mxu0 %v1752
  %2187 = vmatprep.subr.mxu0 %v1757
  %2188 = vmatpush1.msra.mxu0 %v1756
  %2189 = vmatprep.subr.mxu0 %v1761
  %2190 = vmatpush1.msra.mxu0 %v1760
  %2191 = vmatprep.subr.mxu0 %v1765
  %2192 = vmatpush1.msra.mxu0 %v1764
  %2193 = vmatprep.subr.mxu0 %v1769
  %2194 = vmatpush1.msra.mxu0 %v1768
  %2195 = vmatprep.subr.mxu0 %v1773
  %2196 = vmatpush1.msra.mxu0 %v1772
  %2197 = vmatprep.subr.mxu0 %v1777
  %2198 = vmatpush1.msra.mxu0 %v1776
  %2199 = vmatprep.subr.mxu0 %v1781
  %2200 = vmatpush1.msra.mxu0 %v1780
  %2201 = vmatprep.subr.mxu0 %v1785
  %2202 = vmatpush1.msra.mxu0 %v1784
  %2203 = vmatprep.subr.mxu0 %v1789
  %2204 = vmatpush1.msra.mxu0 %v1788
  %2205 = vmatprep.subr.mxu0 %v1793
  %2206 = vmatpush1.msra.mxu0 %v1792
  %2207 = vmatprep.subr.mxu0 %v1797
  %2208 = vmatpush1.msra.mxu0 %v1796
  %2209 = vmatprep.subr.mxu0 %v1801
  %2210 = vmatpush1.msra.mxu0 %v1800
  %2211 = vmatprep.subr.mxu0 %v1805
  %2212 = vmatpush1.msra.mxu0 %v1804
  %2213 = vmatprep.subr.mxu0 %v1809
  %2214 = vmatpush1.msra.mxu0 %v1808
  %2215 = vmatprep.subr.mxu0 %v1813
  %2216 = vmatpush1.msra.mxu0 %v1812
  %2217 = vmatprep.subr.mxu0 %v1817
  %2218 = vmatpush1.msra.mxu0 %v1816
  %2219 = vmatprep.subr.mxu0 %v1821
  %2220 = vmatpush1.msra.mxu0 %v1820
  %2221 = vmatprep.subr.mxu0 %v1825
  %2222 = vmatpush1.msra.mxu0 %v1824
  %2223 = vmatprep.subr.mxu0 %v1829
  %2224 = vmatpush1.msra.mxu0 %v1828
  %2225 = vmatprep.subr.mxu0 %v1833
  %2226 = vmatpush1.msra.mxu0 %v1832
  %2227 = vmatprep.subr.mxu0 %v1837
  %2228 = vmatpush1.msra.mxu0 %v1836
  %2229 = vmatprep.subr.mxu0 %v1841
  %2230 = vmatpush1.msra.mxu0 %v1840
  %2231 = vmatprep.subr.mxu0 %v1845
  %2232 = vmatpush1.msra.mxu0 %v1844
  %2233 = vmatprep.mubr.f32.mxu0 %v1851
  %2234 = vmatmul.mubr.f32.gmra.mrb[0].mxu0 %v1850
  %v2235 = vpop.f32.mrb[0].mxu0
  %v2236 = vadd.f32 %v2075, %v2235
  %v2237 = vpop.f32.mrb[0].mxu0
  %v2238 = vadd.f32 %v2077, %v2237
  %2239 = vmatprep.mubr.f32.mxu0 %v1855
  %2240 = vmatmul.mubr.f32.gmra.mrb[0].mxu0 %v1854
  %v2241 = vpop.f32.mrb[0].mxu0
  %v2242 = vadd.f32 %v2081, %v2241
  %v2243 = vpop.f32.mrb[0].mxu0
  %v2244 = vadd.f32 %v2083, %v2243
  %2245 = vmatprep.mubr.f32.mxu0 %v1859
  %2246 = vmatmul.mubr.f32.gmra.mrb[0].mxu0 %v1858
  %v2247 = vpop.f32.mrb[0].mxu0
  %v2248 = vadd.f32 %v2087, %v2247
  %v2249 = vpop.f32.mrb[0].mxu0
  %v2250 = vadd.f32 %v2089, %v2249
  %2251 = vmatprep.mubr.f32.mxu0 %v1863
  %2252 = vmatmul.mubr.f32.gmra.mrb[0].mxu0 %v1862
  %v2253 = vpop.f32.mrb[0].mxu0
  %v2254 = vadd.f32 %v2093, %v2253
  %v2255 = vpop.f32.mrb[0].mxu0
  %v2256 = vadd.f32 %v2095, %v2255
  %2257 = vmatprep.mubr.f32.mxu0 %v1867
  %2258 = vmatmul.mubr.f32.gmra.mrb[0].mxu0 %v1866
  %v2259 = vpop.f32.mrb[0].mxu0
  %v2260 = vadd.f32 %v2099, %v2259
  %v2261 = vpop.f32.mrb[0].mxu0
  %v2262 = vadd.f32 %v2101, %v2261
  %2263 = vmatprep.mubr.f32.mxu0 %v1871
  %2264 = vmatmul.mubr.f32.gmra.mrb[0].mxu0 %v1870
  %v2265 = vpop.f32.mrb[0].mxu0
  %v2266 = vadd.f32 %v2105, %v2265
  %v2267 = vpop.f32.mrb[0].mxu0
  %v2268 = vadd.f32 %v2107, %v2267
  %2269 = vmatprep.mubr.f32.mxu0 %v1875
  %2270 = vmatmul.mubr.f32.gmra.mrb[0].mxu0 %v1874
  %v2271 = vpop.f32.mrb[0].mxu0
  %v2272 = vadd.f32 %v2111, %v2271
  %v2273 = vpop.f32.mrb[0].mxu0
  %v2274 = vadd.f32 %v2113, %v2273
  %2275 = vmatprep.mubr.f32.mxu0 %v1879
  %2276 = vmatmul.mubr.f32.gmra.mrb[0].mxu0 %v1878
  %v2277 = vpop.f32.mrb[0].mxu0
  %v2278 = vadd.f32 %v2117, %v2277
  %v2279 = vpop.f32.mrb[0].mxu0
  %v2280 = vadd.f32 %v2119, %v2279
  %2281 = vmatprep.mubr.f32.mxu0 %v1883
  %2282 = vmatmul.mubr.f32.gmra.mrb[0].mxu0 %v1882
  %v2283 = vpop.f32.mrb[0].mxu0
  %v2284 = vadd.f32 %v2123, %v2283
  %v2285 = vpop.f32.mrb[0].mxu0
  %v2286 = vadd.f32 %v2125, %v2285
  %2287 = vmatprep.mubr.f32.mxu0 %v1887
  %2288 = vmatmul.mubr.f32.gmra.mrb[0].mxu0 %v1886
  %v2289 = vpop.f32.mrb[0].mxu0
  %v2290 = vadd.f32 %v2129, %v2289
  %v2291 = vpop.f32.mrb[0].mxu0
  %v2292 = vadd.f32 %v2131, %v2291
  %2293 = vmatprep.mubr.f32.mxu0 %v1891
  %2294 = vmatmul.mubr.f32.gmra.mrb[0].mxu0 %v1890
  %v2295 = vpop.f32.mrb[0].mxu0
  %v2296 = vadd.f32 %v2135, %v2295
  %v2297 = vpop.f32.mrb[0].mxu0
  %v2298 = vadd.f32 %v2137, %v2297
  %2299 = vmatprep.mubr.f32.mxu0 %v1895
  %2300 = vmatmul.mubr.f32.gmra.mrb[0].mxu0 %v1894
  %v2301 = vpop.f32.mrb[0].mxu0
  %v2302 = vadd.f32 %v2141, %v2301
  %v2303 = vpop.f32.mrb[0].mxu0
  %v2304 = vadd.f32 %v2143, %v2303
  %2305 = vmatprep.mubr.f32.mxu0 %v1899
  %2306 = vmatmul.mubr.f32.gmra.mrb[0].mxu0 %v1898
  %v2307 = vpop.f32.mrb[0].mxu0
  %v2308 = vadd.f32 %v2147, %v2307
  %v2309 = vpop.f32.mrb[0].mxu0
  %v2310 = vadd.f32 %v2149, %v2309
  %2311 = vmatprep.mubr.f32.mxu0 %v1903
  %2312 = vmatmul.mubr.f32.gmra.mrb[0].mxu0 %v1902
  %v2313 = vpop.f32.mrb[0].mxu0
  %v2314 = vadd.f32 %v2153, %v2313
  %v2315 = vpop.f32.mrb[0].mxu0
  %v2316 = vadd.f32 %v2155, %v2315
  %2317 = vmatprep.mubr.f32.mxu0 %v1907
  %2318 = vmatmul.mubr.f32.gmra.mrb[0].mxu0 %v1906
  %v2319 = vpop.f32.mrb[0].mxu0
  %v2320 = vadd.f32 %v2159, %v2319
  %v2321 = vpop.f32.mrb[0].mxu0
  %v2322 = vadd.f32 %v2161, %v2321
  %2323 = vmatprep.mubr.f32.mxu0 %v1911
  %2324 = vmatmul.mubr.f32.gmra.mrb[0].mxu0 %v1910
  %v2325 = vpop.f32.mrb[0].mxu0
  %v2326 = vadd.f32 %v2165, %v2325
  %v2327 = vpop.f32.mrb[0].mxu0
  %v2328 = vadd.f32 %v2167, %v2327
  %2329 = vdwg.mxu0
  %2330 = vmatprep.subr.mxu0 %v1595
  %2331 = vmatpush1.msra.mxu0 %v1594
  %2332 = vmatprep.subr.mxu0 %v1599
  %2333 = vmatpush1.msra.mxu0 %v1598
  %2334 = vmatprep.subr.mxu0 %v1603
  %2335 = vmatpush1.msra.mxu0 %v1602
  %2336 = vmatprep.subr.mxu0 %v1607
  %2337 = vmatpush1.msra.mxu0 %v1606
  %2338 = vmatprep.subr.mxu0 %v1611
  %2339 = vmatpush1.msra.mxu0 %v1610
  %2340 = vmatprep.subr.mxu0 %v1615
  %2341 = vmatpush1.msra.mxu0 %v1614
  %2342 = vmatprep.subr.mxu0 %v1619
  %2343 = vmatpush1.msra.mxu0 %v1618
  %2344 = vmatprep.subr.mxu0 %v1623
  %2345 = vmatpush1.msra.mxu0 %v1622
  %2346 = vmatprep.subr.mxu0 %v1627
  %2347 = vmatpush1.msra.mxu0 %v1626
  %2348 = vmatprep.subr.mxu0 %v1631
  %2349 = vmatpush1.msra.mxu0 %v1630
  %2350 = vmatprep.subr.mxu0 %v1635
  %2351 = vmatpush1.msra.mxu0 %v1634
  %2352 = vmatprep.subr.mxu0 %v1639
  %2353 = vmatpush1.msra.mxu0 %v1638
  %2354 = vmatprep.subr.mxu0 %v1643
  %2355 = vmatpush1.msra.mxu0 %v1642
  %2356 = vmatprep.subr.mxu0 %v1647
  %2357 = vmatpush1.msra.mxu0 %v1646
  %2358 = vmatprep.subr.mxu0 %v1651
  %2359 = vmatpush1.msra.mxu0 %v1650
  %2360 = vmatprep.subr.mxu0 %v1655
  %2361 = vmatpush1.msra.mxu0 %v1654
  %2362 = vmatprep.subr.mxu0 %v1659
  %2363 = vmatpush1.msra.mxu0 %v1658
  %2364 = vmatprep.subr.mxu0 %v1663
  %2365 = vmatpush1.msra.mxu0 %v1662
  %2366 = vmatprep.subr.mxu0 %v1667
  %2367 = vmatpush1.msra.mxu0 %v1666
  %2368 = vmatprep.subr.mxu0 %v1671
  %2369 = vmatpush1.msra.mxu0 %v1670
  %2370 = vmatprep.subr.mxu0 %v1675
  %2371 = vmatpush1.msra.mxu0 %v1674
  %2372 = vmatprep.subr.mxu0 %v1679
  %2373 = vmatpush1.msra.mxu0 %v1678
  %2374 = vmatprep.subr.mxu0 %v1683
  %2375 = vmatpush1.msra.mxu0 %v1682
  %2376 = vmatprep.subr.mxu0 %v1687
  %2377 = vmatpush1.msra.mxu0 %v1686
  %2378 = vmatprep.subr.mxu0 %v1691
  %2379 = vmatpush1.msra.mxu0 %v1690
  %2380 = vmatprep.subr.mxu0 %v1695
  %2381 = vmatpush1.msra.mxu0 %v1694
  %2382 = vmatprep.subr.mxu0 %v1699
  %2383 = vmatpush1.msra.mxu0 %v1698
  %2384 = vmatprep.subr.mxu0 %v1703
  %2385 = vmatpush1.msra.mxu0 %v1702
  %2386 = vmatprep.subr.mxu0 %v1707
  %2387 = vmatpush1.msra.mxu0 %v1706
  %2388 = vmatprep.subr.mxu0 %v1711
  %2389 = vmatpush1.msra.mxu0 %v1710
  %2390 = vmatprep.subr.mxu0 %v1715
  %2391 = vmatpush1.msra.mxu0 %v1714
  %2392 = vmatprep.subr.mxu0 %v1719
  %2393 = vmatpush1.msra.mxu0 %v1718
  %2394 = vmatprep.mubr.f32.mxu0 %v1849
  %2395 = vmatmul.mubr.f32.gmra.mrb[0].mxu0 %v1848
  %v2396 = vpop.f32.mrb[0].mxu0
  %v2397 = vadd.f32 %v1931, %v2396
  %v2398 = vpop.f32.mrb[0].mxu0
  %v2399 = vadd.f32 %v1931, %v2398
  %2400 = vmatprep.mubr.f32.mxu0 %v1853
  %2401 = vmatmul.mubr.f32.gmra.mrb[0].mxu0 %v1852
  %v2402 = vpop.f32.mrb[0].mxu0
  %v2403 = vadd.f32 %v1936, %v2402
  %v2404 = vpop.f32.mrb[0].mxu0
  %v2405 = vadd.f32 %v1936, %v2404
  %2406 = vmatprep.mubr.f32.mxu0 %v1857
  %2407 = vmatmul.mubr.f32.gmra.mrb[0].mxu0 %v1856
  %v2408 = vpop.f32.mrb[0].mxu0
  %v2409 = vadd.f32 %v1941, %v2408
  %v2410 = vpop.f32.mrb[0].mxu0
  %v2411 = vadd.f32 %v1941, %v2410
  %2412 = vmatprep.mubr.f32.mxu0 %v1861
  %2413 = vmatmul.mubr.f32.gmra.mrb[0].mxu0 %v1860
  %v2414 = vpop.f32.mrb[0].mxu0
  %v2415 = vadd.f32 %v1946, %v2414
  %v2416 = vpop.f32.mrb[0].mxu0
  %v2417 = vadd.f32 %v1946, %v2416
  %2418 = vmatprep.mubr.f32.mxu0 %v1865
  %2419 = vmatmul.mubr.f32.gmra.mrb[0].mxu0 %v1864
  %v2420 = vpop.f32.mrb[0].mxu0
  %v2421 = vadd.f32 %v1951, %v2420
  %v2422 = vpop.f32.mrb[0].mxu0
  %v2423 = vadd.f32 %v1951, %v2422
  %2424 = vmatprep.mubr.f32.mxu0 %v1869
  %2425 = vmatmul.mubr.f32.gmra.mrb[0].mxu0 %v1868
  %v2426 = vpop.f32.mrb[0].mxu0
  %v2427 = vadd.f32 %v1956, %v2426
  %v2428 = vpop.f32.mrb[0].mxu0
  %v2429 = vadd.f32 %v1956, %v2428
  %2430 = vmatprep.mubr.f32.mxu0 %v1873
  %2431 = vmatmul.mubr.f32.gmra.mrb[0].mxu0 %v1872
  %v2432 = vpop.f32.mrb[0].mxu0
  %v2433 = vadd.f32 %v1961, %v2432
  %v2434 = vpop.f32.mrb[0].mxu0
  %v2435 = vadd.f32 %v1961, %v2434
  %2436 = vmatprep.mubr.f32.mxu0 %v1877
  %2437 = vmatmul.mubr.f32.gmra.mrb[0].mxu0 %v1876
  %v2438 = vpop.f32.mrb[0].mxu0
  %v2439 = vadd.f32 %v1966, %v2438
  %v2440 = vpop.f32.mrb[0].mxu0
  %v2441 = vadd.f32 %v1966, %v2440
  %2442 = vmatprep.mubr.f32.mxu0 %v1881
  %2443 = vmatmul.mubr.f32.gmra.mrb[0].mxu0 %v1880
  %v2444 = vpop.f32.mrb[0].mxu0
  %v2445 = vadd.f32 %v1971, %v2444
  %v2446 = vpop.f32.mrb[0].mxu0
  %v2447 = vadd.f32 %v1971, %v2446
  %2448 = vmatprep.mubr.f32.mxu0 %v1885
  %2449 = vmatmul.mubr.f32.gmra.mrb[0].mxu0 %v1884
  %v2450 = vpop.f32.mrb[0].mxu0
  %v2451 = vadd.f32 %v1976, %v2450
  %v2452 = vpop.f32.mrb[0].mxu0
  %v2453 = vadd.f32 %v1976, %v2452
  %2454 = vmatprep.mubr.f32.mxu0 %v1889
  %2455 = vmatmul.mubr.f32.gmra.mrb[0].mxu0 %v1888
  %v2456 = vpop.f32.mrb[0].mxu0
  %v2457 = vadd.f32 %v1981, %v2456
  %v2458 = vpop.f32.mrb[0].mxu0
  %v2459 = vadd.f32 %v1981, %v2458
  %2460 = vmatprep.mubr.f32.mxu0 %v1893
  %2461 = vmatmul.mubr.f32.gmra.mrb[0].mxu0 %v1892
  %v2462 = vpop.f32.mrb[0].mxu0
  %v2463 = vadd.f32 %v1986, %v2462
  %v2464 = vpop.f32.mrb[0].mxu0
  %v2465 = vadd.f32 %v1986, %v2464
  %2466 = vmatprep.mubr.f32.mxu0 %v1897
  %2467 = vmatmul.mubr.f32.gmra.mrb[0].mxu0 %v1896
  %v2468 = vpop.f32.mrb[0].mxu0
  %v2469 = vadd.f32 %v1991, %v2468
  %v2470 = vpop.f32.mrb[0].mxu0
  %v2471 = vadd.f32 %v1991, %v2470
  %2472 = vmatprep.mubr.f32.mxu0 %v1901
  %2473 = vmatmul.mubr.f32.gmra.mrb[0].mxu0 %v1900
  %v2474 = vpop.f32.mrb[0].mxu0
  %v2475 = vadd.f32 %v1996, %v2474
  %v2476 = vpop.f32.mrb[0].mxu0
  %v2477 = vadd.f32 %v1996, %v2476
  %2478 = vmatprep.mubr.f32.mxu0 %v1905
  %2479 = vmatmul.mubr.f32.gmra.mrb[0].mxu0 %v1904
  %v2480 = vpop.f32.mrb[0].mxu0
  %v2481 = vadd.f32 %v2001, %v2480
  %v2482 = vpop.f32.mrb[0].mxu0
  %v2483 = vadd.f32 %v2001, %v2482
  %2484 = vmatprep.mubr.f32.mxu0 %v1909
  %2485 = vmatmul.mubr.f32.gmra.mrb[0].mxu0 %v1908
  %v2486 = vpop.f32.mrb[0].mxu0
  %v2487 = vadd.f32 %v2006, %v2486
  %v2488 = vpop.f32.mrb[0].mxu0
  %v2489 = vadd.f32 %v2006, %v2488
  %2490 = vdwg.mxu0
  %2491 = vmatprep.subr.mxu0 %v1723
  %2492 = vmatpush1.msra.mxu0 %v1722
  %2493 = vmatprep.subr.mxu0 %v1727
  %2494 = vmatpush1.msra.mxu0 %v1726
  %2495 = vmatprep.subr.mxu0 %v1731
  %2496 = vmatpush1.msra.mxu0 %v1730
  %2497 = vmatprep.subr.mxu0 %v1735
  %2498 = vmatpush1.msra.mxu0 %v1734
  %2499 = vmatprep.subr.mxu0 %v1739
  %2500 = vmatpush1.msra.mxu0 %v1738
  %2501 = vmatprep.subr.mxu0 %v1743
  %2502 = vmatpush1.msra.mxu0 %v1742
  %2503 = vmatprep.subr.mxu0 %v1747
  %2504 = vmatpush1.msra.mxu0 %v1746
  %2505 = vmatprep.subr.mxu0 %v1751
  %2506 = vmatpush1.msra.mxu0 %v1750
  %2507 = vmatprep.subr.mxu0 %v1755
  %2508 = vmatpush1.msra.mxu0 %v1754
  %2509 = vmatprep.subr.mxu0 %v1759
  %2510 = vmatpush1.msra.mxu0 %v1758
  %2511 = vmatprep.subr.mxu0 %v1763
  %2512 = vmatpush1.msra.mxu0 %v1762
  %2513 = vmatprep.subr.mxu0 %v1767
  %2514 = vmatpush1.msra.mxu0 %v1766
  %2515 = vmatprep.subr.mxu0 %v1771
  %2516 = vmatpush1.msra.mxu0 %v1770
  %2517 = vmatprep.subr.mxu0 %v1775
  %2518 = vmatpush1.msra.mxu0 %v1774
  %2519 = vmatprep.subr.mxu0 %v1779
  %2520 = vmatpush1.msra.mxu0 %v1778
  %2521 = vmatprep.subr.mxu0 %v1783
  %2522 = vmatpush1.msra.mxu0 %v1782
  %2523 = vmatprep.subr.mxu0 %v1787
  %2524 = vmatpush1.msra.mxu0 %v1786
  %2525 = vmatprep.subr.mxu0 %v1791
  %2526 = vmatpush1.msra.mxu0 %v1790
  %2527 = vmatprep.subr.mxu0 %v1795
  %2528 = vmatpush1.msra.mxu0 %v1794
  %2529 = vmatprep.subr.mxu0 %v1799
  %2530 = vmatpush1.msra.mxu0 %v1798
  %2531 = vmatprep.subr.mxu0 %v1803
  %2532 = vmatpush1.msra.mxu0 %v1802
  %2533 = vmatprep.subr.mxu0 %v1807
  %2534 = vmatpush1.msra.mxu0 %v1806
  %2535 = vmatprep.subr.mxu0 %v1811
  %2536 = vmatpush1.msra.mxu0 %v1810
  %2537 = vmatprep.subr.mxu0 %v1815
  %2538 = vmatpush1.msra.mxu0 %v1814
  %2539 = vmatprep.subr.mxu0 %v1819
  %2540 = vmatpush1.msra.mxu0 %v1818
  %2541 = vmatprep.subr.mxu0 %v1823
  %2542 = vmatpush1.msra.mxu0 %v1822
  %2543 = vmatprep.subr.mxu0 %v1827
  %2544 = vmatpush1.msra.mxu0 %v1826
  %2545 = vmatprep.subr.mxu0 %v1831
  %2546 = vmatpush1.msra.mxu0 %v1830
  %2547 = vmatprep.subr.mxu0 %v1835
  %2548 = vmatpush1.msra.mxu0 %v1834
  %2549 = vmatprep.subr.mxu0 %v1839
  %2550 = vmatpush1.msra.mxu0 %v1838
  %2551 = vmatprep.subr.mxu0 %v1843
  %2552 = vmatpush1.msra.mxu0 %v1842
  %2553 = vmatprep.subr.mxu0 %v1847
  %2554 = vmatpush1.msra.mxu0 %v1846
  %2555 = vmatprep.mubr.f32.mxu0 %v1851
  %2556 = vmatmul.mubr.f32.gmra.mrb[0].mxu0 %v1850
  %v2557 = vpop.f32.mrb[0].mxu0
  %v2558 = vadd.f32 %v2397, %v2557
  %v2559 = vpop.f32.mrb[0].mxu0
  %v2560 = vadd.f32 %v2399, %v2559
  %2561 = vmatprep.mubr.f32.mxu0 %v1855
  %2562 = vmatmul.mubr.f32.gmra.mrb[0].mxu0 %v1854
  %v2563 = vpop.f32.mrb[0].mxu0
  %v2564 = vadd.f32 %v2403, %v2563
  %v2565 = vpop.f32.mrb[0].mxu0
  %v2566 = vadd.f32 %v2405, %v2565
  %2567 = vmatprep.mubr.f32.mxu0 %v1859
  %2568 = vmatmul.mubr.f32.gmra.mrb[0].mxu0 %v1858
  %v2569 = vpop.f32.mrb[0].mxu0
  %v2570 = vadd.f32 %v2409, %v2569
  %v2571 = vpop.f32.mrb[0].mxu0
  %v2572 = vadd.f32 %v2411, %v2571
  %2573 = vmatprep.mubr.f32.mxu0 %v1863
  %2574 = vmatmul.mubr.f32.gmra.mrb[0].mxu0 %v1862
  %v2575 = vpop.f32.mrb[0].mxu0
  %v2576 = vadd.f32 %v2415, %v2575
  %v2577 = vpop.f32.mrb[0].mxu0
  %v2578 = vadd.f32 %v2417, %v2577
  %2579 = vmatprep.mubr.f32.mxu0 %v1867
  %2580 = vmatmul.mubr.f32.gmra.mrb[0].mxu0 %v1866
  %v2581 = vpop.f32.mrb[0].mxu0
  %v2582 = vadd.f32 %v2421, %v2581
  %v2583 = vpop.f32.mrb[0].mxu0
  %v2584 = vadd.f32 %v2423, %v2583
  %2585 = vmatprep.mubr.f32.mxu0 %v1871
  %2586 = vmatmul.mubr.f32.gmra.mrb[0].mxu0 %v1870
  %v2587 = vpop.f32.mrb[0].mxu0
  %v2588 = vadd.f32 %v2427, %v2587
  %v2589 = vpop.f32.mrb[0].mxu0
  %v2590 = vadd.f32 %v2429, %v2589
  %2591 = vmatprep.mubr.f32.mxu0 %v1875
  %2592 = vmatmul.mubr.f32.gmra.mrb[0].mxu0 %v1874
  %v2593 = vpop.f32.mrb[0].mxu0
  %v2594 = vadd.f32 %v2433, %v2593
  %v2595 = vpop.f32.mrb[0].mxu0
  %v2596 = vadd.f32 %v2435, %v2595
  %2597 = vmatprep.mubr.f32.mxu0 %v1879
  %2598 = vmatmul.mubr.f32.gmra.mrb[0].mxu0 %v1878
  %v2599 = vpop.f32.mrb[0].mxu0
  %v2600 = vadd.f32 %v2439, %v2599
  %v2601 = vpop.f32.mrb[0].mxu0
  %v2602 = vadd.f32 %v2441, %v2601
  %2603 = vmatprep.mubr.f32.mxu0 %v1883
  %2604 = vmatmul.mubr.f32.gmra.mrb[0].mxu0 %v1882
  %v2605 = vpop.f32.mrb[0].mxu0
  %v2606 = vadd.f32 %v2445, %v2605
  %v2607 = vpop.f32.mrb[0].mxu0
  %v2608 = vadd.f32 %v2447, %v2607
  %2609 = vmatprep.mubr.f32.mxu0 %v1887
  %2610 = vmatmul.mubr.f32.gmra.mrb[0].mxu0 %v1886
  %v2611 = vpop.f32.mrb[0].mxu0
  %v2612 = vadd.f32 %v2451, %v2611
  %v2613 = vpop.f32.mrb[0].mxu0
  %v2614 = vadd.f32 %v2453, %v2613
  %2615 = vmatprep.mubr.f32.mxu0 %v1891
  %2616 = vmatmul.mubr.f32.gmra.mrb[0].mxu0 %v1890
  %v2617 = vpop.f32.mrb[0].mxu0
  %v2618 = vadd.f32 %v2457, %v2617
  %v2619 = vpop.f32.mrb[0].mxu0
  %v2620 = vadd.f32 %v2459, %v2619
  %2621 = vmatprep.mubr.f32.mxu0 %v1895
  %2622 = vmatmul.mubr.f32.gmra.mrb[0].mxu0 %v1894
  %v2623 = vpop.f32.mrb[0].mxu0
  %v2624 = vadd.f32 %v2463, %v2623
  %v2625 = vpop.f32.mrb[0].mxu0
  %v2626 = vadd.f32 %v2465, %v2625
  %2627 = vmatprep.mubr.f32.mxu0 %v1899
  %2628 = vmatmul.mubr.f32.gmra.mrb[0].mxu0 %v1898
  %v2629 = vpop.f32.mrb[0].mxu0
  %v2630 = vadd.f32 %v2469, %v2629
  %v2631 = vpop.f32.mrb[0].mxu0
  %v2632 = vadd.f32 %v2471, %v2631
  %2633 = vmatprep.mubr.f32.mxu0 %v1903
  %2634 = vmatmul.mubr.f32.gmra.mrb[0].mxu0 %v1902
  %v2635 = vpop.f32.mrb[0].mxu0
  %v2636 = vadd.f32 %v2475, %v2635
  %v2637 = vpop.f32.mrb[0].mxu0
  %v2638 = vadd.f32 %v2477, %v2637
  %2639 = vmatprep.mubr.f32.mxu0 %v1907
  %2640 = vmatmul.mubr.f32.gmra.mrb[0].mxu0 %v1906
  %v2641 = vpop.f32.mrb[0].mxu0
  %v2642 = vadd.f32 %v2481, %v2641
  %v2643 = vpop.f32.mrb[0].mxu0
  %v2644 = vadd.f32 %v2483, %v2643
  %2645 = vmatprep.mubr.f32.mxu0 %v1911
  %2646 = vmatmul.mubr.f32.gmra.mrb[0].mxu0 %v1910
  %v2647 = vpop.f32.mrb[0].mxu0
  %v2648 = vadd.f32 %v2487, %v2647
  %v2649 = vpop.f32.mrb[0].mxu0
  %v2650 = vadd.f32 %v2489, %v2649
  %2651 = vdwg.mxu0
  %v2652 = vmax.f32 %v2236, 0.0
  %v2653 = vmax.f32 %v2238, 0.0
  %v2654 = vmax.f32 %v2558, 0.0
  %v2655 = vmax.f32 %v2560, 0.0
  %v2656 = vmax.f32 %v2242, 0.0
  %v2657 = vmax.f32 %v2244, 0.0
  %v2658 = vmax.f32 %v2564, 0.0
  %v2659 = vmax.f32 %v2566, 0.0
  %v2660 = vmax.f32 %v2248, 0.0
  %v2661 = vmax.f32 %v2250, 0.0
  %v2662 = vmax.f32 %v2570, 0.0
  %v2663 = vmax.f32 %v2572, 0.0
  %v2664 = vmax.f32 %v2254, 0.0
  %v2665 = vmax.f32 %v2256, 0.0
  %v2666 = vmax.f32 %v2576, 0.0
  %v2667 = vmax.f32 %v2578, 0.0
  %v2668 = vmax.f32 %v2260, 0.0
  %v2669 = vmax.f32 %v2262, 0.0
  %v2670 = vmax.f32 %v2582, 0.0
  %v2671 = vmax.f32 %v2584, 0.0
  %v2672 = vmax.f32 %v2266, 0.0
  %v2673 = vmax.f32 %v2268, 0.0
  %v2674 = vmax.f32 %v2588, 0.0
  %v2675 = vmax.f32 %v2590, 0.0
  %v2676 = vmax.f32 %v2272, 0.0
  %v2677 = vmax.f32 %v2274, 0.0
  %v2678 = vmax.f32 %v2594, 0.0
  %v2679 = vmax.f32 %v2596, 0.0
  %v2680 = vmax.f32 %v2278, 0.0
  %v2681 = vmax.f32 %v2280, 0.0
  %v2682 = vmax.f32 %v2600, 0.0
  %v2683 = vmax.f32 %v2602, 0.0
  %v2684 = vmax.f32 %v2284, 0.0
  %v2685 = vmax.f32 %v2286, 0.0
  %v2686 = vmax.f32 %v2606, 0.0
  %v2687 = vmax.f32 %v2608, 0.0
  %v2688 = vmax.f32 %v2290, 0.0
  %v2689 = vmax.f32 %v2292, 0.0
  %v2690 = vmax.f32 %v2612, 0.0
  %v2691 = vmax.f32 %v2614, 0.0
  %v2692 = vmax.f32 %v2296, 0.0
  %v2693 = vmax.f32 %v2298, 0.0
  %v2694 = vmax.f32 %v2618, 0.0
  %v2695 = vmax.f32 %v2620, 0.0
  %v2696 = vmax.f32 %v2302, 0.0
  %v2697 = vmax.f32 %v2304, 0.0
  %v2698 = vmax.f32 %v2624, 0.0
  %v2699 = vmax.f32 %v2626, 0.0
  %v2700 = vmax.f32 %v2308, 0.0
  %v2701 = vmax.f32 %v2310, 0.0
  %v2702 = vmax.f32 %v2630, 0.0
  %v2703 = vmax.f32 %v2632, 0.0
  %v2704 = vmax.f32 %v2314, 0.0
  %v2705 = vmax.f32 %v2316, 0.0
  %v2706 = vmax.f32 %v2636, 0.0
  %v2707 = vmax.f32 %v2638, 0.0
  %v2708 = vmax.f32 %v2320, 0.0
  %v2709 = vmax.f32 %v2322, 0.0
  %v2710 = vmax.f32 %v2642, 0.0
  %v2711 = vmax.f32 %v2644, 0.0
  %v2712 = vmax.f32 %v2326, 0.0
  %v2713 = vmax.f32 %v2328, 0.0
  %v2714 = vmax.f32 %v2648, 0.0
  %v2715 = vmax.f32 %v2650, 0.0
  %v2716 = vld [vmem:[%s5] sm:$0xff]
  %v2717 = vld [vmem:[%s5 + $0x8] sm:$0xff]
  %v2718 = vld [vmem:[%s5 + $0x10] sm:$0xff]
  %v2719 = vld [vmem:[%s5 + $0x18] sm:$0xff]
  %v2720 = vld [vmem:[%s5 + $0x20] sm:$0xff]
  %v2721 = vld [vmem:[%s5 + $0x28] sm:$0xff]
  %v2722 = vld [vmem:[%s5 + $0x30] sm:$0xff]
  %v2723 = vld [vmem:[%s5 + $0x38] sm:$0xff]
  %v2724 = vld [vmem:[%s5 + $0x40] sm:$0xff]
  %v2725 = vld [vmem:[%s5 + $0x48] sm:$0xff]
  %v2726 = vld [vmem:[%s5 + $0x50] sm:$0xff]
  %v2727 = vld [vmem:[%s5 + $0x58] sm:$0xff]
  %v2728 = vld [vmem:[%s5 + $0x60] sm:$0xff]
  %v2729 = vld [vmem:[%s5 + $0x68] sm:$0xff]
  %v2730 = vld [vmem:[%s5 + $0x70] sm:$0xff]
  %v2731 = vld [vmem:[%s5 + $0x78] sm:$0xff]
  %v2732 = vld [vmem:[%s6] sm:$0xff]
  %v2733 = vld [vmem:[%s6 + $0x8] sm:$0xff]
  %v2734 = vld [vmem:[%s6 + $0x10] sm:$0xff]
  %v2735 = vld [vmem:[%s6 + $0x18] sm:$0xff]
  %v2736 = vld [vmem:[%s6 + $0x20] sm:$0xff]
  %v2737 = vld [vmem:[%s6 + $0x28] sm:$0xff]
  %v2738 = vld [vmem:[%s6 + $0x30] sm:$0xff]
  %v2739 = vld [vmem:[%s6 + $0x38] sm:$0xff]
  %v2740 = vld [vmem:[%s6 + $0x40] sm:$0xff]
  %v2741 = vld [vmem:[%s6 + $0x48] sm:$0xff]
  %v2742 = vld [vmem:[%s6 + $0x50] sm:$0xff]
  %v2743 = vld [vmem:[%s6 + $0x58] sm:$0xff]
  %v2744 = vld [vmem:[%s6 + $0x60] sm:$0xff]
  %v2745 = vld [vmem:[%s6 + $0x68] sm:$0xff]
  %v2746 = vld [vmem:[%s6 + $0x70] sm:$0xff]
  %v2747 = vld [vmem:[%s6 + $0x78] sm:$0xff]
  %2749 = vset.pattern.permute.xlu0 0
  %2750 = vperm.xlu0 %2749, %v2732
  %v2751 = vpop.permute.xlu0 %2750
  %2754 = vset.pattern.permute.xlu0 0
  %2755 = vperm.xlu0 %2754, %v2733
  %v2756 = vpop.permute.xlu0 %2755
  %2759 = vset.pattern.permute.xlu0 0
  %2760 = vperm.xlu0 %2759, %v2734
  %v2761 = vpop.permute.xlu0 %2760
  %2764 = vset.pattern.permute.xlu0 0
  %2765 = vperm.xlu0 %2764, %v2735
  %v2766 = vpop.permute.xlu0 %2765
  %2769 = vset.pattern.permute.xlu0 0
  %2770 = vperm.xlu0 %2769, %v2736
  %v2771 = vpop.permute.xlu0 %2770
  %2774 = vset.pattern.permute.xlu0 0
  %2775 = vperm.xlu0 %2774, %v2737
  %v2776 = vpop.permute.xlu0 %2775
  %2779 = vset.pattern.permute.xlu0 0
  %2780 = vperm.xlu0 %2779, %v2738
  %v2781 = vpop.permute.xlu0 %2780
  %2784 = vset.pattern.permute.xlu0 0
  %2785 = vperm.xlu0 %2784, %v2739
  %v2786 = vpop.permute.xlu0 %2785
  %2789 = vset.pattern.permute.xlu0 0
  %2790 = vperm.xlu0 %2789, %v2740
  %v2791 = vpop.permute.xlu0 %2790
  %2794 = vset.pattern.permute.xlu0 0
  %2795 = vperm.xlu0 %2794, %v2741
  %v2796 = vpop.permute.xlu0 %2795
  %2799 = vset.pattern.permute.xlu0 0
  %2800 = vperm.xlu0 %2799, %v2742
  %v2801 = vpop.permute.xlu0 %2800
  %2804 = vset.pattern.permute.xlu0 0
  %2805 = vperm.xlu0 %2804, %v2743
  %v2806 = vpop.permute.xlu0 %2805
  %2809 = vset.pattern.permute.xlu0 0
  %2810 = vperm.xlu0 %2809, %v2744
  %v2811 = vpop.permute.xlu0 %2810
  %2814 = vset.pattern.permute.xlu0 0
  %2815 = vperm.xlu0 %2814, %v2745
  %v2816 = vpop.permute.xlu0 %2815
  %2819 = vset.pattern.permute.xlu0 0
  %2820 = vperm.xlu0 %2819, %v2746
  %v2821 = vpop.permute.xlu0 %2820
  %2824 = vset.pattern.permute.xlu0 0
  %2825 = vperm.xlu0 %2824, %v2747
  %v2826 = vpop.permute.xlu0 %2825
  %2828 = vmatprep.subr.mxu0 %v2653
  %2829 = vmatpush1.msra.mxu0 %v2652
  %2830 = vmatprep.subr.mxu0 %v2657
  %2831 = vmatpush1.msra.mxu0 %v2656
  %2832 = vmatprep.subr.mxu0 %v2661
  %2833 = vmatpush1.msra.mxu0 %v2660
  %2834 = vmatprep.subr.mxu0 %v2665
  %2835 = vmatpush1.msra.mxu0 %v2664
  %2836 = vmatprep.subr.mxu0 %v2669
  %2837 = vmatpush1.msra.mxu0 %v2668
  %2838 = vmatprep.subr.mxu0 %v2673
  %2839 = vmatpush1.msra.mxu0 %v2672
  %2840 = vmatprep.subr.mxu0 %v2677
  %2841 = vmatpush1.msra.mxu0 %v2676
  %2842 = vmatprep.subr.mxu0 %v2681
  %2843 = vmatpush1.msra.mxu0 %v2680
  %2844 = vmatprep.subr.mxu0 %v2685
  %2845 = vmatpush1.msra.mxu0 %v2684
  %2846 = vmatprep.subr.mxu0 %v2689
  %2847 = vmatpush1.msra.mxu0 %v2688
  %2848 = vmatprep.subr.mxu0 %v2693
  %2849 = vmatpush1.msra.mxu0 %v2692
  %2850 = vmatprep.subr.mxu0 %v2697
  %2851 = vmatpush1.msra.mxu0 %v2696
  %2852 = vmatprep.subr.mxu0 %v2701
  %2853 = vmatpush1.msra.mxu0 %v2700
  %2854 = vmatprep.subr.mxu0 %v2705
  %2855 = vmatpush1.msra.mxu0 %v2704
  %2856 = vmatprep.subr.mxu0 %v2709
  %2857 = vmatpush1.msra.mxu0 %v2708
  %2858 = vmatprep.subr.mxu0 %v2713
  %2859 = vmatpush1.msra.mxu0 %v2712
  %2860 = vmatprep.subr.mxu0 0.0
  %2861 = vmatpush1.msra.mxu0 0.0
  %2862 = vmatprep.subr.mxu0 0.0
  %2863 = vmatpush1.msra.mxu0 0.0
  %2864 = vmatprep.subr.mxu0 0.0
  %2865 = vmatpush1.msra.mxu0 0.0
  %2866 = vmatprep.subr.mxu0 0.0
  %2867 = vmatpush1.msra.mxu0 0.0
  %2868 = vmatprep.subr.mxu0 0.0
  %2869 = vmatpush1.msra.mxu0 0.0
  %2870 = vmatprep.subr.mxu0 0.0
  %2871 = vmatpush1.msra.mxu0 0.0
  %2872 = vmatprep.subr.mxu0 0.0
  %2873 = vmatpush1.msra.mxu0 0.0
  %2874 = vmatprep.subr.mxu0 0.0
  %2875 = vmatpush1.msra.mxu0 0.0
  %2876 = vmatprep.subr.mxu0 0.0
  %2877 = vmatpush1.msra.mxu0 0.0
  %2878 = vmatprep.subr.mxu0 0.0
  %2879 = vmatpush1.msra.mxu0 0.0
  %2880 = vmatprep.subr.mxu0 0.0
  %2881 = vmatpush1.msra.mxu0 0.0
  %2882 = vmatprep.subr.mxu0 0.0
  %2883 = vmatpush1.msra.mxu0 0.0
  %2884 = vmatprep.subr.mxu0 0.0
  %2885 = vmatpush1.msra.mxu0 0.0
  %2886 = vmatprep.subr.mxu0 0.0
  %2887 = vmatpush1.msra.mxu0 0.0
  %2888 = vmatprep.subr.mxu0 0.0
  %2889 = vmatpush1.msra.mxu0 0.0
  %2890 = vmatprep.subr.mxu0 0.0
  %2891 = vmatpush1.msra.mxu0 0.0
  %2892 = vmatprep.mubr.f32.mxu0 0.0
  %2893 = vmatmul.mubr.f32.gmra.mrb[0].mxu0 %v2716
  %v2894 = vpop.f32.mrb[0].mxu0
  %v2895 = vadd.f32 %v2751, %v2894
  %v2896 = vpop.f32.mrb[0].mxu0
  %v2897 = vadd.f32 %v2751, %v2896
  %2898 = vmatprep.mubr.f32.mxu0 0.0
  %2899 = vmatmul.mubr.f32.gmra.mrb[0].mxu0 %v2717
  %v2900 = vpop.f32.mrb[0].mxu0
  %v2901 = vadd.f32 %v2756, %v2900
  %v2902 = vpop.f32.mrb[0].mxu0
  %v2903 = vadd.f32 %v2756, %v2902
  %2904 = vmatprep.mubr.f32.mxu0 0.0
  %2905 = vmatmul.mubr.f32.gmra.mrb[0].mxu0 %v2718
  %v2906 = vpop.f32.mrb[0].mxu0
  %v2907 = vadd.f32 %v2761, %v2906
  %v2908 = vpop.f32.mrb[0].mxu0
  %v2909 = vadd.f32 %v2761, %v2908
  %2910 = vmatprep.mubr.f32.mxu0 0.0
  %2911 = vmatmul.mubr.f32.gmra.mrb[0].mxu0 %v2719
  %v2912 = vpop.f32.mrb[0].mxu0
  %v2913 = vadd.f32 %v2766, %v2912
  %v2914 = vpop.f32.mrb[0].mxu0
  %v2915 = vadd.f32 %v2766, %v2914
  %2916 = vmatprep.mubr.f32.mxu0 0.0
  %2917 = vmatmul.mubr.f32.gmra.mrb[0].mxu0 %v2720
  %v2918 = vpop.f32.mrb[0].mxu0
  %v2919 = vadd.f32 %v2771, %v2918
  %v2920 = vpop.f32.mrb[0].mxu0
  %v2921 = vadd.f32 %v2771, %v2920
  %2922 = vmatprep.mubr.f32.mxu0 0.0
  %2923 = vmatmul.mubr.f32.gmra.mrb[0].mxu0 %v2721
  %v2924 = vpop.f32.mrb[0].mxu0
  %v2925 = vadd.f32 %v2776, %v2924
  %v2926 = vpop.f32.mrb[0].mxu0
  %v2927 = vadd.f32 %v2776, %v2926
  %2928 = vmatprep.mubr.f32.mxu0 0.0
  %2929 = vmatmul.mubr.f32.gmra.mrb[0].mxu0 %v2722
  %v2930 = vpop.f32.mrb[0].mxu0
  %v2931 = vadd.f32 %v2781, %v2930
  %v2932 = vpop.f32.mrb[0].mxu0
  %v2933 = vadd.f32 %v2781, %v2932
  %2934 = vmatprep.mubr.f32.mxu0 0.0
  %2935 = vmatmul.mubr.f32.gmra.mrb[0].mxu0 %v2723
  %v2936 = vpop.f32.mrb[0].mxu0
  %v2937 = vadd.f32 %v2786, %v2936
  %v2938 = vpop.f32.mrb[0].mxu0
  %v2939 = vadd.f32 %v2786, %v2938
  %2940 = vmatprep.mubr.f32.mxu0 0.0
  %2941 = vmatmul.mubr.f32.gmra.mrb[0].mxu0 %v2724
  %v2942 = vpop.f32.mrb[0].mxu0
  %v2943 = vadd.f32 %v2791, %v2942
  %v2944 = vpop.f32.mrb[0].mxu0
  %v2945 = vadd.f32 %v2791, %v2944
  %2946 = vmatprep.mubr.f32.mxu0 0.0
  %2947 = vmatmul.mubr.f32.gmra.mrb[0].mxu0 %v2725
  %v2948 = vpop.f32.mrb[0].mxu0
  %v2949 = vadd.f32 %v2796, %v2948
  %v2950 = vpop.f32.mrb[0].mxu0
  %v2951 = vadd.f32 %v2796, %v2950
  %2952 = vmatprep.mubr.f32.mxu0 0.0
  %2953 = vmatmul.mubr.f32.gmra.mrb[0].mxu0 %v2726
  %v2954 = vpop.f32.mrb[0].mxu0
  %v2955 = vadd.f32 %v2801, %v2954
  %v2956 = vpop.f32.mrb[0].mxu0
  %v2957 = vadd.f32 %v2801, %v2956
  %2958 = vmatprep.mubr.f32.mxu0 0.0
  %2959 = vmatmul.mubr.f32.gmra.mrb[0].mxu0 %v2727
  %v2960 = vpop.f32.mrb[0].mxu0
  %v2961 = vadd.f32 %v2806, %v2960
  %v2962 = vpop.f32.mrb[0].mxu0
  %v2963 = vadd.f32 %v2806, %v2962
  %2964 = vmatprep.mubr.f32.mxu0 0.0
  %2965 = vmatmul.mubr.f32.gmra.mrb[0].mxu0 %v2728
  %v2966 = vpop.f32.mrb[0].mxu0
  %v2967 = vadd.f32 %v2811, %v2966
  %v2968 = vpop.f32.mrb[0].mxu0
  %v2969 = vadd.f32 %v2811, %v2968
  %2970 = vmatprep.mubr.f32.mxu0 0.0
  %2971 = vmatmul.mubr.f32.gmra.mrb[0].mxu0 %v2729
  %v2972 = vpop.f32.mrb[0].mxu0
  %v2973 = vadd.f32 %v2816, %v2972
  %v2974 = vpop.f32.mrb[0].mxu0
  %v2975 = vadd.f32 %v2816, %v2974
  %2976 = vmatprep.mubr.f32.mxu0 0.0
  %2977 = vmatmul.mubr.f32.gmra.mrb[0].mxu0 %v2730
  %v2978 = vpop.f32.mrb[0].mxu0
  %v2979 = vadd.f32 %v2821, %v2978
  %v2980 = vpop.f32.mrb[0].mxu0
  %v2981 = vadd.f32 %v2821, %v2980
  %2982 = vmatprep.mubr.f32.mxu0 0.0
  %2983 = vmatmul.mubr.f32.gmra.mrb[0].mxu0 %v2731
  %v2984 = vpop.f32.mrb[0].mxu0
  %v2985 = vadd.f32 %v2826, %v2984
  %v2986 = vpop.f32.mrb[0].mxu0
  %v2987 = vadd.f32 %v2826, %v2986
  %2988 = vdwg.mxu0
  %2989 = vmatprep.subr.mxu0 %v2655
  %2990 = vmatpush1.msra.mxu0 %v2654
  %2991 = vmatprep.subr.mxu0 %v2659
  %2992 = vmatpush1.msra.mxu0 %v2658
  %2993 = vmatprep.subr.mxu0 %v2663
  %2994 = vmatpush1.msra.mxu0 %v2662
  %2995 = vmatprep.subr.mxu0 %v2667
  %2996 = vmatpush1.msra.mxu0 %v2666
  %2997 = vmatprep.subr.mxu0 %v2671
  %2998 = vmatpush1.msra.mxu0 %v2670
  %2999 = vmatprep.subr.mxu0 %v2675
  %3000 = vmatpush1.msra.mxu0 %v2674
  %3001 = vmatprep.subr.mxu0 %v2679
  %3002 = vmatpush1.msra.mxu0 %v2678
  %3003 = vmatprep.subr.mxu0 %v2683
  %3004 = vmatpush1.msra.mxu0 %v2682
  %3005 = vmatprep.subr.mxu0 %v2687
  %3006 = vmatpush1.msra.mxu0 %v2686
  %3007 = vmatprep.subr.mxu0 %v2691
  %3008 = vmatpush1.msra.mxu0 %v2690
  %3009 = vmatprep.subr.mxu0 %v2695
  %3010 = vmatpush1.msra.mxu0 %v2694
  %3011 = vmatprep.subr.mxu0 %v2699
  %3012 = vmatpush1.msra.mxu0 %v2698
  %3013 = vmatprep.subr.mxu0 %v2703
  %3014 = vmatpush1.msra.mxu0 %v2702
  %3015 = vmatprep.subr.mxu0 %v2707
  %3016 = vmatpush1.msra.mxu0 %v2706
  %3017 = vmatprep.subr.mxu0 %v2711
  %3018 = vmatpush1.msra.mxu0 %v2710
  %3019 = vmatprep.subr.mxu0 %v2715
  %3020 = vmatpush1.msra.mxu0 %v2714
  %3021 = vmatprep.subr.mxu0 0.0
  %3022 = vmatpush1.msra.mxu0 0.0
  %3023 = vmatprep.subr.mxu0 0.0
  %3024 = vmatpush1.msra.mxu0 0.0
  %3025 = vmatprep.subr.mxu0 0.0
  %3026 = vmatpush1.msra.mxu0 0.0
  %3027 = vmatprep.subr.mxu0 0.0
  %3028 = vmatpush1.msra.mxu0 0.0
  %3029 = vmatprep.subr.mxu0 0.0
  %3030 = vmatpush1.msra.mxu0 0.0
  %3031 = vmatprep.subr.mxu0 0.0
  %3032 = vmatpush1.msra.mxu0 0.0
  %3033 = vmatprep.subr.mxu0 0.0
  %3034 = vmatpush1.msra.mxu0 0.0
  %3035 = vmatprep.subr.mxu0 0.0
  %3036 = vmatpush1.msra.mxu0 0.0
  %3037 = vmatprep.subr.mxu0 0.0
  %3038 = vmatpush1.msra.mxu0 0.0
  %3039 = vmatprep.subr.mxu0 0.0
  %3040 = vmatpush1.msra.mxu0 0.0
  %3041 = vmatprep.subr.mxu0 0.0
  %3042 = vmatpush1.msra.mxu0 0.0
  %3043 = vmatprep.subr.mxu0 0.0
  %3044 = vmatpush1.msra.mxu0 0.0
  %3045 = vmatprep.subr.mxu0 0.0
  %3046 = vmatpush1.msra.mxu0 0.0
  %3047 = vmatprep.subr.mxu0 0.0
  %3048 = vmatpush1.msra.mxu0 0.0
  %3049 = vmatprep.subr.mxu0 0.0
  %3050 = vmatpush1.msra.mxu0 0.0
  %3051 = vmatprep.subr.mxu0 0.0
  %3052 = vmatpush1.msra.mxu0 0.0
  %3053 = vmatprep.mubr.f32.mxu0 0.0
  %3054 = vmatmul.mubr.f32.gmra.mrb[0].mxu0 %v2716
  %v3055 = vpop.f32.mrb[0].mxu0
  %v3056 = vadd.f32 %v2751, %v3055
  %v3057 = vpop.f32.mrb[0].mxu0
  %v3058 = vadd.f32 %v2751, %v3057
  %3059 = vmatprep.mubr.f32.mxu0 0.0
  %3060 = vmatmul.mubr.f32.gmra.mrb[0].mxu0 %v2717
  %v3061 = vpop.f32.mrb[0].mxu0
  %v3062 = vadd.f32 %v2756, %v3061
  %v3063 = vpop.f32.mrb[0].mxu0
  %v3064 = vadd.f32 %v2756, %v3063
  %3065 = vmatprep.mubr.f32.mxu0 0.0
  %3066 = vmatmul.mubr.f32.gmra.mrb[0].mxu0 %v2718
  %v3067 = vpop.f32.mrb[0].mxu0
  %v3068 = vadd.f32 %v2761, %v3067
  %v3069 = vpop.f32.mrb[0].mxu0
  %v3070 = vadd.f32 %v2761, %v3069
  %3071 = vmatprep.mubr.f32.mxu0 0.0
  %3072 = vmatmul.mubr.f32.gmra.mrb[0].mxu0 %v2719
  %v3073 = vpop.f32.mrb[0].mxu0
  %v3074 = vadd.f32 %v2766, %v3073
  %v3075 = vpop.f32.mrb[0].mxu0
  %v3076 = vadd.f32 %v2766, %v3075
  %3077 = vmatprep.mubr.f32.mxu0 0.0
  %3078 = vmatmul.mubr.f32.gmra.mrb[0].mxu0 %v2720
  %v3079 = vpop.f32.mrb[0].mxu0
  %v3080 = vadd.f32 %v2771, %v3079
  %v3081 = vpop.f32.mrb[0].mxu0
  %v3082 = vadd.f32 %v2771, %v3081
  %3083 = vmatprep.mubr.f32.mxu0 0.0
  %3084 = vmatmul.mubr.f32.gmra.mrb[0].mxu0 %v2721
  %v3085 = vpop.f32.mrb[0].mxu0
  %v3086 = vadd.f32 %v2776, %v3085
  %v3087 = vpop.f32.mrb[0].mxu0
  %v3088 = vadd.f32 %v2776, %v3087
  %3089 = vmatprep.mubr.f32.mxu0 0.0
  %3090 = vmatmul.mubr.f32.gmra.mrb[0].mxu0 %v2722
  %v3091 = vpop.f32.mrb[0].mxu0
  %v3092 = vadd.f32 %v2781, %v3091
  %v3093 = vpop.f32.mrb[0].mxu0
  %v3094 = vadd.f32 %v2781, %v3093
  %3095 = vmatprep.mubr.f32.mxu0 0.0
  %3096 = vmatmul.mubr.f32.gmra.mrb[0].mxu0 %v2723
  %v3097 = vpop.f32.mrb[0].mxu0
  %v3098 = vadd.f32 %v2786, %v3097
  %v3099 = vpop.f32.mrb[0].mxu0
  %v3100 = vadd.f32 %v2786, %v3099
  %3101 = vmatprep.mubr.f32.mxu0 0.0
  %3102 = vmatmul.mubr.f32.gmra.mrb[0].mxu0 %v2724
  %v3103 = vpop.f32.mrb[0].mxu0
  %v3104 = vadd.f32 %v2791, %v3103
  %v3105 = vpop.f32.mrb[0].mxu0
  %v3106 = vadd.f32 %v2791, %v3105
  %3107 = vmatprep.mubr.f32.mxu0 0.0
  %3108 = vmatmul.mubr.f32.gmra.mrb[0].mxu0 %v2725
  %v3109 = vpop.f32.mrb[0].mxu0
  %v3110 = vadd.f32 %v2796, %v3109
  %v3111 = vpop.f32.mrb[0].mxu0
  %v3112 = vadd.f32 %v2796, %v3111
  %3113 = vmatprep.mubr.f32.mxu0 0.0
  %3114 = vmatmul.mubr.f32.gmra.mrb[0].mxu0 %v2726
  %v3115 = vpop.f32.mrb[0].mxu0
  %v3116 = vadd.f32 %v2801, %v3115
  %v3117 = vpop.f32.mrb[0].mxu0
  %v3118 = vadd.f32 %v2801, %v3117
  %3119 = vmatprep.mubr.f32.mxu0 0.0
  %3120 = vmatmul.mubr.f32.gmra.mrb[0].mxu0 %v2727
  %v3121 = vpop.f32.mrb[0].mxu0
  %v3122 = vadd.f32 %v2806, %v3121
  %v3123 = vpop.f32.mrb[0].mxu0
  %v3124 = vadd.f32 %v2806, %v3123
  %3125 = vmatprep.mubr.f32.mxu0 0.0
  %3126 = vmatmul.mubr.f32.gmra.mrb[0].mxu0 %v2728
  %v3127 = vpop.f32.mrb[0].mxu0
  %v3128 = vadd.f32 %v2811, %v3127
  %v3129 = vpop.f32.mrb[0].mxu0
  %v3130 = vadd.f32 %v2811, %v3129
  %3131 = vmatprep.mubr.f32.mxu0 0.0
  %3132 = vmatmul.mubr.f32.gmra.mrb[0].mxu0 %v2729
  %v3133 = vpop.f32.mrb[0].mxu0
  %v3134 = vadd.f32 %v2816, %v3133
  %v3135 = vpop.f32.mrb[0].mxu0
  %v3136 = vadd.f32 %v2816, %v3135
  %3137 = vmatprep.mubr.f32.mxu0 0.0
  %3138 = vmatmul.mubr.f32.gmra.mrb[0].mxu0 %v2730
  %v3139 = vpop.f32.mrb[0].mxu0
  %v3140 = vadd.f32 %v2821, %v3139
  %v3141 = vpop.f32.mrb[0].mxu0
  %v3142 = vadd.f32 %v2821, %v3141
  %3143 = vmatprep.mubr.f32.mxu0 0.0
  %3144 = vmatmul.mubr.f32.gmra.mrb[0].mxu0 %v2731
  %v3145 = vpop.f32.mrb[0].mxu0
  %v3146 = vadd.f32 %v2826, %v3145
  %v3147 = vpop.f32.mrb[0].mxu0
  %v3148 = vadd.f32 %v2826, %v3147
  %3149 = vdwg.mxu0
  %v3150 = vmax.f32 %v2895, 0.0
  %v3151 = vmax.f32 %v2897, 0.0
  %v3152 = vmax.f32 %v3056, 0.0
  %v3153 = vmax.f32 %v3058, 0.0
  %v3154 = vmax.f32 %v2901, 0.0
  %v3155 = vmax.f32 %v2903, 0.0
  %v3156 = vmax.f32 %v3062, 0.0
  %v3157 = vmax.f32 %v3064, 0.0
  %v3158 = vmax.f32 %v2907, 0.0
  %v3159 = vmax.f32 %v2909, 0.0
  %v3160 = vmax.f32 %v3068, 0.0
  %v3161 = vmax.f32 %v3070, 0.0
  %v3162 = vmax.f32 %v2913, 0.0
  %v3163 = vmax.f32 %v2915, 0.0
  %v3164 = vmax.f32 %v3074, 0.0
  %v3165 = vmax.f32 %v3076, 0.0
  %v3166 = vmax.f32 %v2919, 0.0
  %v3167 = vmax.f32 %v2921, 0.0
  %v3168 = vmax.f32 %v3080, 0.0
  %v3169 = vmax.f32 %v3082, 0.0
  %v3170 = vmax.f32 %v2925, 0.0
  %v3171 = vmax.f32 %v2927, 0.0
  %v3172 = vmax.f32 %v3086, 0.0
  %v3173 = vmax.f32 %v3088, 0.0
  %v3174 = vmax.f32 %v2931, 0.0
  %v3175 = vmax.f32 %v2933, 0.0
  %v3176 = vmax.f32 %v3092, 0.0
  %v3177 = vmax.f32 %v3094, 0.0
  %v3178 = vmax.f32 %v2937, 0.0
  %v3179 = vmax.f32 %v2939, 0.0
  %v3180 = vmax.f32 %v3098, 0.0
  %v3181 = vmax.f32 %v3100, 0.0
  %v3182 = vmax.f32 %v2943, 0.0
  %v3183 = vmax.f32 %v2945, 0.0
  %v3184 = vmax.f32 %v3104, 0.0
  %v3185 = vmax.f32 %v3106, 0.0
  %v3186 = vmax.f32 %v2949, 0.0
  %v3187 = vmax.f32 %v2951, 0.0
  %v3188 = vmax.f32 %v3110, 0.0
  %v3189 = vmax.f32 %v3112, 0.0
  %v3190 = vmax.f32 %v2955, 0.0
  %v3191 = vmax.f32 %v2957, 0.0
  %v3192 = vmax.f32 %v3116, 0.0
  %v3193 = vmax.f32 %v3118, 0.0
  %v3194 = vmax.f32 %v2961, 0.0
  %v3195 = vmax.f32 %v2963, 0.0
  %v3196 = vmax.f32 %v3122, 0.0
  %v3197 = vmax.f32 %v3124, 0.0
  %v3198 = vmax.f32 %v2967, 0.0
  %v3199 = vmax.f32 %v2969, 0.0
  %v3200 = vmax.f32 %v3128, 0.0
  %v3201 = vmax.f32 %v3130, 0.0
  %v3202 = vmax.f32 %v2973, 0.0
  %v3203 = vmax.f32 %v2975, 0.0
  %v3204 = vmax.f32 %v3134, 0.0
  %v3205 = vmax.f32 %v3136, 0.0
  %v3206 = vmax.f32 %v2979, 0.0
  %v3207 = vmax.f32 %v2981, 0.0
  %v3208 = vmax.f32 %v3140, 0.0
  %v3209 = vmax.f32 %v3142, 0.0
  %v3210 = vmax.f32 %v2985, 0.0
  %v3211 = vmax.f32 %v2987, 0.0
  %v3212 = vmax.f32 %v3146, 0.0
  %v3213 = vmax.f32 %v3148, 0.0
  %v3214 = vld [vmem:[%s7] sm:$0xff]
  %v3215 = vld [vmem:[%s8] sm:$0xff]
  %3217 = vset.pattern.permute.xlu0 0
  %3218 = vperm.xlu0 %3217, %v3215
  %v3219 = vpop.permute.xlu0 %3218
  %3221 = vmatprep.subr.mxu0 %v3151
  %3222 = vmatpush1.msra.mxu0 %v3150
  %3223 = vmatprep.subr.mxu0 %v3155
  %3224 = vmatpush1.msra.mxu0 %v3154
  %3225 = vmatprep.subr.mxu0 %v3159
  %3226 = vmatpush1.msra.mxu0 %v3158
  %3227 = vmatprep.subr.mxu0 %v3163
  %3228 = vmatpush1.msra.mxu0 %v3162
  %3229 = vmatprep.subr.mxu0 %v3167
  %3230 = vmatpush1.msra.mxu0 %v3166
  %3231 = vmatprep.subr.mxu0 %v3171
  %3232 = vmatpush1.msra.mxu0 %v3170
  %3233 = vmatprep.subr.mxu0 %v3175
  %3234 = vmatpush1.msra.mxu0 %v3174
  %3235 = vmatprep.subr.mxu0 %v3179
  %3236 = vmatpush1.msra.mxu0 %v3178
  %3237 = vmatprep.subr.mxu0 %v3183
  %3238 = vmatpush1.msra.mxu0 %v3182
  %3239 = vmatprep.subr.mxu0 %v3187
  %3240 = vmatpush1.msra.mxu0 %v3186
  %3241 = vmatprep.subr.mxu0 %v3191
  %3242 = vmatpush1.msra.mxu0 %v3190
  %3243 = vmatprep.subr.mxu0 %v3195
  %3244 = vmatpush1.msra.mxu0 %v3194
  %3245 = vmatprep.subr.mxu0 %v3199
  %3246 = vmatpush1.msra.mxu0 %v3198
  %3247 = vmatprep.subr.mxu0 %v3203
  %3248 = vmatpush1.msra.mxu0 %v3202
  %3249 = vmatprep.subr.mxu0 %v3207
  %3250 = vmatpush1.msra.mxu0 %v3206
  %3251 = vmatprep.subr.mxu0 %v3211
  %3252 = vmatpush1.msra.mxu0 %v3210
  %3253 = vmatprep.subr.mxu0 0.0
  %3254 = vmatpush1.msra.mxu0 0.0
  %3255 = vmatprep.subr.mxu0 0.0
  %3256 = vmatpush1.msra.mxu0 0.0
  %3257 = vmatprep.subr.mxu0 0.0
  %3258 = vmatpush1.msra.mxu0 0.0
  %3259 = vmatprep.subr.mxu0 0.0
  %3260 = vmatpush1.msra.mxu0 0.0
  %3261 = vmatprep.subr.mxu0 0.0
  %3262 = vmatpush1.msra.mxu0 0.0
  %3263 = vmatprep.subr.mxu0 0.0
  %3264 = vmatpush1.msra.mxu0 0.0
  %3265 = vmatprep.subr.mxu0 0.0
  %3266 = vmatpush1.msra.mxu0 0.0
  %3267 = vmatprep.subr.mxu0 0.0
  %3268 = vmatpush1.msra.mxu0 0.0
  %3269 = vmatprep.subr.mxu0 0.0
  %3270 = vmatpush1.msra.mxu0 0.0
  %3271 = vmatprep.subr.mxu0 0.0
  %3272 = vmatpush1.msra.mxu0 0.0
  %3273 = vmatprep.subr.mxu0 0.0
  %3274 = vmatpush1.msra.mxu0 0.0
  %3275 = vmatprep.subr.mxu0 0.0
  %3276 = vmatpush1.msra.mxu0 0.0
  %3277 = vmatprep.subr.mxu0 0.0
  %3278 = vmatpush1.msra.mxu0 0.0
  %3279 = vmatprep.subr.mxu0 0.0
  %3280 = vmatpush1.msra.mxu0 0.0
  %3281 = vmatprep.subr.mxu0 0.0
  %3282 = vmatpush1.msra.mxu0 0.0
  %3283 = vmatprep.subr.mxu0 0.0
  %3284 = vmatpush1.msra.mxu0 0.0
  %3285 = vmatprep.mubr.f32.mxu0 0.0
  %3286 = vmatmul.mubr.f32.gmra.mrb[0].mxu0 %v3214
  %v3287 = vpop.f32.mrb[0].mxu0
  %v3288 = vadd.f32 %v3219, %v3287
  %v3289 = vpop.f32.mrb[0].mxu0
  %v3290 = vadd.f32 %v3219, %v3289
  %3291 = vdwg.mxu0
  %3292 = vmatprep.subr.mxu0 %v3153
  %3293 = vmatpush1.msra.mxu0 %v3152
  %3294 = vmatprep.subr.mxu0 %v3157
  %3295 = vmatpush1.msra.mxu0 %v3156
  %3296 = vmatprep.subr.mxu0 %v3161
  %3297 = vmatpush1.msra.mxu0 %v3160
  %3298 = vmatprep.subr.mxu0 %v3165
  %3299 = vmatpush1.msra.mxu0 %v3164
  %3300 = vmatprep.subr.mxu0 %v3169
  %3301 = vmatpush1.msra.mxu0 %v3168
  %3302 = vmatprep.subr.mxu0 %v3173
  %3303 = vmatpush1.msra.mxu0 %v3172
  %3304 = vmatprep.subr.mxu0 %v3177
  %3305 = vmatpush1.msra.mxu0 %v3176
  %3306 = vmatprep.subr.mxu0 %v3181
  %3307 = vmatpush1.msra.mxu0 %v3180
  %3308 = vmatprep.subr.mxu0 %v3185
  %3309 = vmatpush1.msra.mxu0 %v3184
  %3310 = vmatprep.subr.mxu0 %v3189
  %3311 = vmatpush1.msra.mxu0 %v3188
  %3312 = vmatprep.subr.mxu0 %v3193
  %3313 = vmatpush1.msra.mxu0 %v3192
  %3314 = vmatprep.subr.mxu0 %v3197
  %3315 = vmatpush1.msra.mxu0 %v3196
  %3316 = vmatprep.subr.mxu0 %v3201
  %3317 = vmatpush1.msra.mxu0 %v3200
  %3318 = vmatprep.subr.mxu0 %v3205
  %3319 = vmatpush1.msra.mxu0 %v3204
  %3320 = vmatprep.subr.mxu0 %v3209
  %3321 = vmatpush1.msra.mxu0 %v3208
  %3322 = vmatprep.subr.mxu0 %v3213
  %3323 = vmatpush1.msra.mxu0 %v3212
  %3324 = vmatprep.subr.mxu0 0.0
  %3325 = vmatpush1.msra.mxu0 0.0
  %3326 = vmatprep.subr.mxu0 0.0
  %3327 = vmatpush1.msra.mxu0 0.0
  %3328 = vmatprep.subr.mxu0 0.0
  %3329 = vmatpush1.msra.mxu0 0.0
  %3330 = vmatprep.subr.mxu0 0.0
  %3331 = vmatpush1.msra.mxu0 0.0
  %3332 = vmatprep.subr.mxu0 0.0
  %3333 = vmatpush1.msra.mxu0 0.0
  %3334 = vmatprep.subr.mxu0 0.0
  %3335 = vmatpush1.msra.mxu0 0.0
  %3336 = vmatprep.subr.mxu0 0.0
  %3337 = vmatpush1.msra.mxu0 0.0
  %3338 = vmatprep.subr.mxu0 0.0
  %3339 = vmatpush1.msra.mxu0 0.0
  %3340 = vmatprep.subr.mxu0 0.0
  %3341 = vmatpush1.msra.mxu0 0.0
  %3342 = vmatprep.subr.mxu0 0.0
  %3343 = vmatpush1.msra.mxu0 0.0
  %3344 = vmatprep.subr.mxu0 0.0
  %3345 = vmatpush1.msra.mxu0 0.0
  %3346 = vmatprep.subr.mxu0 0.0
  %3347 = vmatpush1.msra.mxu0 0.0
  %3348 = vmatprep.subr.mxu0 0.0
  %3349 = vmatpush1.msra.mxu0 0.0
  %3350 = vmatprep.subr.mxu0 0.0
  %3351 = vmatpush1.msra.mxu0 0.0
  %3352 = vmatprep.subr.mxu0 0.0
  %3353 = vmatpush1.msra.mxu0 0.0
  %3354 = vmatprep.subr.mxu0 0.0
  %3355 = vmatpush1.msra.mxu0 0.0
  %3356 = vmatprep.mubr.f32.mxu0 0.0
  %3357 = vmatmul.mubr.f32.gmra.mrb[0].mxu0 %v3214
  %v3358 = vpop.f32.mrb[0].mxu0
  %v3359 = vadd.f32 %v3219, %v3358
  %v3360 = vpop.f32.mrb[0].mxu0
  %v3361 = vadd.f32 %v3219, %v3360
  %3362 = vdwg.mxu0
  %3363 = vst [vmem:[%s9] sm:$0xff] %v3288
  %3364 = vst [vmem:[%s9 + $0x8] sm:$0xff] %v3290
  %3365 = vst [vmem:[%s9 + $0x10] sm:$0xff] %v3359
  %3366 = vst [vmem:[%s9 + $0x18] sm:$0xff] %v3361
  // Predicated region
  $region38: #{mlp2_forward.1} parent=0 // pred_check
    _
  $region39: #{mlp2_forward.1} parent=0 // pred_check_branch
    %3368 = sbr.rel (0) target = $region41
  $region40: #{mlp2_forward.1} parent=0 // pred_region
    _
  $region41: #{mlp2_forward.1} parent=0 // pred_fallthru
    _
  // Predicated region
  $region42: #{mlp2_forward.1} parent=0 // pred_check
    _
  $region43: #{mlp2_forward.1} parent=0 // pred_check_branch
    %3370 = sbr.rel (0) target = $region45
  $region44: #{mlp2_forward.1} parent=0 // pred_region
    _
  $region45: #{mlp2_forward.1} parent=0 // pred_fallthru
    _

</llo_original>
